<compile_context>
chip_gen: v6e
topology: v6e:2x2x1
jax: 0.10.0
libtpu: 0.0.40
codegen_flags: <defaults>
</compile_context>

<pallas_src>
import math
from functools import partial

import jax
import jax.numpy as jnp
from jax.experimental import pallas as pl
from jax.experimental.pallas import tpu as pltpu

VMEM_LIMIT = 48 * 1024 * 1024  # bytes; <= 64 MiB (v7x physical), > default scoped


# ----------------------------------------------------------------------------
# Kernels
# ----------------------------------------------------------------------------

def _attn_block_kernel(x_ref, kv_ref, bias_ref,
                       wq_ref, bq_ref, wkv_ref, bkv_ref, wo_ref, bo_ref,
                       ga_ref, gb_ref, o_ref, *, n_heads, eps):
    """Fused: Q/KV proj -> multi-head attention -> out proj -> +residual -> LN."""
    x = x_ref[...]                                   # (tq, d)  float32
    d = x.shape[-1]
    dk = d // n_heads

    xb = x.astype(jnp.bfloat16)                      # bf16 MXU inputs
    kvb = kv_ref[...].astype(jnp.bfloat16)           # (Tk, d)
    bias = bias_ref[...].astype(jnp.float32)         # (tq, Tk) additive mask bias

    # Q projection (1/sqrt(dk) already folded into wq/bq) + fused K|V projection.
    q = jnp.dot(xb, wq_ref[...], preferred_element_type=jnp.float32) + bq_ref[...]
    kv = jnp.dot(kvb, wkv_ref[...], preferred_element_type=jnp.float32) + bkv_ref[...]

    qb = q.astype(jnp.bfloat16)                      # (tq, d)
    kvp = kv.astype(jnp.bfloat16)                    # (Tk, 2d)
    wo = wo_ref[...]                                 # (d, d) bf16

    # Per-head attention; output projection fused into the head loop
    # (no lane-dim concat); softmax normalization deferred to the (tq, dk) result.
    y = jnp.zeros(x.shape, jnp.float32)
    for hi in range(n_heads):
        lo = hi * dk
        qh = qb[:, lo:lo + dk]                       # (tq, dk)
        kh = kvp[:, lo:lo + dk]                      # (Tk, dk)
        vh = kvp[:, d + lo:d + lo + dk]              # (Tk, dk)
        # q @ k^T via dot_general contraction (no materialized transpose).
        s = jax.lax.dot_general(qh, kh, (((1,), (1,)), ((), ())),
                                preferred_element_type=jnp.float32)     # (tq, Tk)
        s = s + bias
        s = s - jnp.max(s, axis=-1, keepdims=True)
        p = jnp.exp(s)
        inv = pl.reciprocal(jnp.sum(p, axis=-1, keepdims=True), approx=True)
        oh = jnp.dot(p.astype(jnp.bfloat16), vh,
                     preferred_element_type=jnp.float32) * inv          # (tq, dk)
        # Fused output projection: sublane slice of wo (dk rows).
        y = y + jnp.dot(oh.astype(jnp.bfloat16), wo[lo:lo + dk, :],
                        preferred_element_type=jnp.float32)
    y = y + bo_ref[...]

    # Residual + LayerNorm epilogue (matches torch LayerNormalization, eps=1e-6).
    z = x + y
    mean = jnp.mean(z, axis=-1, keepdims=True)
    var = jnp.mean((z - mean) ** 2, axis=-1, keepdims=True)
    o_ref[...] = (ga_ref[...] * (z - mean) * jax.lax.rsqrt(var + eps)
                  + gb_ref[...]).astype(o_ref.dtype)


def _ffn_block_kernel(x_ref, w1_ref, b1_ref, w2_ref, b2_ref,
                      ga_ref, gb_ref, o_ref, *, eps):
    """Fused: FFNN (W1 -> ReLU -> W2) -> +residual -> LN.  Dropout == identity."""
    x = x_ref[...]                                                       # (tm, d)
    hid = jnp.dot(x.astype(jnp.bfloat16), w1_ref[...],
                  preferred_element_type=jnp.float32) + b1_ref[...]
    hid = jnp.maximum(hid, 0.0)
    y = jnp.dot(hid.astype(jnp.bfloat16), w2_ref[...],
                preferred_element_type=jnp.float32) + b2_ref[...]

    z = x + y
    mean = jnp.mean(z, axis=-1, keepdims=True)
    var = jnp.mean((z - mean) ** 2, axis=-1, keepdims=True)
    o_ref[...] = (ga_ref[...] * (z - mean) * jax.lax.rsqrt(var + eps)
                  + gb_ref[...]).astype(o_ref.dtype)


# ----------------------------------------------------------------------------
# Pallas wrappers
# ----------------------------------------------------------------------------

def _row_tile(M, cap):
    """Largest row tile <= cap that divides M (multiple of 8), else M."""
    if M <= cap or M % 8 != 0:
        return M
    for t in (512, 256, 128, 64, 32, 16, 8):
        if t <= cap and M % t == 0:
            return t
    return M


def _const_spec(shape):
    nd = len(shape)
    return pl.BlockSpec(shape, lambda *_: (0,) * nd)


def attn_block(x, kv, bias, ap, ln_a, ln_b, n_heads, eps=1e-6):
    """x: (B,Tq,d), kv: (B,Tk,d), bias: (B,Tq,Tk) additive mask (bf16)."""
    B, Tq, d = x.shape
    Tk = kv.shape[1]
    d2 = 2 * d
    tq = _row_tile(Tq, cap=256)
    n_tq = Tq // tq

    return pl.pallas_call(
        partial(_attn_block_kernel, n_heads=n_heads, eps=eps),
        out_shape=jax.ShapeDtypeStruct((B, Tq, d), x.dtype),
        grid=(B, n_tq),
        in_specs=[
            pl.BlockSpec((None, tq, d), lambda b, i: (b, i, 0)),    # x (query rows)
            pl.BlockSpec((None, Tk, d), lambda b, i: (b, 0, 0)),    # kv source
            pl.BlockSpec((None, tq, Tk), lambda b, i: (b, i, 0)),   # mask bias
            _const_spec((d, d)),     # wq  (scale-folded, bf16)
            _const_spec((1, d)),     # bq  (scale-folded, f32)
            _const_spec((d, d2)),    # wkv (fused K|V, bf16)
            _const_spec((1, d2)),    # bkv
            _const_spec((d, d)),     # wo  (bf16)
            _const_spec((1, d)),     # bo
            _const_spec((1, d)),     # LN alpha
            _const_spec((1, d)),     # LN bias
        ],
        out_specs=pl.BlockSpec((None, tq, d), lambda b, i: (b, i, 0)),
        compiler_params=pltpu.CompilerParams(
            dimension_semantics=("parallel", "parallel"),
            vmem_limit_bytes=VMEM_LIMIT),
    )(x, kv, bias,
      ap["wq"], ap["bq"], ap["wkv"], ap["bkv"], ap["wo"], ap["bo"],
      ln_a, ln_b)


def ffn_block(x2d, p, ln_a, ln_b, eps=1e-6):
    M, d = x2d.shape
    d_int = p["ff_w1"].shape[1]
    tm = _row_tile(M, cap=512)

    return pl.pallas_call(
        partial(_ffn_block_kernel, eps=eps),
        out_shape=jax.ShapeDtypeStruct((M, d), x2d.dtype),
        grid=(M // tm,),
        in_specs=[
            pl.BlockSpec((tm, d), lambda i: (i, 0)),
            _const_spec((d, d_int)),
            _const_spec((1, d_int)),
            _const_spec((d_int, d)),
            _const_spec((1, d)),
            _const_spec((1, d)),
            _const_spec((1, d)),
        ],
        out_specs=pl.BlockSpec((tm, d), lambda i: (i, 0)),
        compiler_params=pltpu.CompilerParams(
            dimension_semantics=("parallel",),
            vmem_limit_bytes=VMEM_LIMIT),
    )(x2d, p["ff_w1"], p["ff_b1"], p["ff_w2"], p["ff_b2"], ln_a, ln_b)


# ----------------------------------------------------------------------------
# Model glue (3 fused pallas_calls per decoder block)
# ----------------------------------------------------------------------------

def decoder_block(p, x, enc, src_bias, tgt_bias, n_heads):
    B, T, d = x.shape
    x = attn_block(x, x, tgt_bias, p["self_attn"], p["ln0_a"], p["ln0_b"], n_heads)
    x = attn_block(x, enc, src_bias, p["cross_attn"], p["ln1_a"], p["ln1_b"], n_heads)
    x = ffn_block(x.reshape(B * T, d), p, p["ln2_a"], p["ln2_b"]).reshape(B, T, d)
    return x


def decoder_forward(kparams, x, encoder_output, src_mask, tgt_mask, n_heads):
    # Convert 0/1 masks (B,1,Tq,Tk) into additive biases ONCE (shared by all
    # layers / grid steps); heads broadcast inside the kernel.
    tgt_bias = jnp.where(tgt_mask[:, 0] == 0, -1e9, 0.0).astype(jnp.bfloat16)
    src_bias = jnp.where(src_mask[:, 0] == 0, -1e9, 0.0).astype(jnp.bfloat16)
    for p in kparams["layers"]:
        x = decoder_block(p, x, encoder_output, src_bias, tgt_bias, n_heads)
    return x


# ----------------------------------------------------------------------------
# Parameter init (mirrors nn.Linear / LayerNormalization) + kernel-param prep
# ----------------------------------------------------------------------------

def _linear_init(key, fan_in, fan_out):
    k1, k2 = jax.random.split(key)
    bound = 1.0 / math.sqrt(fan_in)
    w = jax.random.uniform(k1, (fan_in, fan_out), jnp.float32, -bound, bound)
    b = jax.random.uniform(k2, (fan_out,), jnp.float32, -bound, bound)
    # Matmul weights stored in bf16 (halves HBM/VMEM weight footprint); biases f32.
    return w.astype(jnp.bfloat16), b


def _mha_init(key, d_model):
    ks = jax.random.split(key, 4)
    wq, bq = _linear_init(ks[0], d_model, d_model)
    wk, bk = _linear_init(ks[1], d_model, d_model)
    wv, bv = _linear_init(ks[2], d_model, d_model)
    wo, bo = _linear_init(ks[3], d_model, d_model)
    return dict(wq=wq, bq=bq, wk=wk, bk=bk, wv=wv, bv=bv, wo=wo, bo=bo)


def init_decoder_params(key, decoder_num, d_model, d_internal):
    layers = []
    for lk in jax.random.split(key, decoder_num):
        ks = jax.random.split(lk, 4)
        w1, b1 = _linear_init(ks[2], d_model, d_internal)
        w2, b2 = _linear_init(ks[3], d_internal, d_model)
        layers.append(dict(
            self_attn=_mha_init(ks[0], d_model),
            cross_attn=_mha_init(ks[1], d_model),
            ff_w1=w1, ff_b1=b1, ff_w2=w2, ff_b2=b2,
            ln0_a=jnp.ones((d_model,), jnp.float32), ln0_b=jnp.zeros((d_model,), jnp.float32),
            ln1_a=jnp.ones((d_model,), jnp.float32), ln1_b=jnp.zeros((d_model,), jnp.float32),
            ln2_a=jnp.ones((d_model,), jnp.float32), ln2_b=jnp.zeros((d_model,), jnp.float32),
        ))
    return dict(layers=layers)


def prepare_kernel_params(params, n_heads):
    """Fold 1/sqrt(dk) into wq/bq, fuse K|V, keep matmul weights bf16,
    reshape vector params to (1, n)."""
    out_layers = []
    for p in params["layers"]:
        d = p["ff_w2"].shape[1]
        scale = 1.0 / math.sqrt(d // n_heads)

        def attn(a):
            return dict(
                wq=(a["wq"].astype(jnp.float32) * scale).astype(jnp.bfloat16),
                bq=(a["bq"] * scale).reshape(1, -1).astype(jnp.float32),
                wkv=jnp.concatenate([a["wk"], a["wv"]], axis=1),
                bkv=jnp.concatenate([a["bk"], a["bv"]], axis=0).reshape(1, -1),
                wo=a["wo"],
                bo=a["bo"].reshape(1, -1),
            )

        out_layers.append(dict(
            self_attn=attn(p["self_attn"]),
            cross_attn=attn(p["cross_attn"]),
            ff_w1=p["ff_w1"], ff_b1=p["ff_b1"].reshape(1, -1),
            ff_w2=p["ff_w2"], ff_b2=p["ff_b2"].reshape(1, -1),
            ln0_a=p["ln0_a"].reshape(1, -1), ln0_b=p["ln0_b"].reshape(1, -1),
            ln1_a=p["ln1_a"].reshape(1, -1), ln1_b=p["ln1_b"].reshape(1, -1),
            ln2_a=p["ln2_a"].reshape(1, -1), ln2_b=p["ln2_b"].reshape(1, -1),
        ))
    return dict(layers=out_layers)


# ----------------------------------------------------------------------------
# Pure-JAX reference (f32 compute on the same bf16 weights)
# ----------------------------------------------------------------------------

def _ref_ln(z, a, b, eps=1e-6):
    mean = z.mean(-1, keepdims=True)
    var = ((z - mean) ** 2).mean(-1, keepdims=True)
    return a * (z - mean) / jnp.sqrt(var + eps) + b


def _ref_mha(p, q_in, kv_in, mask, h):
    B, Tq, d = q_in.shape
    Tk = kv_in.shape[1]
    dk = d // h
    f32 = lambda w: w.astype(jnp.float32)
    q = (q_in @ f32(p["wq"]) + p["bq"]).reshape(B, Tq, h, dk).transpose(0, 2, 1, 3)
    k = (kv_in @ f32(p["wk"]) + p["bk"]).reshape(B, Tk, h, dk).transpose(0, 2, 1, 3)
    v = (kv_in @ f32(p["wv"]) + p["bv"]).reshape(B, Tk, h, dk).transpose(0, 2, 1, 3)
    s = jnp.einsum("bhqd,bhkd->bhqk", q, k) / math.sqrt(dk)
    s = jnp.where(mask == 0, -1e9, s)
    w = jax.nn.softmax(s, axis=-1)
    o = jnp.einsum("bhqk,bhkd->bhqd", w, v).transpose(0, 2, 1, 3).reshape(B, Tq, d)
    return o @ f32(p["wo"]) + p["bo"]


def _ref_decoder(params, x, enc, src_mask, tgt_mask, h):
    for p in params["layers"]:
        x = _ref_ln(x + _ref_mha(p["self_attn"], x, x, tgt_mask, h), p["ln0_a"], p["ln0_b"])
        x = _ref_ln(x + _ref_mha(p["cross_attn"], x, enc, src_mask, h), p["ln1_a"], p["ln1_b"])
        f = (jnp.maximum(x @ p["ff_w1"].astype(jnp.float32) + p["ff_b1"], 0.0)
             @ p["ff_w2"].astype(jnp.float32) + p["ff_b2"])
        x = _ref_ln(x + f, p["ln2_a"], p["ln2_b"])
    return x


# ----------------------------------------------------------------------------
# Main
# ----------------------------------------------------------------------------

if __name__ == "__main__":
    decoder_num = 2
    d_model = 32
    h = 4
    d_internal = 64
    B, T_tgt, T_src = 2, 8, 10

    key = jax.random.PRNGKey(0)
    kx, ke, kp = jax.random.split(key, 3)

    x = jax.random.normal(kx, (B, T_tgt, d_model), jnp.float32)
    encoder_output = jax.random.normal(ke, (B, T_src, d_model), jnp.float32)

    # causal target mask (B,1,T_tgt,T_tgt); full source mask (B,1,T_tgt,T_src)
    tgt_mask = jnp.tile(jnp.tril(jnp.ones((T_tgt, T_tgt), jnp.float32))[None, None],
                        (B, 1, 1, 1))
    src_mask = jnp.ones((B, 1, T_tgt, T_src), jnp.float32)

    params = init_decoder_params(kp, decoder_num, d_model, d_internal)
    kparams = prepare_kernel_params(params, h)

    fwd = jax.jit(partial(decoder_forward, n_heads=h))
    out = fwd(kparams, x, encoder_output, src_mask, tgt_mask)
    out = jax.block_until_ready(out)

    ref = _ref_decoder(params, x, encoder_output, src_mask, tgt_mask, h)
    assert out.shape == (B, T_tgt, d_model)
    # Tolerance covers bf16 MXU inputs + approx-reciprocal softmax denominator.
    assert jnp.allclose(out, ref, atol=3e-2, rtol=3e-2), \
        f"mismatch vs pure-JAX reference (max abs err {float(jnp.max(jnp.abs(out - ref)))})"

    print("KERNEL_OK")
</pallas_src>

<mosaic_0001>
module attributes {stable_mosaic.version = 11 : i64} {
  func.func @_attn_block_kernel(%arg0: i32, %arg1: i32, %arg2: memref<1x8x32xf32, #tpu.memory_space<vmem>>, %arg3: memref<1x8x32xf32, #tpu.memory_space<vmem>>, %arg4: memref<1x8x8xbf16, #tpu.memory_space<vmem>>, %arg5: memref<32x32xbf16, #tpu.memory_space<vmem>>, %arg6: memref<1x32xf32, #tpu.memory_space<vmem>>, %arg7: memref<32x64xbf16, #tpu.memory_space<vmem>>, %arg8: memref<1x64xf32, #tpu.memory_space<vmem>>, %arg9: memref<32x32xbf16, #tpu.memory_space<vmem>>, %arg10: memref<1x32xf32, #tpu.memory_space<vmem>>, %arg11: memref<1x32xf32, #tpu.memory_space<vmem>>, %arg12: memref<1x32xf32, #tpu.memory_space<vmem>>, %arg13: memref<1x8x32xf32, #tpu.memory_space<vmem>>) attributes {dimension_semantics = [#tpu.dimension_semantics<parallel>, #tpu.dimension_semantics<parallel>], iteration_bounds = array<i64: 2, 1>, scalar_prefetch = 0 : i64, scratch_operands = 0 : i64, tpu.core_type = #tpu.core_type<tc>, window_params = [{transform_indices = @transform_0, window_bounds = array<i64: 1, 8, 32>}, {transform_indices = @transform_1, window_bounds = array<i64: 1, 8, 32>}, {transform_indices = @transform_2, window_bounds = array<i64: 1, 8, 8>}, {pipeline_mode = #tpu.pipeline_mode<synchronous>, transform_indices = @transform_3, window_bounds = array<i64: 32, 32>}, {pipeline_mode = #tpu.pipeline_mode<synchronous>, transform_indices = @transform_4, window_bounds = array<i64: 1, 32>}, {pipeline_mode = #tpu.pipeline_mode<synchronous>, transform_indices = @transform_5, window_bounds = array<i64: 32, 64>}, {pipeline_mode = #tpu.pipeline_mode<synchronous>, transform_indices = @transform_6, window_bounds = array<i64: 1, 64>}, {pipeline_mode = #tpu.pipeline_mode<synchronous>, transform_indices = @transform_7, window_bounds = array<i64: 32, 32>}, {pipeline_mode = #tpu.pipeline_mode<synchronous>, transform_indices = @transform_8, window_bounds = array<i64: 1, 32>}, {pipeline_mode = #tpu.pipeline_mode<synchronous>, transform_indices = @transform_9, window_bounds = array<i64: 1, 32>}, {pipeline_mode = #tpu.pipeline_mode<synchronous>, transform_indices = @transform_10, window_bounds = array<i64: 1, 32>}, {transform_indices = @transform_11, window_bounds = array<i64: 1, 8, 32>}]} {
    %c0 = arith.constant 0 : index
    %c0_0 = arith.constant 0 : index
    %c0_1 = arith.constant 0 : index
    %0 = vector.load %arg2[%c0, %c0_0, %c0_1] : memref<1x8x32xf32, #tpu.memory_space<vmem>>, vector<1x8x32xf32>
    %1 = vector.shape_cast %0 : vector<1x8x32xf32> to vector<8x32xf32>
    %2 = arith.truncf %1 : vector<8x32xf32> to vector<8x32xbf16>
    %c0_2 = arith.constant 0 : index
    %c0_3 = arith.constant 0 : index
    %c0_4 = arith.constant 0 : index
    %3 = vector.load %arg3[%c0_2, %c0_3, %c0_4] : memref<1x8x32xf32, #tpu.memory_space<vmem>>, vector<1x8x32xf32>
    %4 = vector.shape_cast %3 : vector<1x8x32xf32> to vector<8x32xf32>
    %5 = arith.truncf %4 : vector<8x32xf32> to vector<8x32xbf16>
    %c0_5 = arith.constant 0 : index
    %c0_6 = arith.constant 0 : index
    %c0_7 = arith.constant 0 : index
    %6 = vector.load %arg4[%c0_5, %c0_6, %c0_7] : memref<1x8x8xbf16, #tpu.memory_space<vmem>>, vector<1x8x8xbf16>
    %7 = vector.shape_cast %6 : vector<1x8x8xbf16> to vector<8x8xbf16>
    %8 = arith.extf %7 : vector<8x8xbf16> to vector<8x8xf32>
    %c0_8 = arith.constant 0 : index
    %c0_9 = arith.constant 0 : index
    %9 = vector.load %arg5[%c0_8, %c0_9] : memref<32x32xbf16, #tpu.memory_space<vmem>>, vector<32x32xbf16>
    %cst = arith.constant dense<0.000000e+00> : vector<8x32xf32>
    %10 = tpu.matmul %2, %9, %cst {dimension_numbers = #tpu.dot_dimension_numbers<[1], [0], [0], [1], [0, 0, 1, 1], [], []>} : vector<8x32xbf16>, vector<32x32xbf16>, vector<8x32xf32> -> vector<8x32xf32>
    %c0_10 = arith.constant 0 : index
    %c0_11 = arith.constant 0 : index
    %11 = vector.load %arg6[%c0_10, %c0_11] : memref<1x32xf32, #tpu.memory_space<vmem>>, vector<1x32xf32>
    %12 = vector.broadcast %11 : vector<1x32xf32> to vector<8x32xf32>
    %13 = arith.addf %10, %12 : vector<8x32xf32>
    %c0_12 = arith.constant 0 : index
    %c0_13 = arith.constant 0 : index
    %14 = vector.load %arg7[%c0_12, %c0_13] : memref<32x64xbf16, #tpu.memory_space<vmem>>, vector<32x64xbf16>
    %cst_14 = arith.constant dense<0.000000e+00> : vector<8x64xf32>
    %15 = tpu.matmul %5, %14, %cst_14 {dimension_numbers = #tpu.dot_dimension_numbers<[1], [0], [0], [1], [0, 0, 1, 1], [], []>} : vector<8x32xbf16>, vector<32x64xbf16>, vector<8x64xf32> -> vector<8x64xf32>
    %c0_15 = arith.constant 0 : index
    %c0_16 = arith.constant 0 : index
    %16 = vector.load %arg8[%c0_15, %c0_16] : memref<1x64xf32, #tpu.memory_space<vmem>>, vector<1x64xf32>
    %17 = vector.broadcast %16 : vector<1x64xf32> to vector<8x64xf32>
    %18 = arith.addf %15, %17 : vector<8x64xf32>
    %19 = arith.truncf %13 : vector<8x32xf32> to vector<8x32xbf16>
    %20 = arith.truncf %18 : vector<8x64xf32> to vector<8x64xbf16>
    %c0_17 = arith.constant 0 : index
    %c0_18 = arith.constant 0 : index
    %21 = vector.load %arg9[%c0_17, %c0_18] : memref<32x32xbf16, #tpu.memory_space<vmem>>, vector<32x32xbf16>
    %cst_19 = arith.constant 0.000000e+00 : f32
    %22 = vector.broadcast %cst_19 : f32 to vector<8x32xf32>
    %23 = vector.extract_strided_slice %19 {offsets = [0, 0], sizes = [8, 8], strides = [1, 1]} : vector<8x32xbf16> to vector<8x8xbf16>
    %24 = vector.extract_strided_slice %20 {offsets = [0, 0], sizes = [8, 8], strides = [1, 1]} : vector<8x64xbf16> to vector<8x8xbf16>
    %25 = vector.extract_strided_slice %20 {offsets = [0, 32], sizes = [8, 8], strides = [1, 1]} : vector<8x64xbf16> to vector<8x8xbf16>
    %cst_20 = arith.constant dense<0.000000e+00> : vector<8x8xf32>
    %26 = tpu.matmul %23, %24, %cst_20 {dimension_numbers = #tpu.dot_dimension_numbers<[1], [1], [0], [0], [0, 0, 1, 0], [], []>} : vector<8x8xbf16>, vector<8x8xbf16>, vector<8x8xf32> -> vector<8x8xf32>
    %27 = arith.addf %26, %8 : vector<8x8xf32>
    %cst_21 = arith.constant dense<0xFF800000> : vector<8xf32>
    %28 = vector.multi_reduction <maximumf>, %27, %cst_21 [1] : vector<8x8xf32> to vector<8xf32>
    %29 = vector.shape_cast %28 : vector<8xf32> to vector<8x1xf32>
    %30 = vector.broadcast %29 : vector<8x1xf32> to vector<8x8xf32>
    %31 = arith.subf %27, %30 : vector<8x8xf32>
    %32 = math.exp %31 : vector<8x8xf32>
    %cst_22 = arith.constant dense<0.000000e+00> : vector<8xf32>
    %33 = vector.multi_reduction <add>, %32, %cst_22 [1] : vector<8x8xf32> to vector<8xf32>
    %34 = vector.shape_cast %33 : vector<8xf32> to vector<8x1xf32>
    %35 = tpu.reciprocal %34 {approx = true} : vector<8x1xf32> -> vector<8x1xf32>
    %36 = arith.truncf %32 : vector<8x8xf32> to vector<8x8xbf16>
    %cst_23 = arith.constant dense<0.000000e+00> : vector<8x8xf32>
    %37 = tpu.matmul %36, %25, %cst_23 {dimension_numbers = #tpu.dot_dimension_numbers<[1], [0], [0], [1], [0, 0, 1, 1], [], []>} : vector<8x8xbf16>, vector<8x8xbf16>, vector<8x8xf32> -> vector<8x8xf32>
    %38 = vector.broadcast %35 : vector<8x1xf32> to vector<8x8xf32>
    %39 = arith.mulf %37, %38 : vector<8x8xf32>
    %40 = arith.truncf %39 : vector<8x8xf32> to vector<8x8xbf16>
    %41 = vector.extract_strided_slice %21 {offsets = [0, 0], sizes = [8, 32], strides = [1, 1]} : vector<32x32xbf16> to vector<8x32xbf16>
    %cst_24 = arith.constant dense<0.000000e+00> : vector<8x32xf32>
    %42 = tpu.matmul %40, %41, %cst_24 {dimension_numbers = #tpu.dot_dimension_numbers<[1], [0], [0], [1], [0, 0, 1, 1], [], []>} : vector<8x8xbf16>, vector<8x32xbf16>, vector<8x32xf32> -> vector<8x32xf32>
    %43 = arith.addf %22, %42 : vector<8x32xf32>
    %44 = vector.extract_strided_slice %19 {offsets = [0, 8], sizes = [8, 8], strides = [1, 1]} : vector<8x32xbf16> to vector<8x8xbf16>
    %45 = vector.extract_strided_slice %20 {offsets = [0, 8], sizes = [8, 8], strides = [1, 1]} : vector<8x64xbf16> to vector<8x8xbf16>
    %46 = vector.extract_strided_slice %20 {offsets = [0, 40], sizes = [8, 8], strides = [1, 1]} : vector<8x64xbf16> to vector<8x8xbf16>
    %cst_25 = arith.constant dense<0.000000e+00> : vector<8x8xf32>
    %47 = tpu.matmul %44, %45, %cst_25 {dimension_numbers = #tpu.dot_dimension_numbers<[1], [1], [0], [0], [0, 0, 1, 0], [], []>} : vector<8x8xbf16>, vector<8x8xbf16>, vector<8x8xf32> -> vector<8x8xf32>
    %48 = arith.addf %47, %8 : vector<8x8xf32>
    %cst_26 = arith.constant dense<0xFF800000> : vector<8xf32>
    %49 = vector.multi_reduction <maximumf>, %48, %cst_26 [1] : vector<8x8xf32> to vector<8xf32>
    %50 = vector.shape_cast %49 : vector<8xf32> to vector<8x1xf32>
    %51 = vector.broadcast %50 : vector<8x1xf32> to vector<8x8xf32>
    %52 = arith.subf %48, %51 : vector<8x8xf32>
    %53 = math.exp %52 : vector<8x8xf32>
    %cst_27 = arith.constant dense<0.000000e+00> : vector<8xf32>
    %54 = vector.multi_reduction <add>, %53, %cst_27 [1] : vector<8x8xf32> to vector<8xf32>
    %55 = vector.shape_cast %54 : vector<8xf32> to vector<8x1xf32>
    %56 = tpu.reciprocal %55 {approx = true} : vector<8x1xf32> -> vector<8x1xf32>
    %57 = arith.truncf %53 : vector<8x8xf32> to vector<8x8xbf16>
    %cst_28 = arith.constant dense<0.000000e+00> : vector<8x8xf32>
    %58 = tpu.matmul %57, %46, %cst_28 {dimension_numbers = #tpu.dot_dimension_numbers<[1], [0], [0], [1], [0, 0, 1, 1], [], []>} : vector<8x8xbf16>, vector<8x8xbf16>, vector<8x8xf32> -> vector<8x8xf32>
    %59 = vector.broadcast %56 : vector<8x1xf32> to vector<8x8xf32>
    %60 = arith.mulf %58, %59 : vector<8x8xf32>
    %61 = arith.truncf %60 : vector<8x8xf32> to vector<8x8xbf16>
    %62 = vector.extract_strided_slice %21 {offsets = [8, 0], sizes = [8, 32], strides = [1, 1]} : vector<32x32xbf16> to vector<8x32xbf16>
    %cst_29 = arith.constant dense<0.000000e+00> : vector<8x32xf32>
    %63 = tpu.matmul %61, %62, %cst_29 {dimension_numbers = #tpu.dot_dimension_numbers<[1], [0], [0], [1], [0, 0, 1, 1], [], []>} : vector<8x8xbf16>, vector<8x32xbf16>, vector<8x32xf32> -> vector<8x32xf32>
    %64 = arith.addf %43, %63 : vector<8x32xf32>
    %65 = vector.extract_strided_slice %19 {offsets = [0, 16], sizes = [8, 8], strides = [1, 1]} : vector<8x32xbf16> to vector<8x8xbf16>
    %66 = vector.extract_strided_slice %20 {offsets = [0, 16], sizes = [8, 8], strides = [1, 1]} : vector<8x64xbf16> to vector<8x8xbf16>
    %67 = vector.extract_strided_slice %20 {offsets = [0, 48], sizes = [8, 8], strides = [1, 1]} : vector<8x64xbf16> to vector<8x8xbf16>
    %cst_30 = arith.constant dense<0.000000e+00> : vector<8x8xf32>
    %68 = tpu.matmul %65, %66, %cst_30 {dimension_numbers = #tpu.dot_dimension_numbers<[1], [1], [0], [0], [0, 0, 1, 0], [], []>} : vector<8x8xbf16>, vector<8x8xbf16>, vector<8x8xf32> -> vector<8x8xf32>
    %69 = arith.addf %68, %8 : vector<8x8xf32>
    %cst_31 = arith.constant dense<0xFF800000> : vector<8xf32>
    %70 = vector.multi_reduction <maximumf>, %69, %cst_31 [1] : vector<8x8xf32> to vector<8xf32>
    %71 = vector.shape_cast %70 : vector<8xf32> to vector<8x1xf32>
    %72 = vector.broadcast %71 : vector<8x1xf32> to vector<8x8xf32>
    %73 = arith.subf %69, %72 : vector<8x8xf32>
    %74 = math.exp %73 : vector<8x8xf32>
    %cst_32 = arith.constant dense<0.000000e+00> : vector<8xf32>
    %75 = vector.multi_reduction <add>, %74, %cst_32 [1] : vector<8x8xf32> to vector<8xf32>
    %76 = vector.shape_cast %75 : vector<8xf32> to vector<8x1xf32>
    %77 = tpu.reciprocal %76 {approx = true} : vector<8x1xf32> -> vector<8x1xf32>
    %78 = arith.truncf %74 : vector<8x8xf32> to vector<8x8xbf16>
    %cst_33 = arith.constant dense<0.000000e+00> : vector<8x8xf32>
    %79 = tpu.matmul %78, %67, %cst_33 {dimension_numbers = #tpu.dot_dimension_numbers<[1], [0], [0], [1], [0, 0, 1, 1], [], []>} : vector<8x8xbf16>, vector<8x8xbf16>, vector<8x8xf32> -> vector<8x8xf32>
    %80 = vector.broadcast %77 : vector<8x1xf32> to vector<8x8xf32>
    %81 = arith.mulf %79, %80 : vector<8x8xf32>
    %82 = arith.truncf %81 : vector<8x8xf32> to vector<8x8xbf16>
    %83 = vector.extract_strided_slice %21 {offsets = [16, 0], sizes = [8, 32], strides = [1, 1]} : vector<32x32xbf16> to vector<8x32xbf16>
    %cst_34 = arith.constant dense<0.000000e+00> : vector<8x32xf32>
    %84 = tpu.matmul %82, %83, %cst_34 {dimension_numbers = #tpu.dot_dimension_numbers<[1], [0], [0], [1], [0, 0, 1, 1], [], []>} : vector<8x8xbf16>, vector<8x32xbf16>, vector<8x32xf32> -> vector<8x32xf32>
    %85 = arith.addf %64, %84 : vector<8x32xf32>
    %86 = vector.extract_strided_slice %19 {offsets = [0, 24], sizes = [8, 8], strides = [1, 1]} : vector<8x32xbf16> to vector<8x8xbf16>
    %87 = vector.extract_strided_slice %20 {offsets = [0, 24], sizes = [8, 8], strides = [1, 1]} : vector<8x64xbf16> to vector<8x8xbf16>
    %88 = vector.extract_strided_slice %20 {offsets = [0, 56], sizes = [8, 8], strides = [1, 1]} : vector<8x64xbf16> to vector<8x8xbf16>
    %cst_35 = arith.constant dense<0.000000e+00> : vector<8x8xf32>
    %89 = tpu.matmul %86, %87, %cst_35 {dimension_numbers = #tpu.dot_dimension_numbers<[1], [1], [0], [0], [0, 0, 1, 0], [], []>} : vector<8x8xbf16>, vector<8x8xbf16>, vector<8x8xf32> -> vector<8x8xf32>
    %90 = arith.addf %89, %8 : vector<8x8xf32>
    %cst_36 = arith.constant dense<0xFF800000> : vector<8xf32>
    %91 = vector.multi_reduction <maximumf>, %90, %cst_36 [1] : vector<8x8xf32> to vector<8xf32>
    %92 = vector.shape_cast %91 : vector<8xf32> to vector<8x1xf32>
    %93 = vector.broadcast %92 : vector<8x1xf32> to vector<8x8xf32>
    %94 = arith.subf %90, %93 : vector<8x8xf32>
    %95 = math.exp %94 : vector<8x8xf32>
    %cst_37 = arith.constant dense<0.000000e+00> : vector<8xf32>
    %96 = vector.multi_reduction <add>, %95, %cst_37 [1] : vector<8x8xf32> to vector<8xf32>
    %97 = vector.shape_cast %96 : vector<8xf32> to vector<8x1xf32>
    %98 = tpu.reciprocal %97 {approx = true} : vector<8x1xf32> -> vector<8x1xf32>
    %99 = arith.truncf %95 : vector<8x8xf32> to vector<8x8xbf16>
    %cst_38 = arith.constant dense<0.000000e+00> : vector<8x8xf32>
    %100 = tpu.matmul %99, %88, %cst_38 {dimension_numbers = #tpu.dot_dimension_numbers<[1], [0], [0], [1], [0, 0, 1, 1], [], []>} : vector<8x8xbf16>, vector<8x8xbf16>, vector<8x8xf32> -> vector<8x8xf32>
    %101 = vector.broadcast %98 : vector<8x1xf32> to vector<8x8xf32>
    %102 = arith.mulf %100, %101 : vector<8x8xf32>
    %103 = arith.truncf %102 : vector<8x8xf32> to vector<8x8xbf16>
    %104 = vector.extract_strided_slice %21 {offsets = [24, 0], sizes = [8, 32], strides = [1, 1]} : vector<32x32xbf16> to vector<8x32xbf16>
    %cst_39 = arith.constant dense<0.000000e+00> : vector<8x32xf32>
    %105 = tpu.matmul %103, %104, %cst_39 {dimension_numbers = #tpu.dot_dimension_numbers<[1], [0], [0], [1], [0, 0, 1, 1], [], []>} : vector<8x8xbf16>, vector<8x32xbf16>, vector<8x32xf32> -> vector<8x32xf32>
    %106 = arith.addf %85, %105 : vector<8x32xf32>
    %c0_40 = arith.constant 0 : index
    %c0_41 = arith.constant 0 : index
    %107 = vector.load %arg10[%c0_40, %c0_41] : memref<1x32xf32, #tpu.memory_space<vmem>>, vector<1x32xf32>
    %108 = vector.broadcast %107 : vector<1x32xf32> to vector<8x32xf32>
    %109 = arith.addf %106, %108 : vector<8x32xf32>
    %110 = arith.addf %1, %109 : vector<8x32xf32>
    %cst_42 = arith.constant dense<0.000000e+00> : vector<8xf32>
    %111 = vector.multi_reduction <add>, %110, %cst_42 [1] : vector<8x32xf32> to vector<8xf32>
    %112 = vector.shape_cast %111 : vector<8xf32> to vector<8x1xf32>
    %cst_43 = arith.constant 3.200000e+01 : f32
    %113 = vector.broadcast %cst_43 : f32 to vector<8x1xf32>
    %114 = arith.divf %112, %113 : vector<8x1xf32>
    %115 = vector.broadcast %114 : vector<8x1xf32> to vector<8x32xf32>
    %116 = arith.subf %110, %115 : vector<8x32xf32>
    %117 = arith.mulf %116, %116 : vector<8x32xf32>
    %cst_44 = arith.constant dense<0.000000e+00> : vector<8xf32>
    %118 = vector.multi_reduction <add>, %117, %cst_44 [1] : vector<8x32xf32> to vector<8xf32>
    %119 = vector.shape_cast %118 : vector<8xf32> to vector<8x1xf32>
    %cst_45 = arith.constant 3.200000e+01 : f32
    %120 = vector.broadcast %cst_45 : f32 to vector<8x1xf32>
    %121 = arith.divf %119, %120 : vector<8x1xf32>
    %c0_46 = arith.constant 0 : index
    %c0_47 = arith.constant 0 : index
    %122 = vector.load %arg11[%c0_46, %c0_47] : memref<1x32xf32, #tpu.memory_space<vmem>>, vector<1x32xf32>
    %123 = vector.broadcast %114 : vector<8x1xf32> to vector<8x32xf32>
    %124 = arith.subf %110, %123 : vector<8x32xf32>
    %125 = vector.broadcast %122 : vector<1x32xf32> to vector<8x32xf32>
    %126 = arith.mulf %125, %124 : vector<8x32xf32>
    %cst_48 = arith.constant 9.99999997E-7 : f32
    %127 = vector.broadcast %cst_48 : f32 to vector<8x1xf32>
    %128 = arith.addf %121, %127 : vector<8x1xf32>
    %129 = math.rsqrt %128 : vector<8x1xf32>
    %130 = vector.broadcast %129 : vector<8x1xf32> to vector<8x32xf32>
    %131 = arith.mulf %126, %130 : vector<8x32xf32>
    %c0_49 = arith.constant 0 : index
    %c0_50 = arith.constant 0 : index
    %132 = vector.load %arg12[%c0_49, %c0_50] : memref<1x32xf32, #tpu.memory_space<vmem>>, vector<1x32xf32>
    %133 = vector.broadcast %132 : vector<1x32xf32> to vector<8x32xf32>
    %134 = arith.addf %131, %133 : vector<8x32xf32>
    %c0_51 = arith.constant 0 : index
    %c0_52 = arith.constant 0 : index
    %c0_53 = arith.constant 0 : index
    %135 = vector.load %arg13[%c0_51, %c0_52, %c0_53] : memref<1x8x32xf32, #tpu.memory_space<vmem>>, vector<1x8x32xf32>
    %136 = vector.shape_cast %135 : vector<1x8x32xf32> to vector<8x32xf32>
    %137 = vector.shape_cast %134 : vector<8x32xf32> to vector<1x8x32xf32>
    tpu.vector_store %arg13[%c0_51, %c0_52, %c0_53], %137 {strides = array<i32>} : memref<1x8x32xf32, #tpu.memory_space<vmem>>, vector<1x8x32xf32>,
    return
  }
  func.func @transform_0(%arg0: i32, %arg1: i32) -> (i32, i32, i32) {
    %c0_i32 = arith.constant 0 : i32
    %c0_i32_0 = arith.constant 0 : i32
    return %arg0, %arg1, %c0_i32 : i32, i32, i32
  }
  func.func @transform_1(%arg0: i32, %arg1: i32) -> (i32, i32, i32) {
    %c0_i32 = arith.constant 0 : i32
    %c0_i32_0 = arith.constant 0 : i32
    %c0_i32_1 = arith.constant 0 : i32
    return %arg0, %c0_i32, %c0_i32_0 : i32, i32, i32
  }
  func.func @transform_2(%arg0: i32, %arg1: i32) -> (i32, i32, i32) {
    %c0_i32 = arith.constant 0 : i32
    %c0_i32_0 = arith.constant 0 : i32
    return %arg0, %arg1, %c0_i32 : i32, i32, i32
  }
  func.func @transform_3(%arg0: i32, %arg1: i32) -> (i32, i32) {
    %c0_i32 = arith.constant 0 : i32
    %c0_i32_0 = arith.constant 0 : i32
    %c0_i32_1 = arith.constant 0 : i32
    return %c0_i32, %c0_i32_0 : i32, i32
  }
  func.func @transform_4(%arg0: i32, %arg1: i32) -> (i32, i32) {
    %c0_i32 = arith.constant 0 : i32
    %c0_i32_0 = arith.constant 0 : i32
    %c0_i32_1 = arith.constant 0 : i32
    return %c0_i32, %c0_i32_0 : i32, i32
  }
  func.func @transform_5(%arg0: i32, %arg1: i32) -> (i32, i32) {
    %c0_i32 = arith.constant 0 : i32
    %c0_i32_0 = arith.constant 0 : i32
    %c0_i32_1 = arith.constant 0 : i32
    return %c0_i32, %c0_i32_0 : i32, i32
  }
  func.func @transform_6(%arg0: i32, %arg1: i32) -> (i32, i32) {
    %c0_i32 = arith.constant 0 : i32
    %c0_i32_0 = arith.constant 0 : i32
    %c0_i32_1 = arith.constant 0 : i32
    return %c0_i32, %c0_i32_0 : i32, i32
  }
  func.func @transform_7(%arg0: i32, %arg1: i32) -> (i32, i32) {
    %c0_i32 = arith.constant 0 : i32
    %c0_i32_0 = arith.constant 0 : i32
    %c0_i32_1 = arith.constant 0 : i32
    return %c0_i32, %c0_i32_0 : i32, i32
  }
  func.func @transform_8(%arg0: i32, %arg1: i32) -> (i32, i32) {
    %c0_i32 = arith.constant 0 : i32
    %c0_i32_0 = arith.constant 0 : i32
    %c0_i32_1 = arith.constant 0 : i32
    return %c0_i32, %c0_i32_0 : i32, i32
  }
  func.func @transform_9(%arg0: i32, %arg1: i32) -> (i32, i32) {
    %c0_i32 = arith.constant 0 : i32
    %c0_i32_0 = arith.constant 0 : i32
    %c0_i32_1 = arith.constant 0 : i32
    return %c0_i32, %c0_i32_0 : i32, i32
  }
  func.func @transform_10(%arg0: i32, %arg1: i32) -> (i32, i32) {
    %c0_i32 = arith.constant 0 : i32
    %c0_i32_0 = arith.constant 0 : i32
    %c0_i32_1 = arith.constant 0 : i32
    return %c0_i32, %c0_i32_0 : i32, i32
  }
  func.func @transform_11(%arg0: i32, %arg1: i32) -> (i32, i32, i32) {
    %c0_i32 = arith.constant 0 : i32
    %c0_i32_0 = arith.constant 0 : i32
    return %arg0, %arg1, %c0_i32 : i32, i32, i32
  }
}

module attributes {stable_mosaic.version = 11 : i64} {
  func.func @_attn_block_kernel(%arg0: i32, %arg1: i32, %arg2: memref<1x8x32xf32, #tpu.memory_space<vmem>>, %arg3: memref<1x10x32xf32, #tpu.memory_space<vmem>>, %arg4: memref<1x8x10xbf16, #tpu.memory_space<vmem>>, %arg5: memref<32x32xbf16, #tpu.memory_space<vmem>>, %arg6: memref<1x32xf32, #tpu.memory_space<vmem>>, %arg7: memref<32x64xbf16, #tpu.memory_space<vmem>>, %arg8: memref<1x64xf32, #tpu.memory_space<vmem>>, %arg9: memref<32x32xbf16, #tpu.memory_space<vmem>>, %arg10: memref<1x32xf32, #tpu.memory_space<vmem>>, %arg11: memref<1x32xf32, #tpu.memory_space<vmem>>, %arg12: memref<1x32xf32, #tpu.memory_space<vmem>>, %arg13: memref<1x8x32xf32, #tpu.memory_space<vmem>>) attributes {dimension_semantics = [#tpu.dimension_semantics<parallel>, #tpu.dimension_semantics<parallel>], iteration_bounds = array<i64: 2, 1>, scalar_prefetch = 0 : i64, scratch_operands = 0 : i64, tpu.core_type = #tpu.core_type<tc>, window_params = [{transform_indices = @transform_0, window_bounds = array<i64: 1, 8, 32>}, {transform_indices = @transform_1, window_bounds = array<i64: 1, 10, 32>}, {transform_indices = @transform_2, window_bounds = array<i64: 1, 8, 10>}, {pipeline_mode = #tpu.pipeline_mode<synchronous>, transform_indices = @transform_3, window_bounds = array<i64: 32, 32>}, {pipeline_mode = #tpu.pipeline_mode<synchronous>, transform_indices = @transform_4, window_bounds = array<i64: 1, 32>}, {pipeline_mode = #tpu.pipeline_mode<synchronous>, transform_indices = @transform_5, window_bounds = array<i64: 32, 64>}, {pipeline_mode = #tpu.pipeline_mode<synchronous>, transform_indices = @transform_6, window_bounds = array<i64: 1, 64>}, {pipeline_mode = #tpu.pipeline_mode<synchronous>, transform_indices = @transform_7, window_bounds = array<i64: 32, 32>}, {pipeline_mode = #tpu.pipeline_mode<synchronous>, transform_indices = @transform_8, window_bounds = array<i64: 1, 32>}, {pipeline_mode = #tpu.pipeline_mode<synchronous>, transform_indices = @transform_9, window_bounds = array<i64: 1, 32>}, {pipeline_mode = #tpu.pipeline_mode<synchronous>, transform_indices = @transform_10, window_bounds = array<i64: 1, 32>}, {transform_indices = @transform_11, window_bounds = array<i64: 1, 8, 32>}]} {
    %c0 = arith.constant 0 : index
    %c0_0 = arith.constant 0 : index
    %c0_1 = arith.constant 0 : index
    %0 = vector.load %arg2[%c0, %c0_0, %c0_1] : memref<1x8x32xf32, #tpu.memory_space<vmem>>, vector<1x8x32xf32>
    %1 = vector.shape_cast %0 : vector<1x8x32xf32> to vector<8x32xf32>
    %2 = arith.truncf %1 : vector<8x32xf32> to vector<8x32xbf16>
    %c0_2 = arith.constant 0 : index
    %c0_3 = arith.constant 0 : index
    %c0_4 = arith.constant 0 : index
    %3 = vector.load %arg3[%c0_2, %c0_3, %c0_4] : memref<1x10x32xf32, #tpu.memory_space<vmem>>, vector<1x10x32xf32>
    %4 = vector.shape_cast %3 : vector<1x10x32xf32> to vector<10x32xf32>
    %5 = arith.truncf %4 : vector<10x32xf32> to vector<10x32xbf16>
    %c0_5 = arith.constant 0 : index
    %c0_6 = arith.constant 0 : index
    %c0_7 = arith.constant 0 : index
    %6 = vector.load %arg4[%c0_5, %c0_6, %c0_7] : memref<1x8x10xbf16, #tpu.memory_space<vmem>>, vector<1x8x10xbf16>
    %7 = vector.shape_cast %6 : vector<1x8x10xbf16> to vector<8x10xbf16>
    %8 = arith.extf %7 : vector<8x10xbf16> to vector<8x10xf32>
    %c0_8 = arith.constant 0 : index
    %c0_9 = arith.constant 0 : index
    %9 = vector.load %arg5[%c0_8, %c0_9] : memref<32x32xbf16, #tpu.memory_space<vmem>>, vector<32x32xbf16>
    %cst = arith.constant dense<0.000000e+00> : vector<8x32xf32>
    %10 = tpu.matmul %2, %9, %cst {dimension_numbers = #tpu.dot_dimension_numbers<[1], [0], [0], [1], [0, 0, 1, 1], [], []>} : vector<8x32xbf16>, vector<32x32xbf16>, vector<8x32xf32> -> vector<8x32xf32>
    %c0_10 = arith.constant 0 : index
    %c0_11 = arith.constant 0 : index
    %11 = vector.load %arg6[%c0_10, %c0_11] : memref<1x32xf32, #tpu.memory_space<vmem>>, vector<1x32xf32>
    %12 = vector.broadcast %11 : vector<1x32xf32> to vector<8x32xf32>
    %13 = arith.addf %10, %12 : vector<8x32xf32>
    %c0_12 = arith.constant 0 : index
    %c0_13 = arith.constant 0 : index
    %14 = vector.load %arg7[%c0_12, %c0_13] : memref<32x64xbf16, #tpu.memory_space<vmem>>, vector<32x64xbf16>
    %cst_14 = arith.constant dense<0.000000e+00> : vector<10x64xf32>
    %15 = tpu.matmul %5, %14, %cst_14 {dimension_numbers = #tpu.dot_dimension_numbers<[1], [0], [0], [1], [0, 0, 1, 1], [], []>} : vector<10x32xbf16>, vector<32x64xbf16>, vector<10x64xf32> -> vector<10x64xf32>
    %c0_15 = arith.constant 0 : index
    %c0_16 = arith.constant 0 : index
    %16 = vector.load %arg8[%c0_15, %c0_16] : memref<1x64xf32, #tpu.memory_space<vmem>>, vector<1x64xf32>
    %17 = vector.broadcast %16 : vector<1x64xf32> to vector<10x64xf32>
    %18 = arith.addf %15, %17 : vector<10x64xf32>
    %19 = arith.truncf %13 : vector<8x32xf32> to vector<8x32xbf16>
    %20 = arith.truncf %18 : vector<10x64xf32> to vector<10x64xbf16>
    %c0_17 = arith.constant 0 : index
    %c0_18 = arith.constant 0 : index
    %21 = vector.load %arg9[%c0_17, %c0_18] : memref<32x32xbf16, #tpu.memory_space<vmem>>, vector<32x32xbf16>
    %cst_19 = arith.constant 0.000000e+00 : f32
    %22 = vector.broadcast %cst_19 : f32 to vector<8x32xf32>
    %23 = vector.extract_strided_slice %19 {offsets = [0, 0], sizes = [8, 8], strides = [1, 1]} : vector<8x32xbf16> to vector<8x8xbf16>
    %24 = vector.extract_strided_slice %20 {offsets = [0, 0], sizes = [10, 8], strides = [1, 1]} : vector<10x64xbf16> to vector<10x8xbf16>
    %25 = vector.extract_strided_slice %20 {offsets = [0, 32], sizes = [10, 8], strides = [1, 1]} : vector<10x64xbf16> to vector<10x8xbf16>
    %cst_20 = arith.constant dense<0.000000e+00> : vector<8x10xf32>
    %26 = tpu.matmul %23, %24, %cst_20 {dimension_numbers = #tpu.dot_dimension_numbers<[1], [1], [0], [0], [0, 0, 1, 0], [], []>} : vector<8x8xbf16>, vector<10x8xbf16>, vector<8x10xf32> -> vector<8x10xf32>
    %27 = arith.addf %26, %8 : vector<8x10xf32>
    %cst_21 = arith.constant dense<0xFF800000> : vector<8xf32>
    %28 = vector.multi_reduction <maximumf>, %27, %cst_21 [1] : vector<8x10xf32> to vector<8xf32>
    %29 = vector.shape_cast %28 : vector<8xf32> to vector<8x1xf32>
    %30 = vector.broadcast %29 : vector<8x1xf32> to vector<8x10xf32>
    %31 = arith.subf %27, %30 : vector<8x10xf32>
    %32 = math.exp %31 : vector<8x10xf32>
    %cst_22 = arith.constant dense<0.000000e+00> : vector<8xf32>
    %33 = vector.multi_reduction <add>, %32, %cst_22 [1] : vector<8x10xf32> to vector<8xf32>
    %34 = vector.shape_cast %33 : vector<8xf32> to vector<8x1xf32>
    %35 = tpu.reciprocal %34 {approx = true} : vector<8x1xf32> -> vector<8x1xf32>
    %36 = arith.truncf %32 : vector<8x10xf32> to vector<8x10xbf16>
    %cst_23 = arith.constant dense<0.000000e+00> : vector<8x8xf32>
    %37 = tpu.matmul %36, %25, %cst_23 {dimension_numbers = #tpu.dot_dimension_numbers<[1], [0], [0], [1], [0, 0, 1, 1], [], []>} : vector<8x10xbf16>, vector<10x8xbf16>, vector<8x8xf32> -> vector<8x8xf32>
    %38 = vector.broadcast %35 : vector<8x1xf32> to vector<8x8xf32>
    %39 = arith.mulf %37, %38 : vector<8x8xf32>
    %40 = arith.truncf %39 : vector<8x8xf32> to vector<8x8xbf16>
    %41 = vector.extract_strided_slice %21 {offsets = [0, 0], sizes = [8, 32], strides = [1, 1]} : vector<32x32xbf16> to vector<8x32xbf16>
    %cst_24 = arith.constant dense<0.000000e+00> : vector<8x32xf32>
    %42 = tpu.matmul %40, %41, %cst_24 {dimension_numbers = #tpu.dot_dimension_numbers<[1], [0], [0], [1], [0, 0, 1, 1], [], []>} : vector<8x8xbf16>, vector<8x32xbf16>, vector<8x32xf32> -> vector<8x32xf32>
    %43 = arith.addf %22, %42 : vector<8x32xf32>
    %44 = vector.extract_strided_slice %19 {offsets = [0, 8], sizes = [8, 8], strides = [1, 1]} : vector<8x32xbf16> to vector<8x8xbf16>
    %45 = vector.extract_strided_slice %20 {offsets = [0, 8], sizes = [10, 8], strides = [1, 1]} : vector<10x64xbf16> to vector<10x8xbf16>
    %46 = vector.extract_strided_slice %20 {offsets = [0, 40], sizes = [10, 8], strides = [1, 1]} : vector<10x64xbf16> to vector<10x8xbf16>
    %cst_25 = arith.constant dense<0.000000e+00> : vector<8x10xf32>
    %47 = tpu.matmul %44, %45, %cst_25 {dimension_numbers = #tpu.dot_dimension_numbers<[1], [1], [0], [0], [0, 0, 1, 0], [], []>} : vector<8x8xbf16>, vector<10x8xbf16>, vector<8x10xf32> -> vector<8x10xf32>
    %48 = arith.addf %47, %8 : vector<8x10xf32>
    %cst_26 = arith.constant dense<0xFF800000> : vector<8xf32>
    %49 = vector.multi_reduction <maximumf>, %48, %cst_26 [1] : vector<8x10xf32> to vector<8xf32>
    %50 = vector.shape_cast %49 : vector<8xf32> to vector<8x1xf32>
    %51 = vector.broadcast %50 : vector<8x1xf32> to vector<8x10xf32>
    %52 = arith.subf %48, %51 : vector<8x10xf32>
    %53 = math.exp %52 : vector<8x10xf32>
    %cst_27 = arith.constant dense<0.000000e+00> : vector<8xf32>
    %54 = vector.multi_reduction <add>, %53, %cst_27 [1] : vector<8x10xf32> to vector<8xf32>
    %55 = vector.shape_cast %54 : vector<8xf32> to vector<8x1xf32>
    %56 = tpu.reciprocal %55 {approx = true} : vector<8x1xf32> -> vector<8x1xf32>
    %57 = arith.truncf %53 : vector<8x10xf32> to vector<8x10xbf16>
    %cst_28 = arith.constant dense<0.000000e+00> : vector<8x8xf32>
    %58 = tpu.matmul %57, %46, %cst_28 {dimension_numbers = #tpu.dot_dimension_numbers<[1], [0], [0], [1], [0, 0, 1, 1], [], []>} : vector<8x10xbf16>, vector<10x8xbf16>, vector<8x8xf32> -> vector<8x8xf32>
    %59 = vector.broadcast %56 : vector<8x1xf32> to vector<8x8xf32>
    %60 = arith.mulf %58, %59 : vector<8x8xf32>
    %61 = arith.truncf %60 : vector<8x8xf32> to vector<8x8xbf16>
    %62 = vector.extract_strided_slice %21 {offsets = [8, 0], sizes = [8, 32], strides = [1, 1]} : vector<32x32xbf16> to vector<8x32xbf16>
    %cst_29 = arith.constant dense<0.000000e+00> : vector<8x32xf32>
    %63 = tpu.matmul %61, %62, %cst_29 {dimension_numbers = #tpu.dot_dimension_numbers<[1], [0], [0], [1], [0, 0, 1, 1], [], []>} : vector<8x8xbf16>, vector<8x32xbf16>, vector<8x32xf32> -> vector<8x32xf32>
    %64 = arith.addf %43, %63 : vector<8x32xf32>
    %65 = vector.extract_strided_slice %19 {offsets = [0, 16], sizes = [8, 8], strides = [1, 1]} : vector<8x32xbf16> to vector<8x8xbf16>
    %66 = vector.extract_strided_slice %20 {offsets = [0, 16], sizes = [10, 8], strides = [1, 1]} : vector<10x64xbf16> to vector<10x8xbf16>
    %67 = vector.extract_strided_slice %20 {offsets = [0, 48], sizes = [10, 8], strides = [1, 1]} : vector<10x64xbf16> to vector<10x8xbf16>
    %cst_30 = arith.constant dense<0.000000e+00> : vector<8x10xf32>
    %68 = tpu.matmul %65, %66, %cst_30 {dimension_numbers = #tpu.dot_dimension_numbers<[1], [1], [0], [0], [0, 0, 1, 0], [], []>} : vector<8x8xbf16>, vector<10x8xbf16>, vector<8x10xf32> -> vector<8x10xf32>
    %69 = arith.addf %68, %8 : vector<8x10xf32>
    %cst_31 = arith.constant dense<0xFF800000> : vector<8xf32>
    %70 = vector.multi_reduction <maximumf>, %69, %cst_31 [1] : vector<8x10xf32> to vector<8xf32>
    %71 = vector.shape_cast %70 : vector<8xf32> to vector<8x1xf32>
    %72 = vector.broadcast %71 : vector<8x1xf32> to vector<8x10xf32>
    %73 = arith.subf %69, %72 : vector<8x10xf32>
    %74 = math.exp %73 : vector<8x10xf32>
    %cst_32 = arith.constant dense<0.000000e+00> : vector<8xf32>
    %75 = vector.multi_reduction <add>, %74, %cst_32 [1] : vector<8x10xf32> to vector<8xf32>
    %76 = vector.shape_cast %75 : vector<8xf32> to vector<8x1xf32>
    %77 = tpu.reciprocal %76 {approx = true} : vector<8x1xf32> -> vector<8x1xf32>
    %78 = arith.truncf %74 : vector<8x10xf32> to vector<8x10xbf16>
    %cst_33 = arith.constant dense<0.000000e+00> : vector<8x8xf32>
    %79 = tpu.matmul %78, %67, %cst_33 {dimension_numbers = #tpu.dot_dimension_numbers<[1], [0], [0], [1], [0, 0, 1, 1], [], []>} : vector<8x10xbf16>, vector<10x8xbf16>, vector<8x8xf32> -> vector<8x8xf32>
    %80 = vector.broadcast %77 : vector<8x1xf32> to vector<8x8xf32>
    %81 = arith.mulf %79, %80 : vector<8x8xf32>
    %82 = arith.truncf %81 : vector<8x8xf32> to vector<8x8xbf16>
    %83 = vector.extract_strided_slice %21 {offsets = [16, 0], sizes = [8, 32], strides = [1, 1]} : vector<32x32xbf16> to vector<8x32xbf16>
    %cst_34 = arith.constant dense<0.000000e+00> : vector<8x32xf32>
    %84 = tpu.matmul %82, %83, %cst_34 {dimension_numbers = #tpu.dot_dimension_numbers<[1], [0], [0], [1], [0, 0, 1, 1], [], []>} : vector<8x8xbf16>, vector<8x32xbf16>, vector<8x32xf32> -> vector<8x32xf32>
    %85 = arith.addf %64, %84 : vector<8x32xf32>
    %86 = vector.extract_strided_slice %19 {offsets = [0, 24], sizes = [8, 8], strides = [1, 1]} : vector<8x32xbf16> to vector<8x8xbf16>
    %87 = vector.extract_strided_slice %20 {offsets = [0, 24], sizes = [10, 8], strides = [1, 1]} : vector<10x64xbf16> to vector<10x8xbf16>
    %88 = vector.extract_strided_slice %20 {offsets = [0, 56], sizes = [10, 8], strides = [1, 1]} : vector<10x64xbf16> to vector<10x8xbf16>
    %cst_35 = arith.constant dense<0.000000e+00> : vector<8x10xf32>
    %89 = tpu.matmul %86, %87, %cst_35 {dimension_numbers = #tpu.dot_dimension_numbers<[1], [1], [0], [0], [0, 0, 1, 0], [], []>} : vector<8x8xbf16>, vector<10x8xbf16>, vector<8x10xf32> -> vector<8x10xf32>
    %90 = arith.addf %89, %8 : vector<8x10xf32>
    %cst_36 = arith.constant dense<0xFF800000> : vector<8xf32>
    %91 = vector.multi_reduction <maximumf>, %90, %cst_36 [1] : vector<8x10xf32> to vector<8xf32>
    %92 = vector.shape_cast %91 : vector<8xf32> to vector<8x1xf32>
    %93 = vector.broadcast %92 : vector<8x1xf32> to vector<8x10xf32>
    %94 = arith.subf %90, %93 : vector<8x10xf32>
    %95 = math.exp %94 : vector<8x10xf32>
    %cst_37 = arith.constant dense<0.000000e+00> : vector<8xf32>
    %96 = vector.multi_reduction <add>, %95, %cst_37 [1] : vector<8x10xf32> to vector<8xf32>
    %97 = vector.shape_cast %96 : vector<8xf32> to vector<8x1xf32>
    %98 = tpu.reciprocal %97 {approx = true} : vector<8x1xf32> -> vector<8x1xf32>
    %99 = arith.truncf %95 : vector<8x10xf32> to vector<8x10xbf16>
    %cst_38 = arith.constant dense<0.000000e+00> : vector<8x8xf32>
    %100 = tpu.matmul %99, %88, %cst_38 {dimension_numbers = #tpu.dot_dimension_numbers<[1], [0], [0], [1], [0, 0, 1, 1], [], []>} : vector<8x10xbf16>, vector<10x8xbf16>, vector<8x8xf32> -> vector<8x8xf32>
    %101 = vector.broadcast %98 : vector<8x1xf32> to vector<8x8xf32>
    %102 = arith.mulf %100, %101 : vector<8x8xf32>
    %103 = arith.truncf %102 : vector<8x8xf32> to vector<8x8xbf16>
    %104 = vector.extract_strided_slice %21 {offsets = [24, 0], sizes = [8, 32], strides = [1, 1]} : vector<32x32xbf16> to vector<8x32xbf16>
    %cst_39 = arith.constant dense<0.000000e+00> : vector<8x32xf32>
    %105 = tpu.matmul %103, %104, %cst_39 {dimension_numbers = #tpu.dot_dimension_numbers<[1], [0], [0], [1], [0, 0, 1, 1], [], []>} : vector<8x8xbf16>, vector<8x32xbf16>, vector<8x32xf32> -> vector<8x32xf32>
    %106 = arith.addf %85, %105 : vector<8x32xf32>
    %c0_40 = arith.constant 0 : index
    %c0_41 = arith.constant 0 : index
    %107 = vector.load %arg10[%c0_40, %c0_41] : memref<1x32xf32, #tpu.memory_space<vmem>>, vector<1x32xf32>
    %108 = vector.broadcast %107 : vector<1x32xf32> to vector<8x32xf32>
    %109 = arith.addf %106, %108 : vector<8x32xf32>
    %110 = arith.addf %1, %109 : vector<8x32xf32>
    %cst_42 = arith.constant dense<0.000000e+00> : vector<8xf32>
    %111 = vector.multi_reduction <add>, %110, %cst_42 [1] : vector<8x32xf32> to vector<8xf32>
    %112 = vector.shape_cast %111 : vector<8xf32> to vector<8x1xf32>
    %cst_43 = arith.constant 3.200000e+01 : f32
    %113 = vector.broadcast %cst_43 : f32 to vector<8x1xf32>
    %114 = arith.divf %112, %113 : vector<8x1xf32>
    %115 = vector.broadcast %114 : vector<8x1xf32> to vector<8x32xf32>
    %116 = arith.subf %110, %115 : vector<8x32xf32>
    %117 = arith.mulf %116, %116 : vector<8x32xf32>
    %cst_44 = arith.constant dense<0.000000e+00> : vector<8xf32>
    %118 = vector.multi_reduction <add>, %117, %cst_44 [1] : vector<8x32xf32> to vector<8xf32>
    %119 = vector.shape_cast %118 : vector<8xf32> to vector<8x1xf32>
    %cst_45 = arith.constant 3.200000e+01 : f32
    %120 = vector.broadcast %cst_45 : f32 to vector<8x1xf32>
    %121 = arith.divf %119, %120 : vector<8x1xf32>
    %c0_46 = arith.constant 0 : index
    %c0_47 = arith.constant 0 : index
    %122 = vector.load %arg11[%c0_46, %c0_47] : memref<1x32xf32, #tpu.memory_space<vmem>>, vector<1x32xf32>
    %123 = vector.broadcast %114 : vector<8x1xf32> to vector<8x32xf32>
    %124 = arith.subf %110, %123 : vector<8x32xf32>
    %125 = vector.broadcast %122 : vector<1x32xf32> to vector<8x32xf32>
    %126 = arith.mulf %125, %124 : vector<8x32xf32>
    %cst_48 = arith.constant 9.99999997E-7 : f32
    %127 = vector.broadcast %cst_48 : f32 to vector<8x1xf32>
    %128 = arith.addf %121, %127 : vector<8x1xf32>
    %129 = math.rsqrt %128 : vector<8x1xf32>
    %130 = vector.broadcast %129 : vector<8x1xf32> to vector<8x32xf32>
    %131 = arith.mulf %126, %130 : vector<8x32xf32>
    %c0_49 = arith.constant 0 : index
    %c0_50 = arith.constant 0 : index
    %132 = vector.load %arg12[%c0_49, %c0_50] : memref<1x32xf32, #tpu.memory_space<vmem>>, vector<1x32xf32>
    %133 = vector.broadcast %132 : vector<1x32xf32> to vector<8x32xf32>
    %134 = arith.addf %131, %133 : vector<8x32xf32>
    %c0_51 = arith.constant 0 : index
    %c0_52 = arith.constant 0 : index
    %c0_53 = arith.constant 0 : index
    %135 = vector.load %arg13[%c0_51, %c0_52, %c0_53] : memref<1x8x32xf32, #tpu.memory_space<vmem>>, vector<1x8x32xf32>
    %136 = vector.shape_cast %135 : vector<1x8x32xf32> to vector<8x32xf32>
    %137 = vector.shape_cast %134 : vector<8x32xf32> to vector<1x8x32xf32>
    tpu.vector_store %arg13[%c0_51, %c0_52, %c0_53], %137 {strides = array<i32>} : memref<1x8x32xf32, #tpu.memory_space<vmem>>, vector<1x8x32xf32>,
    return
  }
  func.func @transform_0(%arg0: i32, %arg1: i32) -> (i32, i32, i32) {
    %c0_i32 = arith.constant 0 : i32
    %c0_i32_0 = arith.constant 0 : i32
    return %arg0, %arg1, %c0_i32 : i32, i32, i32
  }
  func.func @transform_1(%arg0: i32, %arg1: i32) -> (i32, i32, i32) {
    %c0_i32 = arith.constant 0 : i32
    %c0_i32_0 = arith.constant 0 : i32
    %c0_i32_1 = arith.constant 0 : i32
    return %arg0, %c0_i32, %c0_i32_0 : i32, i32, i32
  }
  func.func @transform_2(%arg0: i32, %arg1: i32) -> (i32, i32, i32) {
    %c0_i32 = arith.constant 0 : i32
    %c0_i32_0 = arith.constant 0 : i32
    return %arg0, %arg1, %c0_i32 : i32, i32, i32
  }
  func.func @transform_3(%arg0: i32, %arg1: i32) -> (i32, i32) {
    %c0_i32 = arith.constant 0 : i32
    %c0_i32_0 = arith.constant 0 : i32
    %c0_i32_1 = arith.constant 0 : i32
    return %c0_i32, %c0_i32_0 : i32, i32
  }
  func.func @transform_4(%arg0: i32, %arg1: i32) -> (i32, i32) {
    %c0_i32 = arith.constant 0 : i32
    %c0_i32_0 = arith.constant 0 : i32
    %c0_i32_1 = arith.constant 0 : i32
    return %c0_i32, %c0_i32_0 : i32, i32
  }
  func.func @transform_5(%arg0: i32, %arg1: i32) -> (i32, i32) {
    %c0_i32 = arith.constant 0 : i32
    %c0_i32_0 = arith.constant 0 : i32
    %c0_i32_1 = arith.constant 0 : i32
    return %c0_i32, %c0_i32_0 : i32, i32
  }
  func.func @transform_6(%arg0: i32, %arg1: i32) -> (i32, i32) {
    %c0_i32 = arith.constant 0 : i32
    %c0_i32_0 = arith.constant 0 : i32
    %c0_i32_1 = arith.constant 0 : i32
    return %c0_i32, %c0_i32_0 : i32, i32
  }
  func.func @transform_7(%arg0: i32, %arg1: i32) -> (i32, i32) {
    %c0_i32 = arith.constant 0 : i32
    %c0_i32_0 = arith.constant 0 : i32
    %c0_i32_1 = arith.constant 0 : i32
    return %c0_i32, %c0_i32_0 : i32, i32
  }
  func.func @transform_8(%arg0: i32, %arg1: i32) -> (i32, i32) {
    %c0_i32 = arith.constant 0 : i32
    %c0_i32_0 = arith.constant 0 : i32
    %c0_i32_1 = arith.constant 0 : i32
    return %c0_i32, %c0_i32_0 : i32, i32
  }
  func.func @transform_9(%arg0: i32, %arg1: i32) -> (i32, i32) {
    %c0_i32 = arith.constant 0 : i32
    %c0_i32_0 = arith.constant 0 : i32
    %c0_i32_1 = arith.constant 0 : i32
    return %c0_i32, %c0_i32_0 : i32, i32
  }
  func.func @transform_10(%arg0: i32, %arg1: i32) -> (i32, i32) {
    %c0_i32 = arith.constant 0 : i32
    %c0_i32_0 = arith.constant 0 : i32
    %c0_i32_1 = arith.constant 0 : i32
    return %c0_i32, %c0_i32_0 : i32, i32
  }
  func.func @transform_11(%arg0: i32, %arg1: i32) -> (i32, i32, i32) {
    %c0_i32 = arith.constant 0 : i32
    %c0_i32_0 = arith.constant 0 : i32
    return %arg0, %arg1, %c0_i32 : i32, i32, i32
  }
}

module attributes {stable_mosaic.version = 11 : i64} {
  func.func @_ffn_block_kernel(%arg0: i32, %arg1: memref<16x32xf32, #tpu.memory_space<vmem>>, %arg2: memref<32x64xbf16, #tpu.memory_space<vmem>>, %arg3: memref<1x64xf32, #tpu.memory_space<vmem>>, %arg4: memref<64x32xbf16, #tpu.memory_space<vmem>>, %arg5: memref<1x32xf32, #tpu.memory_space<vmem>>, %arg6: memref<1x32xf32, #tpu.memory_space<vmem>>, %arg7: memref<1x32xf32, #tpu.memory_space<vmem>>, %arg8: memref<16x32xf32, #tpu.memory_space<vmem>>) attributes {dimension_semantics = [#tpu.dimension_semantics<parallel>], iteration_bounds = array<i64: 1>, scalar_prefetch = 0 : i64, scratch_operands = 0 : i64, tpu.core_type = #tpu.core_type<tc>, window_params = [{transform_indices = @transform_0, window_bounds = array<i64: 16, 32>}, {pipeline_mode = #tpu.pipeline_mode<synchronous>, transform_indices = @transform_1, window_bounds = array<i64: 32, 64>}, {pipeline_mode = #tpu.pipeline_mode<synchronous>, transform_indices = @transform_2, window_bounds = array<i64: 1, 64>}, {pipeline_mode = #tpu.pipeline_mode<synchronous>, transform_indices = @transform_3, window_bounds = array<i64: 64, 32>}, {pipeline_mode = #tpu.pipeline_mode<synchronous>, transform_indices = @transform_4, window_bounds = array<i64: 1, 32>}, {pipeline_mode = #tpu.pipeline_mode<synchronous>, transform_indices = @transform_5, window_bounds = array<i64: 1, 32>}, {pipeline_mode = #tpu.pipeline_mode<synchronous>, transform_indices = @transform_6, window_bounds = array<i64: 1, 32>}, {transform_indices = @transform_7, window_bounds = array<i64: 16, 32>}]} {
    %c0 = arith.constant 0 : index
    %c0_0 = arith.constant 0 : index
    %0 = vector.load %arg1[%c0, %c0_0] : memref<16x32xf32, #tpu.memory_space<vmem>>, vector<16x32xf32>
    %1 = arith.truncf %0 : vector<16x32xf32> to vector<16x32xbf16>
    %c0_1 = arith.constant 0 : index
    %c0_2 = arith.constant 0 : index
    %2 = vector.load %arg2[%c0_1, %c0_2] : memref<32x64xbf16, #tpu.memory_space<vmem>>, vector<32x64xbf16>
    %cst = arith.constant dense<0.000000e+00> : vector<16x64xf32>
    %3 = tpu.matmul %1, %2, %cst {dimension_numbers = #tpu.dot_dimension_numbers<[1], [0], [0], [1], [0, 0, 1, 1], [], []>} : vector<16x32xbf16>, vector<32x64xbf16>, vector<16x64xf32> -> vector<16x64xf32>
    %c0_3 = arith.constant 0 : index
    %c0_4 = arith.constant 0 : index
    %4 = vector.load %arg3[%c0_3, %c0_4] : memref<1x64xf32, #tpu.memory_space<vmem>>, vector<1x64xf32>
    %5 = vector.broadcast %4 : vector<1x64xf32> to vector<16x64xf32>
    %6 = arith.addf %3, %5 : vector<16x64xf32>
    %cst_5 = arith.constant 0.000000e+00 : f32
    %7 = vector.broadcast %cst_5 : f32 to vector<16x64xf32>
    %8 = arith.maximumf %6, %7 : vector<16x64xf32>
    %9 = arith.truncf %8 : vector<16x64xf32> to vector<16x64xbf16>
    %c0_6 = arith.constant 0 : index
    %c0_7 = arith.constant 0 : index
    %10 = vector.load %arg4[%c0_6, %c0_7] : memref<64x32xbf16, #tpu.memory_space<vmem>>, vector<64x32xbf16>
    %cst_8 = arith.constant dense<0.000000e+00> : vector<16x32xf32>
    %11 = tpu.matmul %9, %10, %cst_8 {dimension_numbers = #tpu.dot_dimension_numbers<[1], [0], [0], [1], [0, 0, 1, 1], [], []>} : vector<16x64xbf16>, vector<64x32xbf16>, vector<16x32xf32> -> vector<16x32xf32>
    %c0_9 = arith.constant 0 : index
    %c0_10 = arith.constant 0 : index
    %12 = vector.load %arg5[%c0_9, %c0_10] : memref<1x32xf32, #tpu.memory_space<vmem>>, vector<1x32xf32>
    %13 = vector.broadcast %12 : vector<1x32xf32> to vector<16x32xf32>
    %14 = arith.addf %11, %13 : vector<16x32xf32>
    %15 = arith.addf %0, %14 : vector<16x32xf32>
    %cst_11 = arith.constant dense<0.000000e+00> : vector<16xf32>
    %16 = vector.multi_reduction <add>, %15, %cst_11 [1] : vector<16x32xf32> to vector<16xf32>
    %17 = vector.shape_cast %16 : vector<16xf32> to vector<16x1xf32>
    %cst_12 = arith.constant 3.200000e+01 : f32
    %18 = vector.broadcast %cst_12 : f32 to vector<16x1xf32>
    %19 = arith.divf %17, %18 : vector<16x1xf32>
    %20 = vector.broadcast %19 : vector<16x1xf32> to vector<16x32xf32>
    %21 = arith.subf %15, %20 : vector<16x32xf32>
    %22 = arith.mulf %21, %21 : vector<16x32xf32>
    %cst_13 = arith.constant dense<0.000000e+00> : vector<16xf32>
    %23 = vector.multi_reduction <add>, %22, %cst_13 [1] : vector<16x32xf32> to vector<16xf32>
    %24 = vector.shape_cast %23 : vector<16xf32> to vector<16x1xf32>
    %cst_14 = arith.constant 3.200000e+01 : f32
    %25 = vector.broadcast %cst_14 : f32 to vector<16x1xf32>
    %26 = arith.divf %24, %25 : vector<16x1xf32>
    %c0_15 = arith.constant 0 : index
    %c0_16 = arith.constant 0 : index
    %27 = vector.load %arg6[%c0_15, %c0_16] : memref<1x32xf32, #tpu.memory_space<vmem>>, vector<1x32xf32>
    %28 = vector.broadcast %19 : vector<16x1xf32> to vector<16x32xf32>
    %29 = arith.subf %15, %28 : vector<16x32xf32>
    %30 = vector.broadcast %27 : vector<1x32xf32> to vector<16x32xf32>
    %31 = arith.mulf %30, %29 : vector<16x32xf32>
    %cst_17 = arith.constant 9.99999997E-7 : f32
    %32 = vector.broadcast %cst_17 : f32 to vector<16x1xf32>
    %33 = arith.addf %26, %32 : vector<16x1xf32>
    %34 = math.rsqrt %33 : vector<16x1xf32>
    %35 = vector.broadcast %34 : vector<16x1xf32> to vector<16x32xf32>
    %36 = arith.mulf %31, %35 : vector<16x32xf32>
    %c0_18 = arith.constant 0 : index
    %c0_19 = arith.constant 0 : index
    %37 = vector.load %arg7[%c0_18, %c0_19] : memref<1x32xf32, #tpu.memory_space<vmem>>, vector<1x32xf32>
    %38 = vector.broadcast %37 : vector<1x32xf32> to vector<16x32xf32>
    %39 = arith.addf %36, %38 : vector<16x32xf32>
    %c0_20 = arith.constant 0 : index
    %c0_21 = arith.constant 0 : index
    %40 = vector.load %arg8[%c0_20, %c0_21] : memref<16x32xf32, #tpu.memory_space<vmem>>, vector<16x32xf32>
    tpu.vector_store %arg8[%c0_20, %c0_21], %39 {strides = array<i32>} : memref<16x32xf32, #tpu.memory_space<vmem>>, vector<16x32xf32>,
    return
  }
  func.func @transform_0(%arg0: i32) -> (i32, i32) {
    %c0_i32 = arith.constant 0 : i32
    %c0_i32_0 = arith.constant 0 : i32
    return %arg0, %c0_i32 : i32, i32
  }
  func.func @transform_1(%arg0: i32) -> (i32, i32) {
    %c0_i32 = arith.constant 0 : i32
    %c0_i32_0 = arith.constant 0 : i32
    %c0_i32_1 = arith.constant 0 : i32
    return %c0_i32, %c0_i32_0 : i32, i32
  }
  func.func @transform_2(%arg0: i32) -> (i32, i32) {
    %c0_i32 = arith.constant 0 : i32
    %c0_i32_0 = arith.constant 0 : i32
    %c0_i32_1 = arith.constant 0 : i32
    return %c0_i32, %c0_i32_0 : i32, i32
  }
  func.func @transform_3(%arg0: i32) -> (i32, i32) {
    %c0_i32 = arith.constant 0 : i32
    %c0_i32_0 = arith.constant 0 : i32
    %c0_i32_1 = arith.constant 0 : i32
    return %c0_i32, %c0_i32_0 : i32, i32
  }
  func.func @transform_4(%arg0: i32) -> (i32, i32) {
    %c0_i32 = arith.constant 0 : i32
    %c0_i32_0 = arith.constant 0 : i32
    %c0_i32_1 = arith.constant 0 : i32
    return %c0_i32, %c0_i32_0 : i32, i32
  }
  func.func @transform_5(%arg0: i32) -> (i32, i32) {
    %c0_i32 = arith.constant 0 : i32
    %c0_i32_0 = arith.constant 0 : i32
    %c0_i32_1 = arith.constant 0 : i32
    return %c0_i32, %c0_i32_0 : i32, i32
  }
  func.func @transform_6(%arg0: i32) -> (i32, i32) {
    %c0_i32 = arith.constant 0 : i32
    %c0_i32_0 = arith.constant 0 : i32
    %c0_i32_1 = arith.constant 0 : i32
    return %c0_i32, %c0_i32_0 : i32, i32
  }
  func.func @transform_7(%arg0: i32) -> (i32, i32) {
    %c0_i32 = arith.constant 0 : i32
    %c0_i32_0 = arith.constant 0 : i32
    return %arg0, %c0_i32 : i32, i32
  }
}

module attributes {stable_mosaic.version = 11 : i64} {
  func.func @_attn_block_kernel(%arg0: i32, %arg1: i32, %arg2: memref<1x8x32xf32, #tpu.memory_space<vmem>>, %arg3: memref<1x8x32xf32, #tpu.memory_space<vmem>>, %arg4: memref<1x8x8xbf16, #tpu.memory_space<vmem>>, %arg5: memref<32x32xbf16, #tpu.memory_space<vmem>>, %arg6: memref<1x32xf32, #tpu.memory_space<vmem>>, %arg7: memref<32x64xbf16, #tpu.memory_space<vmem>>, %arg8: memref<1x64xf32, #tpu.memory_space<vmem>>, %arg9: memref<32x32xbf16, #tpu.memory_space<vmem>>, %arg10: memref<1x32xf32, #tpu.memory_space<vmem>>, %arg11: memref<1x32xf32, #tpu.memory_space<vmem>>, %arg12: memref<1x32xf32, #tpu.memory_space<vmem>>, %arg13: memref<1x8x32xf32, #tpu.memory_space<vmem>>) attributes {dimension_semantics = [#tpu.dimension_semantics<parallel>, #tpu.dimension_semantics<parallel>], iteration_bounds = array<i64: 2, 1>, scalar_prefetch = 0 : i64, scratch_operands = 0 : i64, tpu.core_type = #tpu.core_type<tc>, window_params = [{transform_indices = @transform_0, window_bounds = array<i64: 1, 8, 32>}, {transform_indices = @transform_1, window_bounds = array<i64: 1, 8, 32>}, {transform_indices = @transform_2, window_bounds = array<i64: 1, 8, 8>}, {pipeline_mode = #tpu.pipeline_mode<synchronous>, transform_indices = @transform_3, window_bounds = array<i64: 32, 32>}, {pipeline_mode = #tpu.pipeline_mode<synchronous>, transform_indices = @transform_4, window_bounds = array<i64: 1, 32>}, {pipeline_mode = #tpu.pipeline_mode<synchronous>, transform_indices = @transform_5, window_bounds = array<i64: 32, 64>}, {pipeline_mode = #tpu.pipeline_mode<synchronous>, transform_indices = @transform_6, window_bounds = array<i64: 1, 64>}, {pipeline_mode = #tpu.pipeline_mode<synchronous>, transform_indices = @transform_7, window_bounds = array<i64: 32, 32>}, {pipeline_mode = #tpu.pipeline_mode<synchronous>, transform_indices = @transform_8, window_bounds = array<i64: 1, 32>}, {pipeline_mode = #tpu.pipeline_mode<synchronous>, transform_indices = @transform_9, window_bounds = array<i64: 1, 32>}, {pipeline_mode = #tpu.pipeline_mode<synchronous>, transform_indices = @transform_10, window_bounds = array<i64: 1, 32>}, {transform_indices = @transform_11, window_bounds = array<i64: 1, 8, 32>}]} {
    %c0 = arith.constant 0 : index
    %c0_0 = arith.constant 0 : index
    %c0_1 = arith.constant 0 : index
    %0 = vector.load %arg2[%c0, %c0_0, %c0_1] : memref<1x8x32xf32, #tpu.memory_space<vmem>>, vector<1x8x32xf32>
    %1 = vector.shape_cast %0 : vector<1x8x32xf32> to vector<8x32xf32>
    %2 = arith.truncf %1 : vector<8x32xf32> to vector<8x32xbf16>
    %c0_2 = arith.constant 0 : index
    %c0_3 = arith.constant 0 : index
    %c0_4 = arith.constant 0 : index
    %3 = vector.load %arg3[%c0_2, %c0_3, %c0_4] : memref<1x8x32xf32, #tpu.memory_space<vmem>>, vector<1x8x32xf32>
    %4 = vector.shape_cast %3 : vector<1x8x32xf32> to vector<8x32xf32>
    %5 = arith.truncf %4 : vector<8x32xf32> to vector<8x32xbf16>
    %c0_5 = arith.constant 0 : index
    %c0_6 = arith.constant 0 : index
    %c0_7 = arith.constant 0 : index
    %6 = vector.load %arg4[%c0_5, %c0_6, %c0_7] : memref<1x8x8xbf16, #tpu.memory_space<vmem>>, vector<1x8x8xbf16>
    %7 = vector.shape_cast %6 : vector<1x8x8xbf16> to vector<8x8xbf16>
    %8 = arith.extf %7 : vector<8x8xbf16> to vector<8x8xf32>
    %c0_8 = arith.constant 0 : index
    %c0_9 = arith.constant 0 : index
    %9 = vector.load %arg5[%c0_8, %c0_9] : memref<32x32xbf16, #tpu.memory_space<vmem>>, vector<32x32xbf16>
    %cst = arith.constant dense<0.000000e+00> : vector<8x32xf32>
    %10 = tpu.matmul %2, %9, %cst {dimension_numbers = #tpu.dot_dimension_numbers<[1], [0], [0], [1], [0, 0, 1, 1], [], []>} : vector<8x32xbf16>, vector<32x32xbf16>, vector<8x32xf32> -> vector<8x32xf32>
    %c0_10 = arith.constant 0 : index
    %c0_11 = arith.constant 0 : index
    %11 = vector.load %arg6[%c0_10, %c0_11] : memref<1x32xf32, #tpu.memory_space<vmem>>, vector<1x32xf32>
    %12 = vector.broadcast %11 : vector<1x32xf32> to vector<8x32xf32>
    %13 = arith.addf %10, %12 : vector<8x32xf32>
    %c0_12 = arith.constant 0 : index
    %c0_13 = arith.constant 0 : index
    %14 = vector.load %arg7[%c0_12, %c0_13] : memref<32x64xbf16, #tpu.memory_space<vmem>>, vector<32x64xbf16>
    %cst_14 = arith.constant dense<0.000000e+00> : vector<8x64xf32>
    %15 = tpu.matmul %5, %14, %cst_14 {dimension_numbers = #tpu.dot_dimension_numbers<[1], [0], [0], [1], [0, 0, 1, 1], [], []>} : vector<8x32xbf16>, vector<32x64xbf16>, vector<8x64xf32> -> vector<8x64xf32>
    %c0_15 = arith.constant 0 : index
    %c0_16 = arith.constant 0 : index
    %16 = vector.load %arg8[%c0_15, %c0_16] : memref<1x64xf32, #tpu.memory_space<vmem>>, vector<1x64xf32>
    %17 = vector.broadcast %16 : vector<1x64xf32> to vector<8x64xf32>
    %18 = arith.addf %15, %17 : vector<8x64xf32>
    %19 = arith.truncf %13 : vector<8x32xf32> to vector<8x32xbf16>
    %20 = arith.truncf %18 : vector<8x64xf32> to vector<8x64xbf16>
    %c0_17 = arith.constant 0 : index
    %c0_18 = arith.constant 0 : index
    %21 = vector.load %arg9[%c0_17, %c0_18] : memref<32x32xbf16, #tpu.memory_space<vmem>>, vector<32x32xbf16>
    %cst_19 = arith.constant 0.000000e+00 : f32
    %22 = vector.broadcast %cst_19 : f32 to vector<8x32xf32>
    %23 = vector.extract_strided_slice %19 {offsets = [0, 0], sizes = [8, 8], strides = [1, 1]} : vector<8x32xbf16> to vector<8x8xbf16>
    %24 = vector.extract_strided_slice %20 {offsets = [0, 0], sizes = [8, 8], strides = [1, 1]} : vector<8x64xbf16> to vector<8x8xbf16>
    %25 = vector.extract_strided_slice %20 {offsets = [0, 32], sizes = [8, 8], strides = [1, 1]} : vector<8x64xbf16> to vector<8x8xbf16>
    %cst_20 = arith.constant dense<0.000000e+00> : vector<8x8xf32>
    %26 = tpu.matmul %23, %24, %cst_20 {dimension_numbers = #tpu.dot_dimension_numbers<[1], [1], [0], [0], [0, 0, 1, 0], [], []>} : vector<8x8xbf16>, vector<8x8xbf16>, vector<8x8xf32> -> vector<8x8xf32>
    %27 = arith.addf %26, %8 : vector<8x8xf32>
    %cst_21 = arith.constant dense<0xFF800000> : vector<8xf32>
    %28 = vector.multi_reduction <maximumf>, %27, %cst_21 [1] : vector<8x8xf32> to vector<8xf32>
    %29 = vector.shape_cast %28 : vector<8xf32> to vector<8x1xf32>
    %30 = vector.broadcast %29 : vector<8x1xf32> to vector<8x8xf32>
    %31 = arith.subf %27, %30 : vector<8x8xf32>
    %32 = math.exp %31 : vector<8x8xf32>
    %cst_22 = arith.constant dense<0.000000e+00> : vector<8xf32>
    %33 = vector.multi_reduction <add>, %32, %cst_22 [1] : vector<8x8xf32> to vector<8xf32>
    %34 = vector.shape_cast %33 : vector<8xf32> to vector<8x1xf32>
    %35 = tpu.reciprocal %34 {approx = true} : vector<8x1xf32> -> vector<8x1xf32>
    %36 = arith.truncf %32 : vector<8x8xf32> to vector<8x8xbf16>
    %cst_23 = arith.constant dense<0.000000e+00> : vector<8x8xf32>
    %37 = tpu.matmul %36, %25, %cst_23 {dimension_numbers = #tpu.dot_dimension_numbers<[1], [0], [0], [1], [0, 0, 1, 1], [], []>} : vector<8x8xbf16>, vector<8x8xbf16>, vector<8x8xf32> -> vector<8x8xf32>
    %38 = vector.broadcast %35 : vector<8x1xf32> to vector<8x8xf32>
    %39 = arith.mulf %37, %38 : vector<8x8xf32>
    %40 = arith.truncf %39 : vector<8x8xf32> to vector<8x8xbf16>
    %41 = vector.extract_strided_slice %21 {offsets = [0, 0], sizes = [8, 32], strides = [1, 1]} : vector<32x32xbf16> to vector<8x32xbf16>
    %cst_24 = arith.constant dense<0.000000e+00> : vector<8x32xf32>
    %42 = tpu.matmul %40, %41, %cst_24 {dimension_numbers = #tpu.dot_dimension_numbers<[1], [0], [0], [1], [0, 0, 1, 1], [], []>} : vector<8x8xbf16>, vector<8x32xbf16>, vector<8x32xf32> -> vector<8x32xf32>
    %43 = arith.addf %22, %42 : vector<8x32xf32>
    %44 = vector.extract_strided_slice %19 {offsets = [0, 8], sizes = [8, 8], strides = [1, 1]} : vector<8x32xbf16> to vector<8x8xbf16>
    %45 = vector.extract_strided_slice %20 {offsets = [0, 8], sizes = [8, 8], strides = [1, 1]} : vector<8x64xbf16> to vector<8x8xbf16>
    %46 = vector.extract_strided_slice %20 {offsets = [0, 40], sizes = [8, 8], strides = [1, 1]} : vector<8x64xbf16> to vector<8x8xbf16>
    %cst_25 = arith.constant dense<0.000000e+00> : vector<8x8xf32>
    %47 = tpu.matmul %44, %45, %cst_25 {dimension_numbers = #tpu.dot_dimension_numbers<[1], [1], [0], [0], [0, 0, 1, 0], [], []>} : vector<8x8xbf16>, vector<8x8xbf16>, vector<8x8xf32> -> vector<8x8xf32>
    %48 = arith.addf %47, %8 : vector<8x8xf32>
    %cst_26 = arith.constant dense<0xFF800000> : vector<8xf32>
    %49 = vector.multi_reduction <maximumf>, %48, %cst_26 [1] : vector<8x8xf32> to vector<8xf32>
    %50 = vector.shape_cast %49 : vector<8xf32> to vector<8x1xf32>
    %51 = vector.broadcast %50 : vector<8x1xf32> to vector<8x8xf32>
    %52 = arith.subf %48, %51 : vector<8x8xf32>
    %53 = math.exp %52 : vector<8x8xf32>
    %cst_27 = arith.constant dense<0.000000e+00> : vector<8xf32>
    %54 = vector.multi_reduction <add>, %53, %cst_27 [1] : vector<8x8xf32> to vector<8xf32>
    %55 = vector.shape_cast %54 : vector<8xf32> to vector<8x1xf32>
    %56 = tpu.reciprocal %55 {approx = true} : vector<8x1xf32> -> vector<8x1xf32>
    %57 = arith.truncf %53 : vector<8x8xf32> to vector<8x8xbf16>
    %cst_28 = arith.constant dense<0.000000e+00> : vector<8x8xf32>
    %58 = tpu.matmul %57, %46, %cst_28 {dimension_numbers = #tpu.dot_dimension_numbers<[1], [0], [0], [1], [0, 0, 1, 1], [], []>} : vector<8x8xbf16>, vector<8x8xbf16>, vector<8x8xf32> -> vector<8x8xf32>
    %59 = vector.broadcast %56 : vector<8x1xf32> to vector<8x8xf32>
    %60 = arith.mulf %58, %59 : vector<8x8xf32>
    %61 = arith.truncf %60 : vector<8x8xf32> to vector<8x8xbf16>
    %62 = vector.extract_strided_slice %21 {offsets = [8, 0], sizes = [8, 32], strides = [1, 1]} : vector<32x32xbf16> to vector<8x32xbf16>
    %cst_29 = arith.constant dense<0.000000e+00> : vector<8x32xf32>
    %63 = tpu.matmul %61, %62, %cst_29 {dimension_numbers = #tpu.dot_dimension_numbers<[1], [0], [0], [1], [0, 0, 1, 1], [], []>} : vector<8x8xbf16>, vector<8x32xbf16>, vector<8x32xf32> -> vector<8x32xf32>
    %64 = arith.addf %43, %63 : vector<8x32xf32>
    %65 = vector.extract_strided_slice %19 {offsets = [0, 16], sizes = [8, 8], strides = [1, 1]} : vector<8x32xbf16> to vector<8x8xbf16>
    %66 = vector.extract_strided_slice %20 {offsets = [0, 16], sizes = [8, 8], strides = [1, 1]} : vector<8x64xbf16> to vector<8x8xbf16>
    %67 = vector.extract_strided_slice %20 {offsets = [0, 48], sizes = [8, 8], strides = [1, 1]} : vector<8x64xbf16> to vector<8x8xbf16>
    %cst_30 = arith.constant dense<0.000000e+00> : vector<8x8xf32>
    %68 = tpu.matmul %65, %66, %cst_30 {dimension_numbers = #tpu.dot_dimension_numbers<[1], [1], [0], [0], [0, 0, 1, 0], [], []>} : vector<8x8xbf16>, vector<8x8xbf16>, vector<8x8xf32> -> vector<8x8xf32>
    %69 = arith.addf %68, %8 : vector<8x8xf32>
    %cst_31 = arith.constant dense<0xFF800000> : vector<8xf32>
    %70 = vector.multi_reduction <maximumf>, %69, %cst_31 [1] : vector<8x8xf32> to vector<8xf32>
    %71 = vector.shape_cast %70 : vector<8xf32> to vector<8x1xf32>
    %72 = vector.broadcast %71 : vector<8x1xf32> to vector<8x8xf32>
    %73 = arith.subf %69, %72 : vector<8x8xf32>
    %74 = math.exp %73 : vector<8x8xf32>
    %cst_32 = arith.constant dense<0.000000e+00> : vector<8xf32>
    %75 = vector.multi_reduction <add>, %74, %cst_32 [1] : vector<8x8xf32> to vector<8xf32>
    %76 = vector.shape_cast %75 : vector<8xf32> to vector<8x1xf32>
    %77 = tpu.reciprocal %76 {approx = true} : vector<8x1xf32> -> vector<8x1xf32>
    %78 = arith.truncf %74 : vector<8x8xf32> to vector<8x8xbf16>
    %cst_33 = arith.constant dense<0.000000e+00> : vector<8x8xf32>
    %79 = tpu.matmul %78, %67, %cst_33 {dimension_numbers = #tpu.dot_dimension_numbers<[1], [0], [0], [1], [0, 0, 1, 1], [], []>} : vector<8x8xbf16>, vector<8x8xbf16>, vector<8x8xf32> -> vector<8x8xf32>
    %80 = vector.broadcast %77 : vector<8x1xf32> to vector<8x8xf32>
    %81 = arith.mulf %79, %80 : vector<8x8xf32>
    %82 = arith.truncf %81 : vector<8x8xf32> to vector<8x8xbf16>
    %83 = vector.extract_strided_slice %21 {offsets = [16, 0], sizes = [8, 32], strides = [1, 1]} : vector<32x32xbf16> to vector<8x32xbf16>
    %cst_34 = arith.constant dense<0.000000e+00> : vector<8x32xf32>
    %84 = tpu.matmul %82, %83, %cst_34 {dimension_numbers = #tpu.dot_dimension_numbers<[1], [0], [0], [1], [0, 0, 1, 1], [], []>} : vector<8x8xbf16>, vector<8x32xbf16>, vector<8x32xf32> -> vector<8x32xf32>
    %85 = arith.addf %64, %84 : vector<8x32xf32>
    %86 = vector.extract_strided_slice %19 {offsets = [0, 24], sizes = [8, 8], strides = [1, 1]} : vector<8x32xbf16> to vector<8x8xbf16>
    %87 = vector.extract_strided_slice %20 {offsets = [0, 24], sizes = [8, 8], strides = [1, 1]} : vector<8x64xbf16> to vector<8x8xbf16>
    %88 = vector.extract_strided_slice %20 {offsets = [0, 56], sizes = [8, 8], strides = [1, 1]} : vector<8x64xbf16> to vector<8x8xbf16>
    %cst_35 = arith.constant dense<0.000000e+00> : vector<8x8xf32>
    %89 = tpu.matmul %86, %87, %cst_35 {dimension_numbers = #tpu.dot_dimension_numbers<[1], [1], [0], [0], [0, 0, 1, 0], [], []>} : vector<8x8xbf16>, vector<8x8xbf16>, vector<8x8xf32> -> vector<8x8xf32>
    %90 = arith.addf %89, %8 : vector<8x8xf32>
    %cst_36 = arith.constant dense<0xFF800000> : vector<8xf32>
    %91 = vector.multi_reduction <maximumf>, %90, %cst_36 [1] : vector<8x8xf32> to vector<8xf32>
    %92 = vector.shape_cast %91 : vector<8xf32> to vector<8x1xf32>
    %93 = vector.broadcast %92 : vector<8x1xf32> to vector<8x8xf32>
    %94 = arith.subf %90, %93 : vector<8x8xf32>
    %95 = math.exp %94 : vector<8x8xf32>
    %cst_37 = arith.constant dense<0.000000e+00> : vector<8xf32>
    %96 = vector.multi_reduction <add>, %95, %cst_37 [1] : vector<8x8xf32> to vector<8xf32>
    %97 = vector.shape_cast %96 : vector<8xf32> to vector<8x1xf32>
    %98 = tpu.reciprocal %97 {approx = true} : vector<8x1xf32> -> vector<8x1xf32>
    %99 = arith.truncf %95 : vector<8x8xf32> to vector<8x8xbf16>
    %cst_38 = arith.constant dense<0.000000e+00> : vector<8x8xf32>
    %100 = tpu.matmul %99, %88, %cst_38 {dimension_numbers = #tpu.dot_dimension_numbers<[1], [0], [0], [1], [0, 0, 1, 1], [], []>} : vector<8x8xbf16>, vector<8x8xbf16>, vector<8x8xf32> -> vector<8x8xf32>
    %101 = vector.broadcast %98 : vector<8x1xf32> to vector<8x8xf32>
    %102 = arith.mulf %100, %101 : vector<8x8xf32>
    %103 = arith.truncf %102 : vector<8x8xf32> to vector<8x8xbf16>
    %104 = vector.extract_strided_slice %21 {offsets = [24, 0], sizes = [8, 32], strides = [1, 1]} : vector<32x32xbf16> to vector<8x32xbf16>
    %cst_39 = arith.constant dense<0.000000e+00> : vector<8x32xf32>
    %105 = tpu.matmul %103, %104, %cst_39 {dimension_numbers = #tpu.dot_dimension_numbers<[1], [0], [0], [1], [0, 0, 1, 1], [], []>} : vector<8x8xbf16>, vector<8x32xbf16>, vector<8x32xf32> -> vector<8x32xf32>
    %106 = arith.addf %85, %105 : vector<8x32xf32>
    %c0_40 = arith.constant 0 : index
    %c0_41 = arith.constant 0 : index
    %107 = vector.load %arg10[%c0_40, %c0_41] : memref<1x32xf32, #tpu.memory_space<vmem>>, vector<1x32xf32>
    %108 = vector.broadcast %107 : vector<1x32xf32> to vector<8x32xf32>
    %109 = arith.addf %106, %108 : vector<8x32xf32>
    %110 = arith.addf %1, %109 : vector<8x32xf32>
    %cst_42 = arith.constant dense<0.000000e+00> : vector<8xf32>
    %111 = vector.multi_reduction <add>, %110, %cst_42 [1] : vector<8x32xf32> to vector<8xf32>
    %112 = vector.shape_cast %111 : vector<8xf32> to vector<8x1xf32>
    %cst_43 = arith.constant 3.200000e+01 : f32
    %113 = vector.broadcast %cst_43 : f32 to vector<8x1xf32>
    %114 = arith.divf %112, %113 : vector<8x1xf32>
    %115 = vector.broadcast %114 : vector<8x1xf32> to vector<8x32xf32>
    %116 = arith.subf %110, %115 : vector<8x32xf32>
    %117 = arith.mulf %116, %116 : vector<8x32xf32>
    %cst_44 = arith.constant dense<0.000000e+00> : vector<8xf32>
    %118 = vector.multi_reduction <add>, %117, %cst_44 [1] : vector<8x32xf32> to vector<8xf32>
    %119 = vector.shape_cast %118 : vector<8xf32> to vector<8x1xf32>
    %cst_45 = arith.constant 3.200000e+01 : f32
    %120 = vector.broadcast %cst_45 : f32 to vector<8x1xf32>
    %121 = arith.divf %119, %120 : vector<8x1xf32>
    %c0_46 = arith.constant 0 : index
    %c0_47 = arith.constant 0 : index
    %122 = vector.load %arg11[%c0_46, %c0_47] : memref<1x32xf32, #tpu.memory_space<vmem>>, vector<1x32xf32>
    %123 = vector.broadcast %114 : vector<8x1xf32> to vector<8x32xf32>
    %124 = arith.subf %110, %123 : vector<8x32xf32>
    %125 = vector.broadcast %122 : vector<1x32xf32> to vector<8x32xf32>
    %126 = arith.mulf %125, %124 : vector<8x32xf32>
    %cst_48 = arith.constant 9.99999997E-7 : f32
    %127 = vector.broadcast %cst_48 : f32 to vector<8x1xf32>
    %128 = arith.addf %121, %127 : vector<8x1xf32>
    %129 = math.rsqrt %128 : vector<8x1xf32>
    %130 = vector.broadcast %129 : vector<8x1xf32> to vector<8x32xf32>
    %131 = arith.mulf %126, %130 : vector<8x32xf32>
    %c0_49 = arith.constant 0 : index
    %c0_50 = arith.constant 0 : index
    %132 = vector.load %arg12[%c0_49, %c0_50] : memref<1x32xf32, #tpu.memory_space<vmem>>, vector<1x32xf32>
    %133 = vector.broadcast %132 : vector<1x32xf32> to vector<8x32xf32>
    %134 = arith.addf %131, %133 : vector<8x32xf32>
    %c0_51 = arith.constant 0 : index
    %c0_52 = arith.constant 0 : index
    %c0_53 = arith.constant 0 : index
    %135 = vector.load %arg13[%c0_51, %c0_52, %c0_53] : memref<1x8x32xf32, #tpu.memory_space<vmem>>, vector<1x8x32xf32>
    %136 = vector.shape_cast %135 : vector<1x8x32xf32> to vector<8x32xf32>
    %137 = vector.shape_cast %134 : vector<8x32xf32> to vector<1x8x32xf32>
    tpu.vector_store %arg13[%c0_51, %c0_52, %c0_53], %137 {strides = array<i32>} : memref<1x8x32xf32, #tpu.memory_space<vmem>>, vector<1x8x32xf32>,
    return
  }
  func.func @transform_0(%arg0: i32, %arg1: i32) -> (i32, i32, i32) {
    %c0_i32 = arith.constant 0 : i32
    %c0_i32_0 = arith.constant 0 : i32
    return %arg0, %arg1, %c0_i32 : i32, i32, i32
  }
  func.func @transform_1(%arg0: i32, %arg1: i32) -> (i32, i32, i32) {
    %c0_i32 = arith.constant 0 : i32
    %c0_i32_0 = arith.constant 0 : i32
    %c0_i32_1 = arith.constant 0 : i32
    return %arg0, %c0_i32, %c0_i32_0 : i32, i32, i32
  }
  func.func @transform_2(%arg0: i32, %arg1: i32) -> (i32, i32, i32) {
    %c0_i32 = arith.constant 0 : i32
    %c0_i32_0 = arith.constant 0 : i32
    return %arg0, %arg1, %c0_i32 : i32, i32, i32
  }
  func.func @transform_3(%arg0: i32, %arg1: i32) -> (i32, i32) {
    %c0_i32 = arith.constant 0 : i32
    %c0_i32_0 = arith.constant 0 : i32
    %c0_i32_1 = arith.constant 0 : i32
    return %c0_i32, %c0_i32_0 : i32, i32
  }
  func.func @transform_4(%arg0: i32, %arg1: i32) -> (i32, i32) {
    %c0_i32 = arith.constant 0 : i32
    %c0_i32_0 = arith.constant 0 : i32
    %c0_i32_1 = arith.constant 0 : i32
    return %c0_i32, %c0_i32_0 : i32, i32
  }
  func.func @transform_5(%arg0: i32, %arg1: i32) -> (i32, i32) {
    %c0_i32 = arith.constant 0 : i32
    %c0_i32_0 = arith.constant 0 : i32
    %c0_i32_1 = arith.constant 0 : i32
    return %c0_i32, %c0_i32_0 : i32, i32
  }
  func.func @transform_6(%arg0: i32, %arg1: i32) -> (i32, i32) {
    %c0_i32 = arith.constant 0 : i32
    %c0_i32_0 = arith.constant 0 : i32
    %c0_i32_1 = arith.constant 0 : i32
    return %c0_i32, %c0_i32_0 : i32, i32
  }
  func.func @transform_7(%arg0: i32, %arg1: i32) -> (i32, i32) {
    %c0_i32 = arith.constant 0 : i32
    %c0_i32_0 = arith.constant 0 : i32
    %c0_i32_1 = arith.constant 0 : i32
    return %c0_i32, %c0_i32_0 : i32, i32
  }
  func.func @transform_8(%arg0: i32, %arg1: i32) -> (i32, i32) {
    %c0_i32 = arith.constant 0 : i32
    %c0_i32_0 = arith.constant 0 : i32
    %c0_i32_1 = arith.constant 0 : i32
    return %c0_i32, %c0_i32_0 : i32, i32
  }
  func.func @transform_9(%arg0: i32, %arg1: i32) -> (i32, i32) {
    %c0_i32 = arith.constant 0 : i32
    %c0_i32_0 = arith.constant 0 : i32
    %c0_i32_1 = arith.constant 0 : i32
    return %c0_i32, %c0_i32_0 : i32, i32
  }
  func.func @transform_10(%arg0: i32, %arg1: i32) -> (i32, i32) {
    %c0_i32 = arith.constant 0 : i32
    %c0_i32_0 = arith.constant 0 : i32
    %c0_i32_1 = arith.constant 0 : i32
    return %c0_i32, %c0_i32_0 : i32, i32
  }
  func.func @transform_11(%arg0: i32, %arg1: i32) -> (i32, i32, i32) {
    %c0_i32 = arith.constant 0 : i32
    %c0_i32_0 = arith.constant 0 : i32
    return %arg0, %arg1, %c0_i32 : i32, i32, i32
  }
}

module attributes {stable_mosaic.version = 11 : i64} {
  func.func @_ffn_block_kernel(%arg0: i32, %arg1: memref<16x32xf32, #tpu.memory_space<vmem>>, %arg2: memref<32x64xbf16, #tpu.memory_space<vmem>>, %arg3: memref<1x64xf32, #tpu.memory_space<vmem>>, %arg4: memref<64x32xbf16, #tpu.memory_space<vmem>>, %arg5: memref<1x32xf32, #tpu.memory_space<vmem>>, %arg6: memref<1x32xf32, #tpu.memory_space<vmem>>, %arg7: memref<1x32xf32, #tpu.memory_space<vmem>>, %arg8: memref<16x32xf32, #tpu.memory_space<vmem>>) attributes {dimension_semantics = [#tpu.dimension_semantics<parallel>], iteration_bounds = array<i64: 1>, scalar_prefetch = 0 : i64, scratch_operands = 0 : i64, tpu.core_type = #tpu.core_type<tc>, window_params = [{transform_indices = @transform_0, window_bounds = array<i64: 16, 32>}, {pipeline_mode = #tpu.pipeline_mode<synchronous>, transform_indices = @transform_1, window_bounds = array<i64: 32, 64>}, {pipeline_mode = #tpu.pipeline_mode<synchronous>, transform_indices = @transform_2, window_bounds = array<i64: 1, 64>}, {pipeline_mode = #tpu.pipeline_mode<synchronous>, transform_indices = @transform_3, window_bounds = array<i64: 64, 32>}, {pipeline_mode = #tpu.pipeline_mode<synchronous>, transform_indices = @transform_4, window_bounds = array<i64: 1, 32>}, {pipeline_mode = #tpu.pipeline_mode<synchronous>, transform_indices = @transform_5, window_bounds = array<i64: 1, 32>}, {pipeline_mode = #tpu.pipeline_mode<synchronous>, transform_indices = @transform_6, window_bounds = array<i64: 1, 32>}, {transform_indices = @transform_7, window_bounds = array<i64: 16, 32>}]} {
    %c0 = arith.constant 0 : index
    %c0_0 = arith.constant 0 : index
    %0 = vector.load %arg1[%c0, %c0_0] : memref<16x32xf32, #tpu.memory_space<vmem>>, vector<16x32xf32>
    %1 = arith.truncf %0 : vector<16x32xf32> to vector<16x32xbf16>
    %c0_1 = arith.constant 0 : index
    %c0_2 = arith.constant 0 : index
    %2 = vector.load %arg2[%c0_1, %c0_2] : memref<32x64xbf16, #tpu.memory_space<vmem>>, vector<32x64xbf16>
    %cst = arith.constant dense<0.000000e+00> : vector<16x64xf32>
    %3 = tpu.matmul %1, %2, %cst {dimension_numbers = #tpu.dot_dimension_numbers<[1], [0], [0], [1], [0, 0, 1, 1], [], []>} : vector<16x32xbf16>, vector<32x64xbf16>, vector<16x64xf32> -> vector<16x64xf32>
    %c0_3 = arith.constant 0 : index
    %c0_4 = arith.constant 0 : index
    %4 = vector.load %arg3[%c0_3, %c0_4] : memref<1x64xf32, #tpu.memory_space<vmem>>, vector<1x64xf32>
    %5 = vector.broadcast %4 : vector<1x64xf32> to vector<16x64xf32>
    %6 = arith.addf %3, %5 : vector<16x64xf32>
    %cst_5 = arith.constant 0.000000e+00 : f32
    %7 = vector.broadcast %cst_5 : f32 to vector<16x64xf32>
    %8 = arith.maximumf %6, %7 : vector<16x64xf32>
    %9 = arith.truncf %8 : vector<16x64xf32> to vector<16x64xbf16>
    %c0_6 = arith.constant 0 : index
    %c0_7 = arith.constant 0 : index
    %10 = vector.load %arg4[%c0_6, %c0_7] : memref<64x32xbf16, #tpu.memory_space<vmem>>, vector<64x32xbf16>
    %cst_8 = arith.constant dense<0.000000e+00> : vector<16x32xf32>
    %11 = tpu.matmul %9, %10, %cst_8 {dimension_numbers = #tpu.dot_dimension_numbers<[1], [0], [0], [1], [0, 0, 1, 1], [], []>} : vector<16x64xbf16>, vector<64x32xbf16>, vector<16x32xf32> -> vector<16x32xf32>
    %c0_9 = arith.constant 0 : index
    %c0_10 = arith.constant 0 : index
    %12 = vector.load %arg5[%c0_9, %c0_10] : memref<1x32xf32, #tpu.memory_space<vmem>>, vector<1x32xf32>
    %13 = vector.broadcast %12 : vector<1x32xf32> to vector<16x32xf32>
    %14 = arith.addf %11, %13 : vector<16x32xf32>
    %15 = arith.addf %0, %14 : vector<16x32xf32>
    %cst_11 = arith.constant dense<0.000000e+00> : vector<16xf32>
    %16 = vector.multi_reduction <add>, %15, %cst_11 [1] : vector<16x32xf32> to vector<16xf32>
    %17 = vector.shape_cast %16 : vector<16xf32> to vector<16x1xf32>
    %cst_12 = arith.constant 3.200000e+01 : f32
    %18 = vector.broadcast %cst_12 : f32 to vector<16x1xf32>
    %19 = arith.divf %17, %18 : vector<16x1xf32>
    %20 = vector.broadcast %19 : vector<16x1xf32> to vector<16x32xf32>
    %21 = arith.subf %15, %20 : vector<16x32xf32>
    %22 = arith.mulf %21, %21 : vector<16x32xf32>
    %cst_13 = arith.constant dense<0.000000e+00> : vector<16xf32>
    %23 = vector.multi_reduction <add>, %22, %cst_13 [1] : vector<16x32xf32> to vector<16xf32>
    %24 = vector.shape_cast %23 : vector<16xf32> to vector<16x1xf32>
    %cst_14 = arith.constant 3.200000e+01 : f32
    %25 = vector.broadcast %cst_14 : f32 to vector<16x1xf32>
    %26 = arith.divf %24, %25 : vector<16x1xf32>
    %c0_15 = arith.constant 0 : index
    %c0_16 = arith.constant 0 : index
    %27 = vector.load %arg6[%c0_15, %c0_16] : memref<1x32xf32, #tpu.memory_space<vmem>>, vector<1x32xf32>
    %28 = vector.broadcast %19 : vector<16x1xf32> to vector<16x32xf32>
    %29 = arith.subf %15, %28 : vector<16x32xf32>
    %30 = vector.broadcast %27 : vector<1x32xf32> to vector<16x32xf32>
    %31 = arith.mulf %30, %29 : vector<16x32xf32>
    %cst_17 = arith.constant 9.99999997E-7 : f32
    %32 = vector.broadcast %cst_17 : f32 to vector<16x1xf32>
    %33 = arith.addf %26, %32 : vector<16x1xf32>
    %34 = math.rsqrt %33 : vector<16x1xf32>
    %35 = vector.broadcast %34 : vector<16x1xf32> to vector<16x32xf32>
    %36 = arith.mulf %31, %35 : vector<16x32xf32>
    %c0_18 = arith.constant 0 : index
    %c0_19 = arith.constant 0 : index
    %37 = vector.load %arg7[%c0_18, %c0_19] : memref<1x32xf32, #tpu.memory_space<vmem>>, vector<1x32xf32>
    %38 = vector.broadcast %37 : vector<1x32xf32> to vector<16x32xf32>
    %39 = arith.addf %36, %38 : vector<16x32xf32>
    %c0_20 = arith.constant 0 : index
    %c0_21 = arith.constant 0 : index
    %40 = vector.load %arg8[%c0_20, %c0_21] : memref<16x32xf32, #tpu.memory_space<vmem>>, vector<16x32xf32>
    tpu.vector_store %arg8[%c0_20, %c0_21], %39 {strides = array<i32>} : memref<16x32xf32, #tpu.memory_space<vmem>>, vector<16x32xf32>,
    return
  }
  func.func @transform_0(%arg0: i32) -> (i32, i32) {
    %c0_i32 = arith.constant 0 : i32
    %c0_i32_0 = arith.constant 0 : i32
    return %arg0, %c0_i32 : i32, i32
  }
  func.func @transform_1(%arg0: i32) -> (i32, i32) {
    %c0_i32 = arith.constant 0 : i32
    %c0_i32_0 = arith.constant 0 : i32
    %c0_i32_1 = arith.constant 0 : i32
    return %c0_i32, %c0_i32_0 : i32, i32
  }
  func.func @transform_2(%arg0: i32) -> (i32, i32) {
    %c0_i32 = arith.constant 0 : i32
    %c0_i32_0 = arith.constant 0 : i32
    %c0_i32_1 = arith.constant 0 : i32
    return %c0_i32, %c0_i32_0 : i32, i32
  }
  func.func @transform_3(%arg0: i32) -> (i32, i32) {
    %c0_i32 = arith.constant 0 : i32
    %c0_i32_0 = arith.constant 0 : i32
    %c0_i32_1 = arith.constant 0 : i32
    return %c0_i32, %c0_i32_0 : i32, i32
  }
  func.func @transform_4(%arg0: i32) -> (i32, i32) {
    %c0_i32 = arith.constant 0 : i32
    %c0_i32_0 = arith.constant 0 : i32
    %c0_i32_1 = arith.constant 0 : i32
    return %c0_i32, %c0_i32_0 : i32, i32
  }
  func.func @transform_5(%arg0: i32) -> (i32, i32) {
    %c0_i32 = arith.constant 0 : i32
    %c0_i32_0 = arith.constant 0 : i32
    %c0_i32_1 = arith.constant 0 : i32
    return %c0_i32, %c0_i32_0 : i32, i32
  }
  func.func @transform_6(%arg0: i32) -> (i32, i32) {
    %c0_i32 = arith.constant 0 : i32
    %c0_i32_0 = arith.constant 0 : i32
    %c0_i32_1 = arith.constant 0 : i32
    return %c0_i32, %c0_i32_0 : i32, i32
  }
  func.func @transform_7(%arg0: i32) -> (i32, i32) {
    %c0_i32 = arith.constant 0 : i32
    %c0_i32_0 = arith.constant 0 : i32
    return %arg0, %c0_i32 : i32, i32
  }
}

</mosaic_0001>

<llo_original>
// kernel: decoder_forward.8
$region0: #{decoder_forward.8}
  #allocation0 [shape = 'u32[]', space=smem, size = 0x4, offset = 0x4, fixed_abs, tag = 'smem constant byte address 0x4 - core index']
  #allocation1 [shape = 'u32[144,128]{1,0:T(1,128)}', space=vmem, size = 0x12000, scoped, tag = 'internal scratch']
  %s0 = inlined_call_operand.vmem [shape: f32[16,32], index: 0, kind: input, shape index: {}]
  %s1 = inlined_call_operand.vmem [shape: bf16[32,64], index: 1, kind: input, shape index: {}]
  %s2 = inlined_call_operand.vmem [shape: f32[1,64], index: 2, kind: input, shape index: {}]
  %s3 = inlined_call_operand.vmem [shape: bf16[64,32], index: 3, kind: input, shape index: {}]
  %s4 = inlined_call_operand.vmem [shape: f32[1,32], index: 4, kind: input, shape index: {}]
  %s5 = inlined_call_operand.vmem [shape: f32[1,32], index: 5, kind: input, shape index: {}]
  %s6 = inlined_call_operand.vmem [shape: f32[1,32], index: 6, kind: input, shape index: {}]
  %s7 = inlined_call_operand.vmem [shape: f32[16,32], index: 7, kind: output, shape index: {}]
  %s8 = sld [smem:[#allocation0]]
  $region38: #{decoder_forward.8} parent=0
    _
  %s10 = ssub.s32 1, %s8
  %s11 = scalar_select 0, %s10, %s8
  // Predicated region
  $region2: #{decoder_forward.8} parent=0 // pred_check
    _
  $region3: #{decoder_forward.8} parent=0 // pred_check_branch
    %13 = sbr.rel (0) target = $region5
  $region4: #{decoder_forward.8} parent=0 // pred_region
    _
  $region5: #{decoder_forward.8} parent=0 // pred_fallthru
    _
  // Predicated region
  $region6: #{decoder_forward.8} parent=0 // pred_check
    _
  $region7: #{decoder_forward.8} parent=0 // pred_check_branch
    %15 = sbr.rel (0) target = $region9
  $region8: #{decoder_forward.8} parent=0 // pred_region
    _
  $region9: #{decoder_forward.8} parent=0 // pred_fallthru
    _
  // Predicated region
  $region10: #{decoder_forward.8} parent=0 // pred_check
    _
  $region11: #{decoder_forward.8} parent=0 // pred_check_branch
    %17 = sbr.rel (0) target = $region13
  $region12: #{decoder_forward.8} parent=0 // pred_region
    _
  $region13: #{decoder_forward.8} parent=0 // pred_fallthru
    _
  // Predicated region
  $region14: #{decoder_forward.8} parent=0 // pred_check
    _
  $region15: #{decoder_forward.8} parent=0 // pred_check_branch
    %19 = sbr.rel (0) target = $region17
  $region16: #{decoder_forward.8} parent=0 // pred_region
    _
  $region17: #{decoder_forward.8} parent=0 // pred_fallthru
    _
  // Predicated region
  $region18: #{decoder_forward.8} parent=0 // pred_check
    _
  $region19: #{decoder_forward.8} parent=0 // pred_check_branch
    %21 = sbr.rel (0) target = $region21
  $region20: #{decoder_forward.8} parent=0 // pred_region
    _
  $region21: #{decoder_forward.8} parent=0 // pred_fallthru
    _
  // Predicated region
  $region22: #{decoder_forward.8} parent=0 // pred_check
    _
  $region23: #{decoder_forward.8} parent=0 // pred_check_branch
    %23 = sbr.rel (0) target = $region25
  $region24: #{decoder_forward.8} parent=0 // pred_region
    _
  $region25: #{decoder_forward.8} parent=0 // pred_fallthru
    _
  // Predicated region
  $region26: #{decoder_forward.8} parent=0 // pred_check
    _
  $region27: #{decoder_forward.8} parent=0 // pred_check_branch
    %25 = sbr.rel (0) target = $region29
  $region28: #{decoder_forward.8} parent=0 // pred_region
    _
  $region29: #{decoder_forward.8} parent=0 // pred_fallthru
    _
  %v27 = vld [vmem:[%s0] sm:$0xff]
  %v28 = vld [vmem:[%s0 + $0x8] sm:$0xff]
  %v29 = vpack.c.bf16 %v28, %v27
  %v30 = vld [vmem:[%s1] sm:$0xf]
  %v31 = vld [vmem:[%s1 + $0x4] sm:$0xf]
  %v32 = vld [vmem:[%s1 + $0x8] sm:$0xf]
  %v33 = vld [vmem:[%s1 + $0xc] sm:$0xf]
  %v34 = vld [vmem:[%s2] sm:$0x1]
  %v36 = vlaneseq
  %v37 = vshrl.u32 %v36, 7
  %v38 = vsub.s32 0, %v37
  %v39 = vrot.slane %v34, %v38
  %v45 = vunpack.c.l.b16 %v30
  %v46 = vunpack.c.l.b16 %v31
  %v47 = vunpack.c.l.b16 %v32
  %v48 = vunpack.c.l.b16 %v33
  %v49 = vpack.c.b16 %v46, %v45
  %v50 = vpack.c.b16 %v48, %v47
  %vm53 = vcmask 261120
  %v55 = vsel %vm53, %v29, 0
  %57 = vmatprep.subr.bf16.mxu0 0
  %58 = vmatpush1.bf16.msra.mxu0 0
  %59 = vmatprep.subr.bf16.mxu0 0
  %60 = vmatpush1.bf16.msra.mxu0 0
  %61 = vmatprep.subr.bf16.mxu0 0
  %62 = vmatpush1.bf16.msra.mxu0 0
  %63 = vmatprep.subr.bf16.mxu0 0
  %64 = vmatpush1.bf16.msra.mxu0 0
  %65 = vmatprep.subr.bf16.mxu0 0
  %66 = vmatpush1.bf16.msra.mxu0 0
  %67 = vmatprep.subr.bf16.mxu0 0
  %68 = vmatpush1.bf16.msra.mxu0 0
  %69 = vmatprep.subr.bf16.mxu0 0
  %70 = vmatpush1.bf16.msra.mxu0 %v50
  %71 = vmatprep.subr.bf16.mxu0 0
  %72 = vmatpush1.bf16.msra.mxu0 %v49
  %73 = vmatprep.subr.bf16.mxu0 0
  %74 = vmatpush2.bf16.msra.mxu0 0
  %75 = vmatprep.subr.bf16.mxu0 0
  %76 = vmatpush2.bf16.msra.mxu0 0
  %77 = vmatprep.subr.bf16.mxu0 0
  %78 = vmatpush2.bf16.msra.mxu0 0
  %79 = vmatprep.subr.bf16.mxu0 0
  %80 = vmatpush2.bf16.msra.mxu0 0
  %81 = vmatprep.subr.bf16.mxu0 0
  %82 = vmatpush2.bf16.msra.mxu0 0
  %83 = vmatprep.subr.bf16.mxu0 0
  %84 = vmatpush2.bf16.msra.mxu0 0
  %85 = vmatprep.subr.bf16.mxu0 0
  %86 = vmatpush2.bf16.msra.mxu0 0
  %87 = vmatprep.subr.bf16.mxu0 0
  %88 = vmatpush2.bf16.msra.mxu0 0
  %89 = vmatprep.mubr.bf16.mxu0 0
  %90 = vmatmul.mubr.bf16.gmra.mxu0 %v55
  %v91 = vpop.f32.mrf.mxu0
  %v92 = vadd.f32 %v39, %v91
  %v93 = vpop.f32.mrf.mxu0
  %v94 = vpop.f32.mrf.mxu0
  %v95 = vadd.f32 %v39, %v94
  %v96 = vpop.f32.mrf.mxu0
  %97 = vdwg.mxu0
  %v98 = vmax.f32 %v92, 0.0
  %v99 = vmax.f32 %v95, 0.0
  %v100 = vpack.c.bf16 %v99, %v98
  %v101 = vld [vmem:[%s3] sm:$0xf]
  %v102 = vld [vmem:[%s3 + $0x4] sm:$0xf]
  %v103 = vld [vmem:[%s3 + $0x8] sm:$0xf]
  %v104 = vld [vmem:[%s3 + $0xc] sm:$0xf]
  %v105 = vld [vmem:[%s3 + $0x10] sm:$0xf]
  %v106 = vld [vmem:[%s3 + $0x14] sm:$0xf]
  %v107 = vld [vmem:[%s3 + $0x18] sm:$0xf]
  %v108 = vld [vmem:[%s3 + $0x1c] sm:$0xf]
  %v109 = vld [vmem:[%s4] sm:$0x1]
  %v111 = vlaneseq
  %v112 = vshrl.u32 %v111, 7
  %v113 = vsub.s32 0, %v112
  %v114 = vrot.slane %v109, %v113
  %v124 = vunpack.c.l.b16 %v101
  %v125 = vunpack.c.l.b16 %v102
  %v126 = vunpack.c.l.b16 %v103
  %v127 = vunpack.c.l.b16 %v104
  %v128 = vunpack.c.l.b16 %v105
  %v129 = vunpack.c.l.b16 %v106
  %v130 = vunpack.c.l.b16 %v107
  %v131 = vunpack.c.l.b16 %v108
  %v132 = vpack.c.b16 %v125, %v124
  %v133 = vpack.c.b16 %v127, %v126
  %v134 = vpack.c.b16 %v129, %v128
  %v135 = vpack.c.b16 %v131, %v130
  %vm140 = vcmask 523264
  %v142 = vsel %vm140, %v100, 0
  %144 = vmatprep.subr.bf16.mxu0 0
  %145 = vmatpush1.bf16.msra.mxu0 0
  %146 = vmatprep.subr.bf16.mxu0 0
  %147 = vmatpush1.bf16.msra.mxu0 0
  %148 = vmatprep.subr.bf16.mxu0 0
  %149 = vmatpush1.bf16.msra.mxu0 0
  %150 = vmatprep.subr.bf16.mxu0 0
  %151 = vmatpush1.bf16.msra.mxu0 0
  %152 = vmatprep.subr.bf16.mxu0 0
  %153 = vmatpush1.bf16.msra.mxu0 %v135
  %154 = vmatprep.subr.bf16.mxu0 0
  %155 = vmatpush1.bf16.msra.mxu0 %v134
  %156 = vmatprep.subr.bf16.mxu0 0
  %157 = vmatpush1.bf16.msra.mxu0 %v133
  %158 = vmatprep.subr.bf16.mxu0 0
  %159 = vmatpush1.bf16.msra.mxu0 %v132
  %160 = vmatprep.subr.bf16.mxu0 0
  %161 = vmatpush2.bf16.msra.mxu0 0
  %162 = vmatprep.subr.bf16.mxu0 0
  %163 = vmatpush2.bf16.msra.mxu0 0
  %164 = vmatprep.subr.bf16.mxu0 0
  %165 = vmatpush2.bf16.msra.mxu0 0
  %166 = vmatprep.subr.bf16.mxu0 0
  %167 = vmatpush2.bf16.msra.mxu0 0
  %168 = vmatprep.subr.bf16.mxu0 0
  %169 = vmatpush2.bf16.msra.mxu0 0
  %170 = vmatprep.subr.bf16.mxu0 0
  %171 = vmatpush2.bf16.msra.mxu0 0
  %172 = vmatprep.subr.bf16.mxu0 0
  %173 = vmatpush2.bf16.msra.mxu0 0
  %174 = vmatprep.subr.bf16.mxu0 0
  %175 = vmatpush2.bf16.msra.mxu0 0
  %176 = vmatprep.mubr.bf16.mxu0 0
  %177 = vmatmul.mubr.bf16.gmra.mxu0 %v142
  %v178 = vpop.f32.mrf.mxu0
  %v179 = vadd.f32 %v114, %v178
  %v180 = vpop.f32.mrf.mxu0
  %v181 = vpop.f32.mrf.mxu0
  %v182 = vadd.f32 %v114, %v181
  %v183 = vpop.f32.mrf.mxu0
  %184 = vdwg.mxu0
  %v185 = vadd.f32 %v27, %v179
  %v186 = vadd.f32 %v28, %v182
  %v187 = vsel %vm53, %v185, 0.0
  %188 = vadd.xlane.f32.xlu0 %v187
  %v189 = vpop.xlane.xlu0 %188
  %v190 = vsel %vm53, %v186, 0.0
  %191 = vadd.xlane.f32.xlu0 %v190
  %v192 = vpop.xlane.xlu0 %191
  %v193 = vrcp.pop 32.0
  %v194 = vmul.f32 %v189, %v193
  %v195 = vmul.f32 %v192, %v193
  %v196 = vsub.f32 %v185, %v194
  %v197 = vsub.f32 %v186, %v195
  %v198 = vmul.f32 %v196, %v196
  %v199 = vmul.f32 %v197, %v197
  %v200 = vsel %vm53, %v198, 0.0
  %201 = vadd.xlane.f32.xlu0 %v200
  %v202 = vpop.xlane.xlu0 %201
  %v203 = vsel %vm53, %v199, 0.0
  %204 = vadd.xlane.f32.xlu0 %v203
  %v205 = vpop.xlane.xlu0 %204
  %v206 = vmul.f32 %v202, %v193
  %v207 = vmul.f32 %v205, %v193
  %v208 = vld [vmem:[%s5] sm:$0x1]
  %v210 = vlaneseq
  %v211 = vshrl.u32 %v210, 7
  %v212 = vsub.s32 0, %v211
  %v213 = vrot.slane %v208, %v212
  %v215 = vmul.f32 %v213, %v196
  %v216 = vmul.f32 %v213, %v197
  %v217 = vadd.f32 %v206, 1e-06
  %v218 = vadd.f32 %v207, 1e-06
  %v219 = vrsqrt.pop %v217
  %v220 = vrsqrt.pop %v218
  %v221 = vmul.f32 %v215, %v219
  %v222 = vmul.f32 %v216, %v220
  %v223 = vld [vmem:[%s6] sm:$0x1]
  %v225 = vlaneseq
  %v226 = vshrl.u32 %v225, 7
  %v227 = vsub.s32 0, %v226
  %v228 = vrot.slane %v223, %v227
  %v230 = vadd.f32 %v221, %v228
  %v231 = vadd.f32 %v222, %v228
  %232 = vst.msk [vmem:[%s7] sm:$0xff] %vm53, %v230
  %233 = vst.msk [vmem:[%s7 + $0x8] sm:$0xff] %vm53, %v231
  // Predicated region
  $region30: #{decoder_forward.8} parent=0 // pred_check
    _
  $region31: #{decoder_forward.8} parent=0 // pred_check_branch
    %235 = sbr.rel (0) target = $region33
  $region32: #{decoder_forward.8} parent=0 // pred_region
    _
  $region33: #{decoder_forward.8} parent=0 // pred_fallthru
    _
  // Predicated region
  $region34: #{decoder_forward.8} parent=0 // pred_check
    _
  $region35: #{decoder_forward.8} parent=0 // pred_check_branch
    %237 = sbr.rel (0) target = $region37
  $region36: #{decoder_forward.8} parent=0 // pred_region
    _
  $region37: #{decoder_forward.8} parent=0 // pred_fallthru
    _

// kernel: decoder_forward.7
$region0: #{decoder_forward.7}
  #allocation0 [shape = 'u32[]', space=smem, size = 0x4, offset = 0x4, fixed_abs, tag = 'smem constant byte address 0x4 - core index']
  #allocation1 [shape = 'u32[144,128]{1,0:T(1,128)}', space=vmem, size = 0x12000, scoped, tag = 'internal scratch']
  %s0 = inlined_call_operand.vmem [shape: f32[2,8,32], index: 0, kind: input, shape index: {}]
  %s1 = inlined_call_operand.vmem [shape: f32[2,10,32], index: 1, kind: input, shape index: {}]
  %s2 = inlined_call_operand.vmem [shape: bf16[2,8,10], index: 2, kind: input, shape index: {}]
  %s3 = inlined_call_operand.vmem [shape: bf16[32,32], index: 3, kind: input, shape index: {}]
  %s4 = inlined_call_operand.vmem [shape: f32[1,32], index: 4, kind: input, shape index: {}]
  %s5 = inlined_call_operand.vmem [shape: bf16[32,64], index: 5, kind: input, shape index: {}]
  %s6 = inlined_call_operand.vmem [shape: f32[1,64], index: 6, kind: input, shape index: {}]
  %s7 = inlined_call_operand.vmem [shape: bf16[32,32], index: 7, kind: input, shape index: {}]
  %s8 = inlined_call_operand.vmem [shape: f32[1,32], index: 8, kind: input, shape index: {}]
  %s9 = inlined_call_operand.vmem [shape: f32[1,32], index: 9, kind: input, shape index: {}]
  %s10 = inlined_call_operand.vmem [shape: f32[1,32], index: 10, kind: input, shape index: {}]
  %s11 = inlined_call_operand.vmem [shape: f32[2,8,32], index: 11, kind: output, shape index: {}]
  %s12 = sld [smem:[#allocation0]]
  $region77: #{decoder_forward.7} parent=0
    _
  %s14 = ssub.s32 1, %s12
  %s15 = scalar_select 0, %s14, %s12
  loop: start=0, step=1, limit=4
  $region2: #{decoder_forward.7} parent=0 // loop_pre_header
    _
  $region3: #{decoder_forward.7} parent=0 // loop_header
    %s17 = sphi 0, %s21
    %p18 = scmp.ge.s32.totalorder %s17, 4
    %s24 = sphi 0, %s36
    %s25 = sphi 0, %s32
    %s26 = sphi 0, %s24
    %s27 = sphi 0, %s25
    %s28 = sphi 0, %s26
    %s29 = sphi 0, %s27
    %s41 = sphi 0, %s43
    %s44 = sphi 0, %s41
    %s45 = sphi 0, %s44
    %s61 = sphi 0, %s45
    %s67 = sphi 0, %s69
    %s70 = sphi 0, %s67
    %s71 = sphi 0, %s70
    %s87 = sphi 0, %s71
    %s95 = sphi 0, %s97
    %s98 = sphi 0, %s95
    %s99 = sphi 0, %s98
    %s115 = sphi 0, %s99
    %s119 = sphi 0, %s119
    %s121 = sphi 0, %s119
    %s122 = sphi 0, %s121
    %s136 = sphi 0, %s122
    %s140 = sphi 0, %s140
    %s142 = sphi 0, %s140
    %s143 = sphi 0, %s142
    %s157 = sphi 0, %s143
    %s161 = sphi 0, %s161
    %s163 = sphi 0, %s161
    %s164 = sphi 0, %s163
    %s178 = sphi 0, %s164
    %s182 = sphi 0, %s182
    %s184 = sphi 0, %s182
    %s185 = sphi 0, %s184
    %s199 = sphi 0, %s185
    %s203 = sphi 0, %s203
    %s205 = sphi 0, %s203
    %s206 = sphi 0, %s205
    %s220 = sphi 0, %s206
    %s224 = sphi 0, %s224
    %s226 = sphi 0, %s224
    %s227 = sphi 0, %s226
    %s241 = sphi 0, %s227
    %s245 = sphi 0, %s245
    %s247 = sphi 0, %s245
    %s248 = sphi 0, %s247
    %s262 = sphi 0, %s248
    %s266 = sphi 0, %s266
    %s268 = sphi 0, %s266
    %s269 = sphi 0, %s268
    %s283 = sphi 0, %s269
    %s291 = sphi 0, %s293
    %s294 = sphi 0, %s291
    %s295 = sphi 0, %s294
    %s311 = sphi 0, %s295
  $region4: #{decoder_forward.7} parent=0 // loop_header_branch
    %20 = sbr.rel (%p18) target = $region8
  $region5: #{decoder_forward.7} parent=0 // loop_body
    %s22 = ssub.s32 %s17, 1
    %s23 = ssub.s32 %s17, 2
    %s30 = sadd.s32 1, %s25
    %p31 = scmp.ge.s32.totalorder %s30, 1
    %s32 = scalar_select %p31, 0, %s30
    %s33 = sadd.s32 1, %s24
    %s34 = scalar_select %p31, %s33, %s24
    %p35 = scmp.ge.s32.totalorder %s34, 2
    %s36 = scalar_select %p35, 0, %s34
    %s37 = ssub.s32 %s24, %s36
    %s38 = ssub.s32 %s25, %s32
    %s39 = sor.u32 %s37, %s38
    %p40 = scmp.eq.s32.totalorder %s39, 0
    %s42 = sadd.s32 %s41, 1
    %s43 = scalar_select %p40, %s41, %s42
    %p46 = pneg %p40
    %p47 = scmp.eq.s32.totalorder %s17, 1
    %p48 = por %p46, %p47
    %p49 = scmp.ne.s32.totalorder %s41, %s44
    %p50 = scmp.eq.s32.totalorder %s17, 0
    %p51 = por %p49, %p50
    %p52 = scmp.ne.s32.totalorder %s41, %s44
    %p53 = scmp.eq.s32.totalorder %s22, 1
    %p54 = por %p52, %p53
    %p55 = scmp.ne.s32.totalorder %s44, %s45
    %p56 = scmp.eq.s32.totalorder %s22, 0
    %p57 = por %p55, %p56
    %p58 = scmp.ne.s32.totalorder %s44, %s45
    %p59 = scmp.eq.s32.totalorder %s23, 1
    %p60 = por %p58, %p59
    %p62 = scmp.ne.s32.totalorder %s45, %s61
    %p63 = scmp.eq.s32.totalorder %s23, 0
    %p64 = por %p62, %p63
    %s65 = ssub.s32 %s24, %s36
    %p66 = scmp.eq.s32.totalorder %s65, 0
    %s68 = sadd.s32 %s67, 1
    %s69 = scalar_select %p66, %s67, %s68
    %p72 = pneg %p66
    %p73 = scmp.eq.s32.totalorder %s17, 1
    %p74 = por %p72, %p73
    %p75 = scmp.ne.s32.totalorder %s67, %s70
    %p76 = scmp.eq.s32.totalorder %s17, 0
    %p77 = por %p75, %p76
    %p78 = scmp.ne.s32.totalorder %s67, %s70
    %p79 = scmp.eq.s32.totalorder %s22, 1
    %p80 = por %p78, %p79
    %p81 = scmp.ne.s32.totalorder %s70, %s71
    %p82 = scmp.eq.s32.totalorder %s22, 0
    %p83 = por %p81, %p82
    %p84 = scmp.ne.s32.totalorder %s70, %s71
    %p85 = scmp.eq.s32.totalorder %s23, 1
    %p86 = por %p84, %p85
    %p88 = scmp.ne.s32.totalorder %s71, %s87
    %p89 = scmp.eq.s32.totalorder %s23, 0
    %p90 = por %p88, %p89
    %s91 = ssub.s32 %s24, %s36
    %s92 = ssub.s32 %s25, %s32
    %s93 = sor.u32 %s91, %s92
    %p94 = scmp.eq.s32.totalorder %s93, 0
    %s96 = sadd.s32 %s95, 1
    %s97 = scalar_select %p94, %s95, %s96
    %p100 = pneg %p94
    %p101 = scmp.eq.s32.totalorder %s17, 1
    %p102 = por %p100, %p101
    %p103 = scmp.ne.s32.totalorder %s95, %s98
    %p104 = scmp.eq.s32.totalorder %s17, 0
    %p105 = por %p103, %p104
    %p106 = scmp.ne.s32.totalorder %s95, %s98
    %p107 = scmp.eq.s32.totalorder %s22, 1
    %p108 = por %p106, %p107
    %p109 = scmp.ne.s32.totalorder %s98, %s99
    %p110 = scmp.eq.s32.totalorder %s22, 0
    %p111 = por %p109, %p110
    %p112 = scmp.ne.s32.totalorder %s98, %s99
    %p113 = scmp.eq.s32.totalorder %s23, 1
    %p114 = por %p112, %p113
    %p116 = scmp.ne.s32.totalorder %s99, %s115
    %p117 = scmp.eq.s32.totalorder %s23, 0
    %p118 = por %p116, %p117
    %s120 = sadd.s32 %s119, 1
    %p123 = scmp.eq.s32.totalorder %s17, 1
    %p124 = scmp.ne.s32.totalorder %s119, %s121
    %p125 = scmp.eq.s32.totalorder %s17, 0
    %p126 = por %p124, %p125
    %p127 = scmp.ne.s32.totalorder %s119, %s121
    %p128 = scmp.eq.s32.totalorder %s22, 1
    %p129 = por %p127, %p128
    %p130 = scmp.ne.s32.totalorder %s121, %s122
    %p131 = scmp.eq.s32.totalorder %s22, 0
    %p132 = por %p130, %p131
    %p133 = scmp.ne.s32.totalorder %s121, %s122
    %p134 = scmp.eq.s32.totalorder %s23, 1
    %p135 = por %p133, %p134
    %p137 = scmp.ne.s32.totalorder %s122, %s136
    %p138 = scmp.eq.s32.totalorder %s23, 0
    %p139 = por %p137, %p138
    %s141 = sadd.s32 %s140, 1
    %p144 = scmp.eq.s32.totalorder %s17, 1
    %p145 = scmp.ne.s32.totalorder %s140, %s142
    %p146 = scmp.eq.s32.totalorder %s17, 0
    %p147 = por %p145, %p146
    %p148 = scmp.ne.s32.totalorder %s140, %s142
    %p149 = scmp.eq.s32.totalorder %s22, 1
    %p150 = por %p148, %p149
    %p151 = scmp.ne.s32.totalorder %s142, %s143
    %p152 = scmp.eq.s32.totalorder %s22, 0
    %p153 = por %p151, %p152
    %p154 = scmp.ne.s32.totalorder %s142, %s143
    %p155 = scmp.eq.s32.totalorder %s23, 1
    %p156 = por %p154, %p155
    %p158 = scmp.ne.s32.totalorder %s143, %s157
    %p159 = scmp.eq.s32.totalorder %s23, 0
    %p160 = por %p158, %p159
    %s162 = sadd.s32 %s161, 1
    %p165 = scmp.eq.s32.totalorder %s17, 1
    %p166 = scmp.ne.s32.totalorder %s161, %s163
    %p167 = scmp.eq.s32.totalorder %s17, 0
    %p168 = por %p166, %p167
    %p169 = scmp.ne.s32.totalorder %s161, %s163
    %p170 = scmp.eq.s32.totalorder %s22, 1
    %p171 = por %p169, %p170
    %p172 = scmp.ne.s32.totalorder %s163, %s164
    %p173 = scmp.eq.s32.totalorder %s22, 0
    %p174 = por %p172, %p173
    %p175 = scmp.ne.s32.totalorder %s163, %s164
    %p176 = scmp.eq.s32.totalorder %s23, 1
    %p177 = por %p175, %p176
    %p179 = scmp.ne.s32.totalorder %s164, %s178
    %p180 = scmp.eq.s32.totalorder %s23, 0
    %p181 = por %p179, %p180
    %s183 = sadd.s32 %s182, 1
    %p186 = scmp.eq.s32.totalorder %s17, 1
    %p187 = scmp.ne.s32.totalorder %s182, %s184
    %p188 = scmp.eq.s32.totalorder %s17, 0
    %p189 = por %p187, %p188
    %p190 = scmp.ne.s32.totalorder %s182, %s184
    %p191 = scmp.eq.s32.totalorder %s22, 1
    %p192 = por %p190, %p191
    %p193 = scmp.ne.s32.totalorder %s184, %s185
    %p194 = scmp.eq.s32.totalorder %s22, 0
    %p195 = por %p193, %p194
    %p196 = scmp.ne.s32.totalorder %s184, %s185
    %p197 = scmp.eq.s32.totalorder %s23, 1
    %p198 = por %p196, %p197
    %p200 = scmp.ne.s32.totalorder %s185, %s199
    %p201 = scmp.eq.s32.totalorder %s23, 0
    %p202 = por %p200, %p201
    %s204 = sadd.s32 %s203, 1
    %p207 = scmp.eq.s32.totalorder %s17, 1
    %p208 = scmp.ne.s32.totalorder %s203, %s205
    %p209 = scmp.eq.s32.totalorder %s17, 0
    %p210 = por %p208, %p209
    %p211 = scmp.ne.s32.totalorder %s203, %s205
    %p212 = scmp.eq.s32.totalorder %s22, 1
    %p213 = por %p211, %p212
    %p214 = scmp.ne.s32.totalorder %s205, %s206
    %p215 = scmp.eq.s32.totalorder %s22, 0
    %p216 = por %p214, %p215
    %p217 = scmp.ne.s32.totalorder %s205, %s206
    %p218 = scmp.eq.s32.totalorder %s23, 1
    %p219 = por %p217, %p218
    %p221 = scmp.ne.s32.totalorder %s206, %s220
    %p222 = scmp.eq.s32.totalorder %s23, 0
    %p223 = por %p221, %p222
    %s225 = sadd.s32 %s224, 1
    %p228 = scmp.eq.s32.totalorder %s17, 1
    %p229 = scmp.ne.s32.totalorder %s224, %s226
    %p230 = scmp.eq.s32.totalorder %s17, 0
    %p231 = por %p229, %p230
    %p232 = scmp.ne.s32.totalorder %s224, %s226
    %p233 = scmp.eq.s32.totalorder %s22, 1
    %p234 = por %p232, %p233
    %p235 = scmp.ne.s32.totalorder %s226, %s227
    %p236 = scmp.eq.s32.totalorder %s22, 0
    %p237 = por %p235, %p236
    %p238 = scmp.ne.s32.totalorder %s226, %s227
    %p239 = scmp.eq.s32.totalorder %s23, 1
    %p240 = por %p238, %p239
    %p242 = scmp.ne.s32.totalorder %s227, %s241
    %p243 = scmp.eq.s32.totalorder %s23, 0
    %p244 = por %p242, %p243
    %s246 = sadd.s32 %s245, 1
    %p249 = scmp.eq.s32.totalorder %s17, 1
    %p250 = scmp.ne.s32.totalorder %s245, %s247
    %p251 = scmp.eq.s32.totalorder %s17, 0
    %p252 = por %p250, %p251
    %p253 = scmp.ne.s32.totalorder %s245, %s247
    %p254 = scmp.eq.s32.totalorder %s22, 1
    %p255 = por %p253, %p254
    %p256 = scmp.ne.s32.totalorder %s247, %s248
    %p257 = scmp.eq.s32.totalorder %s22, 0
    %p258 = por %p256, %p257
    %p259 = scmp.ne.s32.totalorder %s247, %s248
    %p260 = scmp.eq.s32.totalorder %s23, 1
    %p261 = por %p259, %p260
    %p263 = scmp.ne.s32.totalorder %s248, %s262
    %p264 = scmp.eq.s32.totalorder %s23, 0
    %p265 = por %p263, %p264
    %s267 = sadd.s32 %s266, 1
    %p270 = scmp.eq.s32.totalorder %s17, 1
    %p271 = scmp.ne.s32.totalorder %s266, %s268
    %p272 = scmp.eq.s32.totalorder %s17, 0
    %p273 = por %p271, %p272
    %p274 = scmp.ne.s32.totalorder %s266, %s268
    %p275 = scmp.eq.s32.totalorder %s22, 1
    %p276 = por %p274, %p275
    %p277 = scmp.ne.s32.totalorder %s268, %s269
    %p278 = scmp.eq.s32.totalorder %s22, 0
    %p279 = por %p277, %p278
    %p280 = scmp.ne.s32.totalorder %s268, %s269
    %p281 = scmp.eq.s32.totalorder %s23, 1
    %p282 = por %p280, %p281
    %p284 = scmp.ne.s32.totalorder %s269, %s283
    %p285 = scmp.eq.s32.totalorder %s23, 0
    %p286 = por %p284, %p285
    %s287 = ssub.s32 %s24, %s36
    %s288 = ssub.s32 %s25, %s32
    %s289 = sor.u32 %s287, %s288
    %p290 = scmp.eq.s32.totalorder %s289, 0
    %s292 = sadd.s32 %s291, 1
    %s293 = scalar_select %p290, %s291, %s292
    %p296 = pneg %p290
    %p297 = scmp.eq.s32.totalorder %s17, 1
    %p298 = por %p296, %p297
    %p299 = scmp.ne.s32.totalorder %s291, %s294
    %p300 = scmp.eq.s32.totalorder %s17, 0
    %p301 = por %p299, %p300
    %p302 = scmp.ne.s32.totalorder %s291, %s294
    %p303 = scmp.eq.s32.totalorder %s22, 1
    %p304 = por %p302, %p303
    %p305 = scmp.ne.s32.totalorder %s294, %s295
    %p306 = scmp.eq.s32.totalorder %s22, 0
    %p307 = por %p305, %p306
    %p308 = scmp.ne.s32.totalorder %s294, %s295
    %p309 = scmp.eq.s32.totalorder %s23, 1
    %p310 = por %p308, %p309
    %p312 = scmp.ne.s32.totalorder %s295, %s311
    %p313 = scmp.eq.s32.totalorder %s23, 0
    %p314 = por %p312, %p313
    %p315 = scmp.le.s32.totalorder 1, %s17
    %p316 = scmp.lt.s32.totalorder %s17, 3
    %p317 = pnand %p315, %p316
    %p318 = pneg %p317
    // Predicated region
    $region9: #{decoder_forward.7} parent=5 // pred_check
      _
    $region10: #{decoder_forward.7} parent=5 // pred_check_branch
      %320 = sbr.rel (%p317) target = $region12
    $region11: #{decoder_forward.7} parent=5 // pred_region
      %s321 = ssub.s32 %s17, 1
      // Predicated region
      $region13: #{decoder_forward.7} parent=11 // pred_check
        %p322 = pneg %p132
      $region14: #{decoder_forward.7} parent=11 // pred_check_branch
        %324 = sbr.rel (%p322) target = $region16
      $region15: #{decoder_forward.7} parent=11 // pred_region
        _
      $region16: #{decoder_forward.7} parent=11 // pred_fallthru
        _
      // Predicated region
      $region17: #{decoder_forward.7} parent=11 // pred_check
        %p325 = pneg %p153
      $region18: #{decoder_forward.7} parent=11 // pred_check_branch
        %327 = sbr.rel (%p325) target = $region20
      $region19: #{decoder_forward.7} parent=11 // pred_region
        _
      $region20: #{decoder_forward.7} parent=11 // pred_fallthru
        _
      // Predicated region
      $region21: #{decoder_forward.7} parent=11 // pred_check
        %p328 = pneg %p174
      $region22: #{decoder_forward.7} parent=11 // pred_check_branch
        %330 = sbr.rel (%p328) target = $region24
      $region23: #{decoder_forward.7} parent=11 // pred_region
        _
      $region24: #{decoder_forward.7} parent=11 // pred_fallthru
        _
      // Predicated region
      $region25: #{decoder_forward.7} parent=11 // pred_check
        %p331 = pneg %p195
      $region26: #{decoder_forward.7} parent=11 // pred_check_branch
        %333 = sbr.rel (%p331) target = $region28
      $region27: #{decoder_forward.7} parent=11 // pred_region
        _
      $region28: #{decoder_forward.7} parent=11 // pred_fallthru
        _
      // Predicated region
      $region29: #{decoder_forward.7} parent=11 // pred_check
        %p334 = pneg %p216
      $region30: #{decoder_forward.7} parent=11 // pred_check_branch
        %336 = sbr.rel (%p334) target = $region32
      $region31: #{decoder_forward.7} parent=11 // pred_region
        _
      $region32: #{decoder_forward.7} parent=11 // pred_fallthru
        _
      // Predicated region
      $region33: #{decoder_forward.7} parent=11 // pred_check
        %p337 = pneg %p237
      $region34: #{decoder_forward.7} parent=11 // pred_check_branch
        %339 = sbr.rel (%p337) target = $region36
      $region35: #{decoder_forward.7} parent=11 // pred_region
        _
      $region36: #{decoder_forward.7} parent=11 // pred_fallthru
        _
      // Predicated region
      $region37: #{decoder_forward.7} parent=11 // pred_check
        %p340 = pneg %p258
      $region38: #{decoder_forward.7} parent=11 // pred_check_branch
        %342 = sbr.rel (%p340) target = $region40
      $region39: #{decoder_forward.7} parent=11 // pred_region
        _
      $region40: #{decoder_forward.7} parent=11 // pred_fallthru
        _
      // Predicated region
      $region41: #{decoder_forward.7} parent=11 // pred_check
        %p343 = pneg %p279
      $region42: #{decoder_forward.7} parent=11 // pred_check_branch
        %345 = sbr.rel (%p343) target = $region44
      $region43: #{decoder_forward.7} parent=11 // pred_region
        _
      $region44: #{decoder_forward.7} parent=11 // pred_fallthru
        _
    $region12: #{decoder_forward.7} parent=5 // pred_fallthru
      _
    %p346 = scmp.lt.s32.totalorder %s17, 2
    // Predicated region
    $region45: #{decoder_forward.7} parent=5 // pred_check
      %p347 = pneg %p346
    $region46: #{decoder_forward.7} parent=5 // pred_check_branch
      %349 = sbr.rel (%p347) target = $region48
    $region47: #{decoder_forward.7} parent=5 // pred_region
      // Predicated region
      $region49: #{decoder_forward.7} parent=47 // pred_check
        %p350 = pneg %p51
      $region50: #{decoder_forward.7} parent=47 // pred_check_branch
        %352 = sbr.rel (%p350) target = $region52
      $region51: #{decoder_forward.7} parent=47 // pred_region
        %p353 = scmp.lt.s32.totalorder %s24, 1
        %s354 = scalar_select %p353, %s24, 1
        %p355 = scmp.lt.s32.totalorder %s25, 0
        %s356 = scalar_select %p355, %s25, 0
        %s357 = sadd.s32 %s356, %s354
        %s358 = smul.addr %s357, 8
        %s359 = scalar_lea.vmem %s0, %s358
      $region52: #{decoder_forward.7} parent=47 // pred_fallthru
        _
      // Predicated region
      $region53: #{decoder_forward.7} parent=47 // pred_check
        %p360 = pneg %p77
      $region54: #{decoder_forward.7} parent=47 // pred_check_branch
        %362 = sbr.rel (%p360) target = $region56
      $region55: #{decoder_forward.7} parent=47 // pred_region
        %p363 = scmp.lt.s32.totalorder %s24, 1
        %s364 = scalar_select %p363, %s24, 1
        %s365 = smul.addr %s364, 2
        %s366 = smul.addr %s365, 8
        %s367 = scalar_lea.vmem %s1, %s366
      $region56: #{decoder_forward.7} parent=47 // pred_fallthru
        _
      // Predicated region
      $region57: #{decoder_forward.7} parent=47 // pred_check
        %p368 = pneg %p105
      $region58: #{decoder_forward.7} parent=47 // pred_check_branch
        %370 = sbr.rel (%p368) target = $region60
      $region59: #{decoder_forward.7} parent=47 // pred_region
        %p371 = scmp.lt.s32.totalorder %s24, 1
        %s372 = scalar_select %p371, %s24, 1
        %p373 = scmp.lt.s32.totalorder %s25, 0
        %s374 = scalar_select %p373, %s25, 0
        %s375 = sadd.s32 %s374, %s372
        %s376 = smul.addr %s375, 4
        %s377 = scalar_lea.vmem %s2, %s376
      $region60: #{decoder_forward.7} parent=47 // pred_fallthru
        _
    $region48: #{decoder_forward.7} parent=5 // pred_fallthru
      _
    %p378 = scmp.le.s32.totalorder 1, %s17
    %p379 = scmp.lt.s32.totalorder %s17, 3
    %p380 = pnand %p378, %p379
    %p381 = pneg %p380
    // Predicated region
    $region61: #{decoder_forward.7} parent=5 // pred_check
      _
    $region62: #{decoder_forward.7} parent=5 // pred_check_branch
      %383 = sbr.rel (%p380) target = $region64
    $region63: #{decoder_forward.7} parent=5 // pred_region
      %s384 = ssub.s32 %s17, 1
      %p385 = scmp.lt.s32.totalorder %s26, 1
      %s386 = scalar_select %p385, %s26, 1
      %p387 = scmp.lt.s32.totalorder %s27, 0
      %s388 = scalar_select %p387, %s27, 0
      %s389 = sadd.s32 %s388, %s386
      %s390 = smul.addr %s389, 8
      %s391 = scalar_lea.vmem %s0, %s390
      %p392 = pneg %p57
      %p393 = pneg %p54
      %p394 = scmp.lt.s32.totalorder %s26, 1
      %s395 = scalar_select %p394, %s26, 1
      %s396 = smul.addr %s395, 2
      %s397 = smul.addr %s396, 8
      %s398 = scalar_lea.vmem %s1, %s397
      %p399 = pneg %p83
      %p400 = pneg %p80
      %p401 = scmp.lt.s32.totalorder %s26, 1
      %s402 = scalar_select %p401, %s26, 1
      %p403 = scmp.lt.s32.totalorder %s27, 0
      %s404 = scalar_select %p403, %s27, 0
      %s405 = sadd.s32 %s404, %s402
      %s406 = smul.addr %s405, 4
      %s407 = scalar_lea.vmem %s2, %s406
      %p408 = pneg %p111
      %p409 = pneg %p108
      %p410 = pneg %p132
      %p411 = pneg %p129
      %p412 = pneg %p153
      %p413 = pneg %p150
      %p414 = pneg %p174
      %p415 = pneg %p171
      %p416 = pneg %p195
      %p417 = pneg %p192
      %p418 = pneg %p216
      %p419 = pneg %p213
      %p420 = pneg %p237
      %p421 = pneg %p234
      %p422 = pneg %p258
      %p423 = pneg %p255
      %p424 = pneg %p279
      %p425 = pneg %p276
      %p426 = pneg %p307
      %p427 = pneg %p304
      %p428 = scmp.lt.s32.totalorder %s26, 1
      %s429 = scalar_select %p428, %s26, 1
      %p430 = scmp.lt.s32.totalorder %s27, 0
      %s431 = scalar_select %p430, %s27, 0
      %s432 = sadd.s32 %s431, %s429
      %s433 = smul.addr %s432, 8
      %s434 = scalar_lea.vmem %s11, %s433
      %p435 = scmp.lt.s32.totalorder %s26, 1
      %s436 = scalar_select %p435, %s26, 1
      %p437 = scmp.lt.s32.totalorder %s27, 0
      %s438 = scalar_select %p437, %s27, 0
      %s439 = sadd.s32 %s438, %s436
      %s440 = smul.addr %s439, 8
      %s441 = scalar_lea.vmem %s0, %s440
      %p442 = scmp.lt.s32.totalorder %s26, 1
      %s443 = scalar_select %p442, %s26, 1
      %s444 = smul.addr %s443, 2
      %s445 = smul.addr %s444, 8
      %s446 = scalar_lea.vmem %s1, %s445
      %p447 = scmp.lt.s32.totalorder %s26, 1
      %s448 = scalar_select %p447, %s26, 1
      %p449 = scmp.lt.s32.totalorder %s27, 0
      %s450 = scalar_select %p449, %s27, 0
      %s451 = sadd.s32 %s450, %s448
      %s452 = smul.addr %s451, 4
      %s453 = scalar_lea.vmem %s2, %s452
      %p454 = scmp.lt.s32.totalorder %s26, 1
      %s455 = scalar_select %p454, %s26, 1
      %p456 = scmp.lt.s32.totalorder %s27, 0
      %s457 = scalar_select %p456, %s27, 0
      %s458 = sadd.s32 %s457, %s455
      %s459 = smul.addr %s458, 8
      %s460 = scalar_lea.vmem %s11, %s459
      %v462 = vld [vmem:[%s441] sm:$0xff]
      %v463 = vpack.c.bf16 %v462, %v462
      %v464 = vld [vmem:[%s446] sm:$0xff]
      %v465 = vld [vmem:[%s446 + $0x8] sm:$0x3]
      %v466 = vpack.c.bf16 %v465, %v464
      %v467 = vld [vmem:[%s453] sm:$0xf]
      %v468 = vunpack.c.l.bf16 %v467
      %v469 = vld [vmem:[%s3] sm:$0xf]
      %v470 = vld [vmem:[%s3 + $0x4] sm:$0xf]
      %v471 = vld [vmem:[%s3 + $0x8] sm:$0xf]
      %v472 = vld [vmem:[%s3 + $0xc] sm:$0xf]
      %v473 = vld [vmem:[%s4] sm:$0x1]
      %v475 = vlaneseq
      %v476 = vshrl.u32 %v475, 7
      %v477 = vsub.s32 0, %v476
      %v478 = vrot.slane %v473, %v477
      %v484 = vunpack.c.l.b16 %v469
      %v485 = vunpack.c.l.b16 %v470
      %v486 = vunpack.c.l.b16 %v471
      %v487 = vunpack.c.l.b16 %v472
      %v488 = vpack.c.b16 %v485, %v484
      %v489 = vpack.c.b16 %v487, %v486
      %vm492 = vcmask 261120
      %v494 = vsel %vm492, %v463, 0
      %496 = vmatprep.subr.bf16.mxu0 0
      %497 = vmatpush1.bf16.msra.mxu0 0
      %498 = vmatprep.subr.bf16.mxu0 0
      %499 = vmatpush1.bf16.msra.mxu0 0
      %500 = vmatprep.subr.bf16.mxu0 0
      %501 = vmatpush1.bf16.msra.mxu0 0
      %502 = vmatprep.subr.bf16.mxu0 0
      %503 = vmatpush1.bf16.msra.mxu0 0
      %504 = vmatprep.subr.bf16.mxu0 0
      %505 = vmatpush1.bf16.msra.mxu0 0
      %506 = vmatprep.subr.bf16.mxu0 0
      %507 = vmatpush1.bf16.msra.mxu0 0
      %508 = vmatprep.subr.bf16.mxu0 0
      %509 = vmatpush1.bf16.msra.mxu0 %v489
      %510 = vmatprep.subr.bf16.mxu0 0
      %511 = vmatpush1.bf16.msra.mxu0 %v488
      %512 = vmatprep.subr.bf16.mxu0 0
      %513 = vmatpush2.bf16.msra.mxu0 0
      %514 = vmatprep.subr.bf16.mxu0 0
      %515 = vmatpush2.bf16.msra.mxu0 0
      %516 = vmatprep.subr.bf16.mxu0 0
      %517 = vmatpush2.bf16.msra.mxu0 0
      %518 = vmatprep.subr.bf16.mxu0 0
      %519 = vmatpush2.bf16.msra.mxu0 0
      %520 = vmatprep.subr.bf16.mxu0 0
      %521 = vmatpush2.bf16.msra.mxu0 0
      %522 = vmatprep.subr.bf16.mxu0 0
      %523 = vmatpush2.bf16.msra.mxu0 0
      %524 = vmatprep.subr.bf16.mxu0 0
      %525 = vmatpush2.bf16.msra.mxu0 0
      %526 = vmatprep.subr.bf16.mxu0 0
      %527 = vmatpush2.bf16.msra.mxu0 0
      %528 = vmatprep.mubr.bf16.mxu0 0
      %529 = vmatmul.mubr.bf16.gmra.mxu0 %v494
      %v530 = vpop.f32.mrf.mxu0
      %v531 = vadd.f32 %v478, %v530
      %v532 = vpop.f32.mrf.mxu0
      %v533 = vpop.f32.mrf.mxu0
      %v534 = vpop.f32.mrf.mxu0
      %535 = vdwg.mxu0
      %v536 = vld [vmem:[%s5] sm:$0xf]
      %v537 = vld [vmem:[%s5 + $0x4] sm:$0xf]
      %v538 = vld [vmem:[%s5 + $0x8] sm:$0xf]
      %v539 = vld [vmem:[%s5 + $0xc] sm:$0xf]
      %v540 = vld [vmem:[%s6] sm:$0x1]
      %v542 = vlaneseq
      %v543 = vshrl.u32 %v542, 7
      %v544 = vsub.s32 0, %v543
      %v545 = vrot.slane %v540, %v544
      %v551 = vunpack.c.l.b16 %v536
      %v552 = vunpack.c.l.b16 %v537
      %v553 = vunpack.c.l.b16 %v538
      %v554 = vunpack.c.l.b16 %v539
      %v555 = vpack.c.b16 %v552, %v551
      %v556 = vpack.c.b16 %v554, %v553
      %v560 = vsel %vm492, %v466, 0
      %562 = vmatprep.subr.bf16.mxu0 0
      %563 = vmatpush1.bf16.msra.mxu0 0
      %564 = vmatprep.subr.bf16.mxu0 0
      %565 = vmatpush1.bf16.msra.mxu0 0
      %566 = vmatprep.subr.bf16.mxu0 0
      %567 = vmatpush1.bf16.msra.mxu0 0
      %568 = vmatprep.subr.bf16.mxu0 0
      %569 = vmatpush1.bf16.msra.mxu0 0
      %570 = vmatprep.subr.bf16.mxu0 0
      %571 = vmatpush1.bf16.msra.mxu0 0
      %572 = vmatprep.subr.bf16.mxu0 0
      %573 = vmatpush1.bf16.msra.mxu0 0
      %574 = vmatprep.subr.bf16.mxu0 0
      %575 = vmatpush1.bf16.msra.mxu0 %v556
      %576 = vmatprep.subr.bf16.mxu0 0
      %577 = vmatpush1.bf16.msra.mxu0 %v555
      %578 = vmatprep.subr.bf16.mxu0 0
      %579 = vmatpush2.bf16.msra.mxu0 0
      %580 = vmatprep.subr.bf16.mxu0 0
      %581 = vmatpush2.bf16.msra.mxu0 0
      %582 = vmatprep.subr.bf16.mxu0 0
      %583 = vmatpush2.bf16.msra.mxu0 0
      %584 = vmatprep.subr.bf16.mxu0 0
      %585 = vmatpush2.bf16.msra.mxu0 0
      %586 = vmatprep.subr.bf16.mxu0 0
      %587 = vmatpush2.bf16.msra.mxu0 0
      %588 = vmatprep.subr.bf16.mxu0 0
      %589 = vmatpush2.bf16.msra.mxu0 0
      %590 = vmatprep.subr.bf16.mxu0 0
      %591 = vmatpush2.bf16.msra.mxu0 0
      %592 = vmatprep.subr.bf16.mxu0 0
      %593 = vmatpush2.bf16.msra.mxu0 0
      %594 = vmatprep.mubr.bf16.mxu0 0
      %595 = vmatmul.mubr.bf16.gmra.mxu0 %v560
      %v596 = vpop.f32.mrf.mxu0
      %v597 = vadd.f32 %v545, %v596
      %v598 = vpop.f32.mrf.mxu0
      %v599 = vpop.f32.mrf.mxu0
      %v600 = vadd.f32 %v545, %v599
      %v601 = vpop.f32.mrf.mxu0
      %602 = vdwg.mxu0
      %v603 = vpack.c.bf16 %v531, %v531
      %v604 = vpack.c.bf16 %v600, %v597
      %v605 = vld [vmem:[%s7] sm:$0xf]
      %v606 = vld [vmem:[%s7 + $0x4] sm:$0xf]
      %v607 = vld [vmem:[%s7 + $0x8] sm:$0xf]
      %v608 = vld [vmem:[%s7 + $0xc] sm:$0xf]
      %vm609 = vcmask 64512
      %v611 = vsel %vm609, %v603, 0
      %v614 = vsel %vm609, %v604, 0
      %616 = vmatprep.subr.bf16.mxu0 0
      %617 = vmatpush1.bf16.xpose.msra.mxu0 0
      %618 = vmatprep.subr.bf16.mxu0 0
      %619 = vmatpush1.bf16.xpose.msra.mxu0 0
      %620 = vmatprep.subr.bf16.mxu0 0
      %621 = vmatpush1.bf16.xpose.msra.mxu0 0
      %622 = vmatprep.subr.bf16.mxu0 0
      %623 = vmatpush1.bf16.xpose.msra.mxu0 0
      %624 = vmatprep.subr.bf16.mxu0 0
      %625 = vmatpush1.bf16.xpose.msra.mxu0 0
      %626 = vmatprep.subr.bf16.mxu0 0
      %627 = vmatpush1.bf16.xpose.msra.mxu0 0
      %628 = vmatprep.subr.bf16.mxu0 0
      %629 = vmatpush1.bf16.xpose.msra.mxu0 0
      %630 = vmatprep.subr.bf16.mxu0 0
      %631 = vmatpush1.bf16.xpose.msra.mxu0 %v614
      %632 = vmatprep.subr.bf16.mxu0 0
      %633 = vmatpush2.bf16.xpose.msra.mxu0 0
      %634 = vmatprep.subr.bf16.mxu0 0
      %635 = vmatpush2.bf16.xpose.msra.mxu0 0
      %636 = vmatprep.subr.bf16.mxu0 0
      %637 = vmatpush2.bf16.xpose.msra.mxu0 0
      %638 = vmatprep.subr.bf16.mxu0 0
      %639 = vmatpush2.bf16.xpose.msra.mxu0 0
      %640 = vmatprep.subr.bf16.mxu0 0
      %641 = vmatpush2.bf16.xpose.msra.mxu0 0
      %642 = vmatprep.subr.bf16.mxu0 0
      %643 = vmatpush2.bf16.xpose.msra.mxu0 0
      %644 = vmatprep.subr.bf16.mxu0 0
      %645 = vmatpush2.bf16.xpose.msra.mxu0 0
      %646 = vmatprep.subr.bf16.mxu0 0
      %647 = vmatpush2.bf16.xpose.msra.mxu0 0
      %648 = vmatprep.mubr.bf16.mxu0 0
      %649 = vmatmul.mubr.bf16.gmra.mxu0 %v611
      %v650 = vpop.f32.mrf.mxu0
      %v651 = vadd.f32 %v468, %v650
      %v652 = vpop.f32.mrf.mxu0
      %v653 = vpop.f32.mrf.mxu0
      %v654 = vpop.f32.mrf.mxu0
      %655 = vdwg.mxu0
      %vm656 = vcmask 80896
      %v657 = vsel %vm656, %v651, -inf
      %658 = vmax.xlane.f32.xlu0 %v657
      %v659 = vpop.xlane.xlu0 %658
      %v660 = vsub.f32 %v651, %v659
      %v661 = vmul.f32 %v660, 1.442695
      %v662 = vpow.pop %v661
      %v663 = vsel %vm656, %v662, 0.0
      %664 = vadd.xlane.f32.xlu0 %v663
      %v665 = vpop.xlane.xlu0 %664
      %v666 = vrcp.pop %v665
      %v667 = vpack.c.bf16 %v662, %v662
      %669 = vrot.lane.b32.xlu0 %v604, 96
      %v670 = vpop.permute.xlu0 %669
      %v672 = vsel %vm656, %v667, 0
      %vm674 = vcmask 1044480
      %v676 = vsel %vm674, %v670, 0
      %678 = vmatprep.subr.bf16.mxu0 0
      %679 = vmatpush1.bf16.msra.mxu0 0
      %680 = vmatprep.subr.bf16.mxu0 0
      %681 = vmatpush1.bf16.msra.mxu0 0
      %682 = vmatprep.subr.bf16.mxu0 0
      %683 = vmatpush1.bf16.msra.mxu0 0
      %684 = vmatprep.subr.bf16.mxu0 0
      %685 = vmatpush1.bf16.msra.mxu0 0
      %686 = vmatprep.subr.bf16.mxu0 0
      %687 = vmatpush1.bf16.msra.mxu0 0
      %688 = vmatprep.subr.bf16.mxu0 0
      %689 = vmatpush1.bf16.msra.mxu0 0
      %690 = vmatprep.subr.bf16.mxu0 0
      %691 = vmatpush1.bf16.msra.mxu0 0
      %692 = vmatprep.subr.bf16.mxu0 0
      %693 = vmatpush1.bf16.msra.mxu0 %v676
      %694 = vmatprep.subr.bf16.mxu0 0
      %695 = vmatpush2.bf16.msra.mxu0 0
      %696 = vmatprep.subr.bf16.mxu0 0
      %697 = vmatpush2.bf16.msra.mxu0 0
      %698 = vmatprep.subr.bf16.mxu0 0
      %699 = vmatpush2.bf16.msra.mxu0 0
      %700 = vmatprep.subr.bf16.mxu0 0
      %701 = vmatpush2.bf16.msra.mxu0 0
      %702 = vmatprep.subr.bf16.mxu0 0
      %703 = vmatpush2.bf16.msra.mxu0 0
      %704 = vmatprep.subr.bf16.mxu0 0
      %705 = vmatpush2.bf16.msra.mxu0 0
      %706 = vmatprep.subr.bf16.mxu0 0
      %707 = vmatpush2.bf16.msra.mxu0 0
      %708 = vmatprep.subr.bf16.mxu0 0
      %709 = vmatpush2.bf16.msra.mxu0 0
      %710 = vmatprep.mubr.bf16.mxu0 0
      %711 = vmatmul.mubr.bf16.gmra.mxu0 %v672
      %v712 = vpop.f32.mrf.mxu0
      %v713 = vadd.f32 0.0, %v712
      %v714 = vpop.f32.mrf.mxu0
      %v715 = vpop.f32.mrf.mxu0
      %v716 = vpop.f32.mrf.mxu0
      %717 = vdwg.mxu0
      %v718 = vmul.f32 %v713, %v666
      %v719 = vpack.c.bf16 %v718, %v718
      %721 = vrot.lane.b32.xlu0 %v603, 120
      %v722 = vpop.permute.xlu0 %721
      %723 = vrot.lane.b32.xlu0 %v604, 120
      %v724 = vpop.permute.xlu0 %723
      %v726 = vsel %vm609, %v722, 0
      %v729 = vsel %vm609, %v724, 0
      %731 = vmatprep.subr.bf16.mxu0 0
      %732 = vmatpush1.bf16.xpose.msra.mxu0 0
      %733 = vmatprep.subr.bf16.mxu0 0
      %734 = vmatpush1.bf16.xpose.msra.mxu0 0
      %735 = vmatprep.subr.bf16.mxu0 0
      %736 = vmatpush1.bf16.xpose.msra.mxu0 0
      %737 = vmatprep.subr.bf16.mxu0 0
      %738 = vmatpush1.bf16.xpose.msra.mxu0 0
      %739 = vmatprep.subr.bf16.mxu0 0
      %740 = vmatpush1.bf16.xpose.msra.mxu0 0
      %741 = vmatprep.subr.bf16.mxu0 0
      %742 = vmatpush1.bf16.xpose.msra.mxu0 0
      %743 = vmatprep.subr.bf16.mxu0 0
      %744 = vmatpush1.bf16.xpose.msra.mxu0 0
      %745 = vmatprep.subr.bf16.mxu0 0
      %746 = vmatpush1.bf16.xpose.msra.mxu0 %v729
      %747 = vmatprep.subr.bf16.mxu0 0
      %748 = vmatpush2.bf16.xpose.msra.mxu0 0
      %749 = vmatprep.subr.bf16.mxu0 0
      %750 = vmatpush2.bf16.xpose.msra.mxu0 0
      %751 = vmatprep.subr.bf16.mxu0 0
      %752 = vmatpush2.bf16.xpose.msra.mxu0 0
      %753 = vmatprep.subr.bf16.mxu0 0
      %754 = vmatpush2.bf16.xpose.msra.mxu0 0
      %755 = vmatprep.subr.bf16.mxu0 0
      %756 = vmatpush2.bf16.xpose.msra.mxu0 0
      %757 = vmatprep.subr.bf16.mxu0 0
      %758 = vmatpush2.bf16.xpose.msra.mxu0 0
      %759 = vmatprep.subr.bf16.mxu0 0
      %760 = vmatpush2.bf16.xpose.msra.mxu0 0
      %761 = vmatprep.subr.bf16.mxu0 0
      %762 = vmatpush2.bf16.xpose.msra.mxu0 0
      %763 = vmatprep.mubr.bf16.mxu0 0
      %764 = vmatmul.mubr.bf16.gmra.mxu0 %v726
      %v765 = vpop.f32.mrf.mxu0
      %v766 = vadd.f32 %v468, %v765
      %v767 = vpop.f32.mrf.mxu0
      %v768 = vpop.f32.mrf.mxu0
      %v769 = vpop.f32.mrf.mxu0
      %770 = vdwg.mxu0
      %v771 = vsel %vm656, %v766, -inf
      %772 = vmax.xlane.f32.xlu0 %v771
      %v773 = vpop.xlane.xlu0 %772
      %v774 = vsub.f32 %v766, %v773
      %v775 = vmul.f32 %v774, 1.442695
      %v776 = vpow.pop %v775
      %v777 = vsel %vm656, %v776, 0.0
      %778 = vadd.xlane.f32.xlu0 %v777
      %v779 = vpop.xlane.xlu0 %778
      %v780 = vrcp.pop %v779
      %v781 = vpack.c.bf16 %v776, %v776
      %782 = vrot.lane.b32.xlu0 %v604, 88
      %v783 = vpop.permute.xlu0 %782
      %v785 = vsel %vm656, %v781, 0
      %v788 = vsel %vm674, %v783, 0
      %790 = vmatprep.subr.bf16.mxu0 0
      %791 = vmatpush1.bf16.msra.mxu0 0
      %792 = vmatprep.subr.bf16.mxu0 0
      %793 = vmatpush1.bf16.msra.mxu0 0
      %794 = vmatprep.subr.bf16.mxu0 0
      %795 = vmatpush1.bf16.msra.mxu0 0
      %796 = vmatprep.subr.bf16.mxu0 0
      %797 = vmatpush1.bf16.msra.mxu0 0
      %798 = vmatprep.subr.bf16.mxu0 0
      %799 = vmatpush1.bf16.msra.mxu0 0
      %800 = vmatprep.subr.bf16.mxu0 0
      %801 = vmatpush1.bf16.msra.mxu0 0
      %802 = vmatprep.subr.bf16.mxu0 0
      %803 = vmatpush1.bf16.msra.mxu0 0
      %804 = vmatprep.subr.bf16.mxu0 0
      %805 = vmatpush1.bf16.msra.mxu0 %v788
      %806 = vmatprep.subr.bf16.mxu0 0
      %807 = vmatpush2.bf16.msra.mxu0 0
      %808 = vmatprep.subr.bf16.mxu0 0
      %809 = vmatpush2.bf16.msra.mxu0 0
      %810 = vmatprep.subr.bf16.mxu0 0
      %811 = vmatpush2.bf16.msra.mxu0 0
      %812 = vmatprep.subr.bf16.mxu0 0
      %813 = vmatpush2.bf16.msra.mxu0 0
      %814 = vmatprep.subr.bf16.mxu0 0
      %815 = vmatpush2.bf16.msra.mxu0 0
      %816 = vmatprep.subr.bf16.mxu0 0
      %817 = vmatpush2.bf16.msra.mxu0 0
      %818 = vmatprep.subr.bf16.mxu0 0
      %819 = vmatpush2.bf16.msra.mxu0 0
      %820 = vmatprep.subr.bf16.mxu0 0
      %821 = vmatpush2.bf16.msra.mxu0 0
      %822 = vmatprep.mubr.bf16.mxu0 0
      %823 = vmatmul.mubr.bf16.gmra.mxu0 %v785
      %v824 = vpop.f32.mrf.mxu0
      %v825 = vadd.f32 0.0, %v824
      %v826 = vpop.f32.mrf.mxu0
      %v827 = vpop.f32.mrf.mxu0
      %v828 = vpop.f32.mrf.mxu0
      %829 = vdwg.mxu0
      %v830 = vmul.f32 %v825, %v780
      %v831 = vpack.c.bf16 %v830, %v830
      %v833 = vsel %vm609, %v831, 0
      %vm835 = vcmask 1043456
      %v837 = vsel %vm835, %v606, 0
      %839 = vmatprep.subr.bf16.mxu0 0
      %840 = vmatpush1.bf16.msra.mxu0 0
      %841 = vmatprep.subr.bf16.mxu0 0
      %842 = vmatpush1.bf16.msra.mxu0 0
      %843 = vmatprep.subr.bf16.mxu0 0
      %844 = vmatpush1.bf16.msra.mxu0 0
      %845 = vmatprep.subr.bf16.mxu0 0
      %846 = vmatpush1.bf16.msra.mxu0 0
      %847 = vmatprep.subr.bf16.mxu0 0
      %848 = vmatpush1.bf16.msra.mxu0 0
      %849 = vmatprep.subr.bf16.mxu0 0
      %850 = vmatpush1.bf16.msra.mxu0 0
      %851 = vmatprep.subr.bf16.mxu0 0
      %852 = vmatpush1.bf16.msra.mxu0 0
      %853 = vmatprep.subr.bf16.mxu0 0
      %854 = vmatpush1.bf16.msra.mxu0 %v837
      %855 = vmatprep.subr.bf16.mxu0 0
      %856 = vmatpush2.bf16.msra.mxu0 0
      %857 = vmatprep.subr.bf16.mxu0 0
      %858 = vmatpush2.bf16.msra.mxu0 0
      %859 = vmatprep.subr.bf16.mxu0 0
      %860 = vmatpush2.bf16.msra.mxu0 0
      %861 = vmatprep.subr.bf16.mxu0 0
      %862 = vmatpush2.bf16.msra.mxu0 0
      %863 = vmatprep.subr.bf16.mxu0 0
      %864 = vmatpush2.bf16.msra.mxu0 0
      %865 = vmatprep.subr.bf16.mxu0 0
      %866 = vmatpush2.bf16.msra.mxu0 0
      %867 = vmatprep.subr.bf16.mxu0 0
      %868 = vmatpush2.bf16.msra.mxu0 0
      %869 = vmatprep.subr.bf16.mxu0 0
      %870 = vmatpush2.bf16.msra.mxu0 0
      %871 = vmatprep.mubr.bf16.mxu0 0
      %872 = vmatmul.mubr.bf16.gmra.mxu0 %v833
      %v873 = vpop.f32.mrf.mxu0
      %v874 = vadd.f32 0.0, %v873
      %v875 = vpop.f32.mrf.mxu0
      %v876 = vpop.f32.mrf.mxu0
      %v877 = vpop.f32.mrf.mxu0
      %878 = vdwg.mxu0
      %v880 = vsel %vm609, %v719, 0
      %v883 = vsel %vm835, %v605, 0
      %885 = vmatprep.subr.bf16.mxu0 0
      %886 = vmatpush1.bf16.msra.mxu0 0
      %887 = vmatprep.subr.bf16.mxu0 0
      %888 = vmatpush1.bf16.msra.mxu0 0
      %889 = vmatprep.subr.bf16.mxu0 0
      %890 = vmatpush1.bf16.msra.mxu0 0
      %891 = vmatprep.subr.bf16.mxu0 0
      %892 = vmatpush1.bf16.msra.mxu0 0
      %893 = vmatprep.subr.bf16.mxu0 0
      %894 = vmatpush1.bf16.msra.mxu0 0
      %895 = vmatprep.subr.bf16.mxu0 0
      %896 = vmatpush1.bf16.msra.mxu0 0
      %897 = vmatprep.subr.bf16.mxu0 0
      %898 = vmatpush1.bf16.msra.mxu0 0
      %899 = vmatprep.subr.bf16.mxu0 0
      %900 = vmatpush1.bf16.msra.mxu0 %v883
      %901 = vmatprep.subr.bf16.mxu0 0
      %902 = vmatpush2.bf16.msra.mxu0 0
      %903 = vmatprep.subr.bf16.mxu0 0
      %904 = vmatpush2.bf16.msra.mxu0 0
      %905 = vmatprep.subr.bf16.mxu0 0
      %906 = vmatpush2.bf16.msra.mxu0 0
      %907 = vmatprep.subr.bf16.mxu0 0
      %908 = vmatpush2.bf16.msra.mxu0 0
      %909 = vmatprep.subr.bf16.mxu0 0
      %910 = vmatpush2.bf16.msra.mxu0 0
      %911 = vmatprep.subr.bf16.mxu0 0
      %912 = vmatpush2.bf16.msra.mxu0 0
      %913 = vmatprep.subr.bf16.mxu0 0
      %914 = vmatpush2.bf16.msra.mxu0 0
      %915 = vmatprep.subr.bf16.mxu0 0
      %916 = vmatpush2.bf16.msra.mxu0 0
      %917 = vmatprep.mubr.bf16.mxu0 0
      %918 = vmatmul.mubr.bf16.gmra.mxu0 %v880
      %v919 = vpop.f32.mrf.mxu0
      %v920 = vadd.f32 %v874, %v919
      %v921 = vpop.f32.mrf.mxu0
      %v922 = vpop.f32.mrf.mxu0
      %v923 = vpop.f32.mrf.mxu0
      %924 = vdwg.mxu0
      %925 = vrot.lane.b32.xlu0 %v603, 112
      %v926 = vpop.permute.xlu0 %925
      %927 = vrot.lane.b32.xlu0 %v604, 112
      %v928 = vpop.permute.xlu0 %927
      %v930 = vsel %vm609, %v926, 0
      %v933 = vsel %vm609, %v928, 0
      %935 = vmatprep.subr.bf16.mxu0 0
      %936 = vmatpush1.bf16.xpose.msra.mxu0 0
      %937 = vmatprep.subr.bf16.mxu0 0
      %938 = vmatpush1.bf16.xpose.msra.mxu0 0
      %939 = vmatprep.subr.bf16.mxu0 0
      %940 = vmatpush1.bf16.xpose.msra.mxu0 0
      %941 = vmatprep.subr.bf16.mxu0 0
      %942 = vmatpush1.bf16.xpose.msra.mxu0 0
      %943 = vmatprep.subr.bf16.mxu0 0
      %944 = vmatpush1.bf16.xpose.msra.mxu0 0
      %945 = vmatprep.subr.bf16.mxu0 0
      %946 = vmatpush1.bf16.xpose.msra.mxu0 0
      %947 = vmatprep.subr.bf16.mxu0 0
      %948 = vmatpush1.bf16.xpose.msra.mxu0 0
      %949 = vmatprep.subr.bf16.mxu0 0
      %950 = vmatpush1.bf16.xpose.msra.mxu0 %v933
      %951 = vmatprep.subr.bf16.mxu0 0
      %952 = vmatpush2.bf16.xpose.msra.mxu0 0
      %953 = vmatprep.subr.bf16.mxu0 0
      %954 = vmatpush2.bf16.xpose.msra.mxu0 0
      %955 = vmatprep.subr.bf16.mxu0 0
      %956 = vmatpush2.bf16.xpose.msra.mxu0 0
      %957 = vmatprep.subr.bf16.mxu0 0
      %958 = vmatpush2.bf16.xpose.msra.mxu0 0
      %959 = vmatprep.subr.bf16.mxu0 0
      %960 = vmatpush2.bf16.xpose.msra.mxu0 0
      %961 = vmatprep.subr.bf16.mxu0 0
      %962 = vmatpush2.bf16.xpose.msra.mxu0 0
      %963 = vmatprep.subr.bf16.mxu0 0
      %964 = vmatpush2.bf16.xpose.msra.mxu0 0
      %965 = vmatprep.subr.bf16.mxu0 0
      %966 = vmatpush2.bf16.xpose.msra.mxu0 0
      %967 = vmatprep.mubr.bf16.mxu0 0
      %968 = vmatmul.mubr.bf16.gmra.mxu0 %v930
      %v969 = vpop.f32.mrf.mxu0
      %v970 = vadd.f32 %v468, %v969
      %v971 = vpop.f32.mrf.mxu0
      %v972 = vpop.f32.mrf.mxu0
      %v973 = vpop.f32.mrf.mxu0
      %974 = vdwg.mxu0
      %v975 = vsel %vm656, %v970, -inf
      %976 = vmax.xlane.f32.xlu0 %v975
      %v977 = vpop.xlane.xlu0 %976
      %v978 = vsub.f32 %v970, %v977
      %v979 = vmul.f32 %v978, 1.442695
      %v980 = vpow.pop %v979
      %v981 = vsel %vm656, %v980, 0.0
      %982 = vadd.xlane.f32.xlu0 %v981
      %v983 = vpop.xlane.xlu0 %982
      %v984 = vrcp.pop %v983
      %v985 = vpack.c.bf16 %v980, %v980
      %986 = vrot.lane.b32.xlu0 %v604, 80
      %v987 = vpop.permute.xlu0 %986
      %v989 = vsel %vm656, %v985, 0
      %v992 = vsel %vm674, %v987, 0
      %994 = vmatprep.subr.bf16.mxu0 0
      %995 = vmatpush1.bf16.msra.mxu0 0
      %996 = vmatprep.subr.bf16.mxu0 0
      %997 = vmatpush1.bf16.msra.mxu0 0
      %998 = vmatprep.subr.bf16.mxu0 0
      %999 = vmatpush1.bf16.msra.mxu0 0
      %1000 = vmatprep.subr.bf16.mxu0 0
      %1001 = vmatpush1.bf16.msra.mxu0 0
      %1002 = vmatprep.subr.bf16.mxu0 0
      %1003 = vmatpush1.bf16.msra.mxu0 0
      %1004 = vmatprep.subr.bf16.mxu0 0
      %1005 = vmatpush1.bf16.msra.mxu0 0
      %1006 = vmatprep.subr.bf16.mxu0 0
      %1007 = vmatpush1.bf16.msra.mxu0 0
      %1008 = vmatprep.subr.bf16.mxu0 0
      %1009 = vmatpush1.bf16.msra.mxu0 %v992
      %1010 = vmatprep.subr.bf16.mxu0 0
      %1011 = vmatpush2.bf16.msra.mxu0 0
      %1012 = vmatprep.subr.bf16.mxu0 0
      %1013 = vmatpush2.bf16.msra.mxu0 0
      %1014 = vmatprep.subr.bf16.mxu0 0
      %1015 = vmatpush2.bf16.msra.mxu0 0
      %1016 = vmatprep.subr.bf16.mxu0 0
      %1017 = vmatpush2.bf16.msra.mxu0 0
      %1018 = vmatprep.subr.bf16.mxu0 0
      %1019 = vmatpush2.bf16.msra.mxu0 0
      %1020 = vmatprep.subr.bf16.mxu0 0
      %1021 = vmatpush2.bf16.msra.mxu0 0
      %1022 = vmatprep.subr.bf16.mxu0 0
      %1023 = vmatpush2.bf16.msra.mxu0 0
      %1024 = vmatprep.subr.bf16.mxu0 0
      %1025 = vmatpush2.bf16.msra.mxu0 0
      %1026 = vmatprep.mubr.bf16.mxu0 0
      %1027 = vmatmul.mubr.bf16.gmra.mxu0 %v989
      %v1028 = vpop.f32.mrf.mxu0
      %v1029 = vadd.f32 0.0, %v1028
      %v1030 = vpop.f32.mrf.mxu0
      %v1031 = vpop.f32.mrf.mxu0
      %v1032 = vpop.f32.mrf.mxu0
      %1033 = vdwg.mxu0
      %v1034 = vmul.f32 %v1029, %v984
      %v1035 = vpack.c.bf16 %v1034, %v1034
      %v1037 = vsel %vm609, %v1035, 0
      %v1040 = vsel %vm835, %v607, 0
      %1042 = vmatprep.subr.bf16.mxu0 0
      %1043 = vmatpush1.bf16.msra.mxu0 0
      %1044 = vmatprep.subr.bf16.mxu0 0
      %1045 = vmatpush1.bf16.msra.mxu0 0
      %1046 = vmatprep.subr.bf16.mxu0 0
      %1047 = vmatpush1.bf16.msra.mxu0 0
      %1048 = vmatprep.subr.bf16.mxu0 0
      %1049 = vmatpush1.bf16.msra.mxu0 0
      %1050 = vmatprep.subr.bf16.mxu0 0
      %1051 = vmatpush1.bf16.msra.mxu0 0
      %1052 = vmatprep.subr.bf16.mxu0 0
      %1053 = vmatpush1.bf16.msra.mxu0 0
      %1054 = vmatprep.subr.bf16.mxu0 0
      %1055 = vmatpush1.bf16.msra.mxu0 0
      %1056 = vmatprep.subr.bf16.mxu0 0
      %1057 = vmatpush1.bf16.msra.mxu0 %v1040
      %1058 = vmatprep.subr.bf16.mxu0 0
      %1059 = vmatpush2.bf16.msra.mxu0 0
      %1060 = vmatprep.subr.bf16.mxu0 0
      %1061 = vmatpush2.bf16.msra.mxu0 0
      %1062 = vmatprep.subr.bf16.mxu0 0
      %1063 = vmatpush2.bf16.msra.mxu0 0
      %1064 = vmatprep.subr.bf16.mxu0 0
      %1065 = vmatpush2.bf16.msra.mxu0 0
      %1066 = vmatprep.subr.bf16.mxu0 0
      %1067 = vmatpush2.bf16.msra.mxu0 0
      %1068 = vmatprep.subr.bf16.mxu0 0
      %1069 = vmatpush2.bf16.msra.mxu0 0
      %1070 = vmatprep.subr.bf16.mxu0 0
      %1071 = vmatpush2.bf16.msra.mxu0 0
      %1072 = vmatprep.subr.bf16.mxu0 0
      %1073 = vmatpush2.bf16.msra.mxu0 0
      %1074 = vmatprep.mubr.bf16.mxu0 0
      %1075 = vmatmul.mubr.bf16.gmra.mxu0 %v1037
      %v1076 = vpop.f32.mrf.mxu0
      %v1077 = vadd.f32 0.0, %v1076
      %v1078 = vpop.f32.mrf.mxu0
      %v1079 = vpop.f32.mrf.mxu0
      %v1080 = vpop.f32.mrf.mxu0
      %1081 = vdwg.mxu0
      %v1082 = vadd.f32 %v920, %v1077
      %1083 = vrot.lane.b32.xlu0 %v603, 104
      %v1084 = vpop.permute.xlu0 %1083
      %1085 = vrot.lane.b32.xlu0 %v604, 104
      %v1086 = vpop.permute.xlu0 %1085
      %v1088 = vsel %vm609, %v1084, 0
      %v1091 = vsel %vm609, %v1086, 0
      %1093 = vmatprep.subr.bf16.mxu0 0
      %1094 = vmatpush1.bf16.xpose.msra.mxu0 0
      %1095 = vmatprep.subr.bf16.mxu0 0
      %1096 = vmatpush1.bf16.xpose.msra.mxu0 0
      %1097 = vmatprep.subr.bf16.mxu0 0
      %1098 = vmatpush1.bf16.xpose.msra.mxu0 0
      %1099 = vmatprep.subr.bf16.mxu0 0
      %1100 = vmatpush1.bf16.xpose.msra.mxu0 0
      %1101 = vmatprep.subr.bf16.mxu0 0
      %1102 = vmatpush1.bf16.xpose.msra.mxu0 0
      %1103 = vmatprep.subr.bf16.mxu0 0
      %1104 = vmatpush1.bf16.xpose.msra.mxu0 0
      %1105 = vmatprep.subr.bf16.mxu0 0
      %1106 = vmatpush1.bf16.xpose.msra.mxu0 0
      %1107 = vmatprep.subr.bf16.mxu0 0
      %1108 = vmatpush1.bf16.xpose.msra.mxu0 %v1091
      %1109 = vmatprep.subr.bf16.mxu0 0
      %1110 = vmatpush2.bf16.xpose.msra.mxu0 0
      %1111 = vmatprep.subr.bf16.mxu0 0
      %1112 = vmatpush2.bf16.xpose.msra.mxu0 0
      %1113 = vmatprep.subr.bf16.mxu0 0
      %1114 = vmatpush2.bf16.xpose.msra.mxu0 0
      %1115 = vmatprep.subr.bf16.mxu0 0
      %1116 = vmatpush2.bf16.xpose.msra.mxu0 0
      %1117 = vmatprep.subr.bf16.mxu0 0
      %1118 = vmatpush2.bf16.xpose.msra.mxu0 0
      %1119 = vmatprep.subr.bf16.mxu0 0
      %1120 = vmatpush2.bf16.xpose.msra.mxu0 0
      %1121 = vmatprep.subr.bf16.mxu0 0
      %1122 = vmatpush2.bf16.xpose.msra.mxu0 0
      %1123 = vmatprep.subr.bf16.mxu0 0
      %1124 = vmatpush2.bf16.xpose.msra.mxu0 0
      %1125 = vmatprep.mubr.bf16.mxu0 0
      %1126 = vmatmul.mubr.bf16.gmra.mxu0 %v1088
      %v1127 = vpop.f32.mrf.mxu0
      %v1128 = vadd.f32 %v468, %v1127
      %v1129 = vpop.f32.mrf.mxu0
      %v1130 = vpop.f32.mrf.mxu0
      %v1131 = vpop.f32.mrf.mxu0
      %1132 = vdwg.mxu0
      %v1133 = vsel %vm656, %v1128, -inf
      %1134 = vmax.xlane.f32.xlu0 %v1133
      %v1135 = vpop.xlane.xlu0 %1134
      %v1136 = vsub.f32 %v1128, %v1135
      %v1137 = vmul.f32 %v1136, 1.442695
      %v1138 = vpow.pop %v1137
      %v1139 = vsel %vm656, %v1138, 0.0
      %1140 = vadd.xlane.f32.xlu0 %v1139
      %v1141 = vpop.xlane.xlu0 %1140
      %v1142 = vrcp.pop %v1141
      %v1143 = vpack.c.bf16 %v1138, %v1138
      %1144 = vrot.lane.b32.xlu0 %v604, 72
      %v1145 = vpop.permute.xlu0 %1144
      %v1147 = vsel %vm656, %v1143, 0
      %v1150 = vsel %vm674, %v1145, 0
      %1152 = vmatprep.subr.bf16.mxu0 0
      %1153 = vmatpush1.bf16.msra.mxu0 0
      %1154 = vmatprep.subr.bf16.mxu0 0
      %1155 = vmatpush1.bf16.msra.mxu0 0
      %1156 = vmatprep.subr.bf16.mxu0 0
      %1157 = vmatpush1.bf16.msra.mxu0 0
      %1158 = vmatprep.subr.bf16.mxu0 0
      %1159 = vmatpush1.bf16.msra.mxu0 0
      %1160 = vmatprep.subr.bf16.mxu0 0
      %1161 = vmatpush1.bf16.msra.mxu0 0
      %1162 = vmatprep.subr.bf16.mxu0 0
      %1163 = vmatpush1.bf16.msra.mxu0 0
      %1164 = vmatprep.subr.bf16.mxu0 0
      %1165 = vmatpush1.bf16.msra.mxu0 0
      %1166 = vmatprep.subr.bf16.mxu0 0
      %1167 = vmatpush1.bf16.msra.mxu0 %v1150
      %1168 = vmatprep.subr.bf16.mxu0 0
      %1169 = vmatpush2.bf16.msra.mxu0 0
      %1170 = vmatprep.subr.bf16.mxu0 0
      %1171 = vmatpush2.bf16.msra.mxu0 0
      %1172 = vmatprep.subr.bf16.mxu0 0
      %1173 = vmatpush2.bf16.msra.mxu0 0
      %1174 = vmatprep.subr.bf16.mxu0 0
      %1175 = vmatpush2.bf16.msra.mxu0 0
      %1176 = vmatprep.subr.bf16.mxu0 0
      %1177 = vmatpush2.bf16.msra.mxu0 0
      %1178 = vmatprep.subr.bf16.mxu0 0
      %1179 = vmatpush2.bf16.msra.mxu0 0
      %1180 = vmatprep.subr.bf16.mxu0 0
      %1181 = vmatpush2.bf16.msra.mxu0 0
      %1182 = vmatprep.subr.bf16.mxu0 0
      %1183 = vmatpush2.bf16.msra.mxu0 0
      %1184 = vmatprep.mubr.bf16.mxu0 0
      %1185 = vmatmul.mubr.bf16.gmra.mxu0 %v1147
      %v1186 = vpop.f32.mrf.mxu0
      %v1187 = vadd.f32 0.0, %v1186
      %v1188 = vpop.f32.mrf.mxu0
      %v1189 = vpop.f32.mrf.mxu0
      %v1190 = vpop.f32.mrf.mxu0
      %1191 = vdwg.mxu0
      %v1192 = vmul.f32 %v1187, %v1142
      %v1193 = vpack.c.bf16 %v1192, %v1192
      %v1195 = vsel %vm609, %v1193, 0
      %v1198 = vsel %vm835, %v608, 0
      %1200 = vmatprep.subr.bf16.mxu0 0
      %1201 = vmatpush1.bf16.msra.mxu0 0
      %1202 = vmatprep.subr.bf16.mxu0 0
      %1203 = vmatpush1.bf16.msra.mxu0 0
      %1204 = vmatprep.subr.bf16.mxu0 0
      %1205 = vmatpush1.bf16.msra.mxu0 0
      %1206 = vmatprep.subr.bf16.mxu0 0
      %1207 = vmatpush1.bf16.msra.mxu0 0
      %1208 = vmatprep.subr.bf16.mxu0 0
      %1209 = vmatpush1.bf16.msra.mxu0 0
      %1210 = vmatprep.subr.bf16.mxu0 0
      %1211 = vmatpush1.bf16.msra.mxu0 0
      %1212 = vmatprep.subr.bf16.mxu0 0
      %1213 = vmatpush1.bf16.msra.mxu0 0
      %1214 = vmatprep.subr.bf16.mxu0 0
      %1215 = vmatpush1.bf16.msra.mxu0 %v1198
      %1216 = vmatprep.subr.bf16.mxu0 0
      %1217 = vmatpush2.bf16.msra.mxu0 0
      %1218 = vmatprep.subr.bf16.mxu0 0
      %1219 = vmatpush2.bf16.msra.mxu0 0
      %1220 = vmatprep.subr.bf16.mxu0 0
      %1221 = vmatpush2.bf16.msra.mxu0 0
      %1222 = vmatprep.subr.bf16.mxu0 0
      %1223 = vmatpush2.bf16.msra.mxu0 0
      %1224 = vmatprep.subr.bf16.mxu0 0
      %1225 = vmatpush2.bf16.msra.mxu0 0
      %1226 = vmatprep.subr.bf16.mxu0 0
      %1227 = vmatpush2.bf16.msra.mxu0 0
      %1228 = vmatprep.subr.bf16.mxu0 0
      %1229 = vmatpush2.bf16.msra.mxu0 0
      %1230 = vmatprep.subr.bf16.mxu0 0
      %1231 = vmatpush2.bf16.msra.mxu0 0
      %1232 = vmatprep.mubr.bf16.mxu0 0
      %1233 = vmatmul.mubr.bf16.gmra.mxu0 %v1195
      %v1234 = vpop.f32.mrf.mxu0
      %v1235 = vadd.f32 0.0, %v1234
      %v1236 = vpop.f32.mrf.mxu0
      %v1237 = vpop.f32.mrf.mxu0
      %v1238 = vpop.f32.mrf.mxu0
      %1239 = vdwg.mxu0
      %v1240 = vadd.f32 %v1082, %v1235
      %v1241 = vld [vmem:[%s8] sm:$0x1]
      %v1243 = vlaneseq
      %v1244 = vshrl.u32 %v1243, 7
      %v1245 = vsub.s32 0, %v1244
      %v1246 = vrot.slane %v1241, %v1245
      %v1248 = vadd.f32 %v1240, %v1246
      %v1249 = vadd.f32 %v462, %v1248
      %v1250 = vsel %vm492, %v1249, 0.0
      %1251 = vadd.xlane.f32.xlu0 %v1250
      %v1252 = vpop.xlane.xlu0 %1251
      %v1253 = vrcp.pop 32.0
      %v1254 = vmul.f32 %v1252, %v1253
      %v1255 = vsub.f32 %v1249, %v1254
      %v1256 = vmul.f32 %v1255, %v1255
      %v1257 = vsel %vm492, %v1256, 0.0
      %1258 = vadd.xlane.f32.xlu0 %v1257
      %v1259 = vpop.xlane.xlu0 %1258
      %v1260 = vmul.f32 %v1259, %v1253
      %v1261 = vld [vmem:[%s9] sm:$0x1]
      %v1263 = vlaneseq
      %v1264 = vshrl.u32 %v1263, 7
      %v1265 = vsub.s32 0, %v1264
      %v1266 = vrot.slane %v1261, %v1265
      %v1268 = vmul.f32 %v1266, %v1255
      %v1269 = vadd.f32 %v1260, 1e-06
      %v1270 = vrsqrt.pop %v1269
      %v1271 = vmul.f32 %v1268, %v1270
      %v1272 = vld [vmem:[%s10] sm:$0x1]
      %v1274 = vlaneseq
      %v1275 = vshrl.u32 %v1274, 7
      %v1276 = vsub.s32 0, %v1275
      %v1277 = vrot.slane %v1272, %v1276
      %v1279 = vadd.f32 %v1271, %v1277
      %1280 = vst.msk [vmem:[%s460] sm:$0xff] %vm492, %v1279
      %p1281 = scmp.lt.s32.totalorder %s26, 1
      %s1282 = scalar_select %p1281, %s26, 1
      %p1283 = scmp.lt.s32.totalorder %s27, 0
      %s1284 = scalar_select %p1283, %s27, 0
      %s1285 = sadd.s32 %s1284, %s1282
      %s1286 = smul.addr %s1285, 8
      %s1287 = scalar_lea.vmem %s11, %s1286
      // Predicated region
      $region65: #{decoder_forward.7} parent=63 // pred_check
        %p1288 = pneg %p304
      $region66: #{decoder_forward.7} parent=63 // pred_check_branch
        %1290 = sbr.rel (%p1288) target = $region68
      $region67: #{decoder_forward.7} parent=63 // pred_region
        _
      $region68: #{decoder_forward.7} parent=63 // pred_fallthru
        _
    $region64: #{decoder_forward.7} parent=5 // pred_fallthru
      _
    %p1291 = scmp.le.s32.totalorder 2, %s17
    // Predicated region
    $region69: #{decoder_forward.7} parent=5 // pred_check
      %p1292 = pneg %p1291
    $region70: #{decoder_forward.7} parent=5 // pred_check_branch
      %1294 = sbr.rel (%p1292) target = $region72
    $region71: #{decoder_forward.7} parent=5 // pred_region
      %s1295 = ssub.s32 %s17, 2
      // Predicated region
      $region73: #{decoder_forward.7} parent=71 // pred_check
        %p1296 = pneg %p310
      $region74: #{decoder_forward.7} parent=71 // pred_check_branch
        %1298 = sbr.rel (%p1296) target = $region76
      $region75: #{decoder_forward.7} parent=71 // pred_region
        %p1299 = scmp.lt.s32.totalorder %s28, 1
        %s1300 = scalar_select %p1299, %s28, 1
        %p1301 = scmp.lt.s32.totalorder %s29, 0
        %s1302 = scalar_select %p1301, %s29, 0
        %s1303 = sadd.s32 %s1302, %s1300
        %s1304 = smul.addr %s1303, 8
        %s1305 = scalar_lea.vmem %s11, %s1304
      $region76: #{decoder_forward.7} parent=71 // pred_fallthru
        _
    $region72: #{decoder_forward.7} parent=5 // pred_fallthru
      _
  $region6: #{decoder_forward.7} parent=0 // loop_footer
    %s21 = sadd.s32 1, %s17
  $region7: #{decoder_forward.7} parent=0 // loop_footer_branch
    %16 = sbr.rel target = $region3
  $region8: #{decoder_forward.7} parent=0 // loop_exit
    _

// kernel: decoder_forward.9
$region0: #{decoder_forward.9}
  #allocation0 [shape = 'u32[]', space=smem, size = 0x4, offset = 0x4, fixed_abs, tag = 'smem constant byte address 0x4 - core index']
  #allocation1 [shape = 'u32[144,128]{1,0:T(1,128)}', space=vmem, size = 0x12000, scoped, tag = 'internal scratch']
  %s0 = inlined_call_operand.vmem [shape: f32[2,8,32], index: 0, kind: input, shape index: {}, may-alias: {0,1}]
  %s1 = inlined_call_operand.vmem [shape: f32[2,8,32], index: 1, kind: input, shape index: {}, may-alias: {0,1}]
  %s2 = inlined_call_operand.vmem [shape: bf16[2,8,8], index: 2, kind: input, shape index: {}]
  %s3 = inlined_call_operand.vmem [shape: bf16[32,32], index: 3, kind: input, shape index: {}]
  %s4 = inlined_call_operand.vmem [shape: f32[1,32], index: 4, kind: input, shape index: {}]
  %s5 = inlined_call_operand.vmem [shape: bf16[32,64], index: 5, kind: input, shape index: {}]
  %s6 = inlined_call_operand.vmem [shape: f32[1,64], index: 6, kind: input, shape index: {}]
  %s7 = inlined_call_operand.vmem [shape: bf16[32,32], index: 7, kind: input, shape index: {}]
  %s8 = inlined_call_operand.vmem [shape: f32[1,32], index: 8, kind: input, shape index: {}]
  %s9 = inlined_call_operand.vmem [shape: f32[1,32], index: 9, kind: input, shape index: {}]
  %s10 = inlined_call_operand.vmem [shape: f32[1,32], index: 10, kind: input, shape index: {}]
  %s11 = inlined_call_operand.vmem [shape: f32[2,8,32], index: 11, kind: output, shape index: {}]
  %s12 = sld [smem:[#allocation0]]
  $region77: #{decoder_forward.9} parent=0
    _
  %s14 = ssub.s32 1, %s12
  %s15 = scalar_select 0, %s14, %s12
  loop: start=0, step=1, limit=4
  $region2: #{decoder_forward.9} parent=0 // loop_pre_header
    _
  $region3: #{decoder_forward.9} parent=0 // loop_header
    %s17 = sphi 0, %s21
    %p18 = scmp.ge.s32.totalorder %s17, 4
    %s24 = sphi 0, %s36
    %s25 = sphi 0, %s32
    %s26 = sphi 0, %s24
    %s27 = sphi 0, %s25
    %s28 = sphi 0, %s26
    %s29 = sphi 0, %s27
    %s41 = sphi 0, %s43
    %s44 = sphi 0, %s41
    %s45 = sphi 0, %s44
    %s61 = sphi 0, %s45
    %s67 = sphi 0, %s69
    %s70 = sphi 0, %s67
    %s71 = sphi 0, %s70
    %s87 = sphi 0, %s71
    %s95 = sphi 0, %s97
    %s98 = sphi 0, %s95
    %s99 = sphi 0, %s98
    %s115 = sphi 0, %s99
    %s119 = sphi 0, %s119
    %s121 = sphi 0, %s119
    %s122 = sphi 0, %s121
    %s136 = sphi 0, %s122
    %s140 = sphi 0, %s140
    %s142 = sphi 0, %s140
    %s143 = sphi 0, %s142
    %s157 = sphi 0, %s143
    %s161 = sphi 0, %s161
    %s163 = sphi 0, %s161
    %s164 = sphi 0, %s163
    %s178 = sphi 0, %s164
    %s182 = sphi 0, %s182
    %s184 = sphi 0, %s182
    %s185 = sphi 0, %s184
    %s199 = sphi 0, %s185
    %s203 = sphi 0, %s203
    %s205 = sphi 0, %s203
    %s206 = sphi 0, %s205
    %s220 = sphi 0, %s206
    %s224 = sphi 0, %s224
    %s226 = sphi 0, %s224
    %s227 = sphi 0, %s226
    %s241 = sphi 0, %s227
    %s245 = sphi 0, %s245
    %s247 = sphi 0, %s245
    %s248 = sphi 0, %s247
    %s262 = sphi 0, %s248
    %s266 = sphi 0, %s266
    %s268 = sphi 0, %s266
    %s269 = sphi 0, %s268
    %s283 = sphi 0, %s269
    %s291 = sphi 0, %s293
    %s294 = sphi 0, %s291
    %s295 = sphi 0, %s294
    %s311 = sphi 0, %s295
  $region4: #{decoder_forward.9} parent=0 // loop_header_branch
    %20 = sbr.rel (%p18) target = $region8
  $region5: #{decoder_forward.9} parent=0 // loop_body
    %s22 = ssub.s32 %s17, 1
    %s23 = ssub.s32 %s17, 2
    %s30 = sadd.s32 1, %s25
    %p31 = scmp.ge.s32.totalorder %s30, 1
    %s32 = scalar_select %p31, 0, %s30
    %s33 = sadd.s32 1, %s24
    %s34 = scalar_select %p31, %s33, %s24
    %p35 = scmp.ge.s32.totalorder %s34, 2
    %s36 = scalar_select %p35, 0, %s34
    %s37 = ssub.s32 %s24, %s36
    %s38 = ssub.s32 %s25, %s32
    %s39 = sor.u32 %s37, %s38
    %p40 = scmp.eq.s32.totalorder %s39, 0
    %s42 = sadd.s32 %s41, 1
    %s43 = scalar_select %p40, %s41, %s42
    %p46 = pneg %p40
    %p47 = scmp.eq.s32.totalorder %s17, 1
    %p48 = por %p46, %p47
    %p49 = scmp.ne.s32.totalorder %s41, %s44
    %p50 = scmp.eq.s32.totalorder %s17, 0
    %p51 = por %p49, %p50
    %p52 = scmp.ne.s32.totalorder %s41, %s44
    %p53 = scmp.eq.s32.totalorder %s22, 1
    %p54 = por %p52, %p53
    %p55 = scmp.ne.s32.totalorder %s44, %s45
    %p56 = scmp.eq.s32.totalorder %s22, 0
    %p57 = por %p55, %p56
    %p58 = scmp.ne.s32.totalorder %s44, %s45
    %p59 = scmp.eq.s32.totalorder %s23, 1
    %p60 = por %p58, %p59
    %p62 = scmp.ne.s32.totalorder %s45, %s61
    %p63 = scmp.eq.s32.totalorder %s23, 0
    %p64 = por %p62, %p63
    %s65 = ssub.s32 %s24, %s36
    %p66 = scmp.eq.s32.totalorder %s65, 0
    %s68 = sadd.s32 %s67, 1
    %s69 = scalar_select %p66, %s67, %s68
    %p72 = pneg %p66
    %p73 = scmp.eq.s32.totalorder %s17, 1
    %p74 = por %p72, %p73
    %p75 = scmp.ne.s32.totalorder %s67, %s70
    %p76 = scmp.eq.s32.totalorder %s17, 0
    %p77 = por %p75, %p76
    %p78 = scmp.ne.s32.totalorder %s67, %s70
    %p79 = scmp.eq.s32.totalorder %s22, 1
    %p80 = por %p78, %p79
    %p81 = scmp.ne.s32.totalorder %s70, %s71
    %p82 = scmp.eq.s32.totalorder %s22, 0
    %p83 = por %p81, %p82
    %p84 = scmp.ne.s32.totalorder %s70, %s71
    %p85 = scmp.eq.s32.totalorder %s23, 1
    %p86 = por %p84, %p85
    %p88 = scmp.ne.s32.totalorder %s71, %s87
    %p89 = scmp.eq.s32.totalorder %s23, 0
    %p90 = por %p88, %p89
    %s91 = ssub.s32 %s24, %s36
    %s92 = ssub.s32 %s25, %s32
    %s93 = sor.u32 %s91, %s92
    %p94 = scmp.eq.s32.totalorder %s93, 0
    %s96 = sadd.s32 %s95, 1
    %s97 = scalar_select %p94, %s95, %s96
    %p100 = pneg %p94
    %p101 = scmp.eq.s32.totalorder %s17, 1
    %p102 = por %p100, %p101
    %p103 = scmp.ne.s32.totalorder %s95, %s98
    %p104 = scmp.eq.s32.totalorder %s17, 0
    %p105 = por %p103, %p104
    %p106 = scmp.ne.s32.totalorder %s95, %s98
    %p107 = scmp.eq.s32.totalorder %s22, 1
    %p108 = por %p106, %p107
    %p109 = scmp.ne.s32.totalorder %s98, %s99
    %p110 = scmp.eq.s32.totalorder %s22, 0
    %p111 = por %p109, %p110
    %p112 = scmp.ne.s32.totalorder %s98, %s99
    %p113 = scmp.eq.s32.totalorder %s23, 1
    %p114 = por %p112, %p113
    %p116 = scmp.ne.s32.totalorder %s99, %s115
    %p117 = scmp.eq.s32.totalorder %s23, 0
    %p118 = por %p116, %p117
    %s120 = sadd.s32 %s119, 1
    %p123 = scmp.eq.s32.totalorder %s17, 1
    %p124 = scmp.ne.s32.totalorder %s119, %s121
    %p125 = scmp.eq.s32.totalorder %s17, 0
    %p126 = por %p124, %p125
    %p127 = scmp.ne.s32.totalorder %s119, %s121
    %p128 = scmp.eq.s32.totalorder %s22, 1
    %p129 = por %p127, %p128
    %p130 = scmp.ne.s32.totalorder %s121, %s122
    %p131 = scmp.eq.s32.totalorder %s22, 0
    %p132 = por %p130, %p131
    %p133 = scmp.ne.s32.totalorder %s121, %s122
    %p134 = scmp.eq.s32.totalorder %s23, 1
    %p135 = por %p133, %p134
    %p137 = scmp.ne.s32.totalorder %s122, %s136
    %p138 = scmp.eq.s32.totalorder %s23, 0
    %p139 = por %p137, %p138
    %s141 = sadd.s32 %s140, 1
    %p144 = scmp.eq.s32.totalorder %s17, 1
    %p145 = scmp.ne.s32.totalorder %s140, %s142
    %p146 = scmp.eq.s32.totalorder %s17, 0
    %p147 = por %p145, %p146
    %p148 = scmp.ne.s32.totalorder %s140, %s142
    %p149 = scmp.eq.s32.totalorder %s22, 1
    %p150 = por %p148, %p149
    %p151 = scmp.ne.s32.totalorder %s142, %s143
    %p152 = scmp.eq.s32.totalorder %s22, 0
    %p153 = por %p151, %p152
    %p154 = scmp.ne.s32.totalorder %s142, %s143
    %p155 = scmp.eq.s32.totalorder %s23, 1
    %p156 = por %p154, %p155
    %p158 = scmp.ne.s32.totalorder %s143, %s157
    %p159 = scmp.eq.s32.totalorder %s23, 0
    %p160 = por %p158, %p159
    %s162 = sadd.s32 %s161, 1
    %p165 = scmp.eq.s32.totalorder %s17, 1
    %p166 = scmp.ne.s32.totalorder %s161, %s163
    %p167 = scmp.eq.s32.totalorder %s17, 0
    %p168 = por %p166, %p167
    %p169 = scmp.ne.s32.totalorder %s161, %s163
    %p170 = scmp.eq.s32.totalorder %s22, 1
    %p171 = por %p169, %p170
    %p172 = scmp.ne.s32.totalorder %s163, %s164
    %p173 = scmp.eq.s32.totalorder %s22, 0
    %p174 = por %p172, %p173
    %p175 = scmp.ne.s32.totalorder %s163, %s164
    %p176 = scmp.eq.s32.totalorder %s23, 1
    %p177 = por %p175, %p176
    %p179 = scmp.ne.s32.totalorder %s164, %s178
    %p180 = scmp.eq.s32.totalorder %s23, 0
    %p181 = por %p179, %p180
    %s183 = sadd.s32 %s182, 1
    %p186 = scmp.eq.s32.totalorder %s17, 1
    %p187 = scmp.ne.s32.totalorder %s182, %s184
    %p188 = scmp.eq.s32.totalorder %s17, 0
    %p189 = por %p187, %p188
    %p190 = scmp.ne.s32.totalorder %s182, %s184
    %p191 = scmp.eq.s32.totalorder %s22, 1
    %p192 = por %p190, %p191
    %p193 = scmp.ne.s32.totalorder %s184, %s185
    %p194 = scmp.eq.s32.totalorder %s22, 0
    %p195 = por %p193, %p194
    %p196 = scmp.ne.s32.totalorder %s184, %s185
    %p197 = scmp.eq.s32.totalorder %s23, 1
    %p198 = por %p196, %p197
    %p200 = scmp.ne.s32.totalorder %s185, %s199
    %p201 = scmp.eq.s32.totalorder %s23, 0
    %p202 = por %p200, %p201
    %s204 = sadd.s32 %s203, 1
    %p207 = scmp.eq.s32.totalorder %s17, 1
    %p208 = scmp.ne.s32.totalorder %s203, %s205
    %p209 = scmp.eq.s32.totalorder %s17, 0
    %p210 = por %p208, %p209
    %p211 = scmp.ne.s32.totalorder %s203, %s205
    %p212 = scmp.eq.s32.totalorder %s22, 1
    %p213 = por %p211, %p212
    %p214 = scmp.ne.s32.totalorder %s205, %s206
    %p215 = scmp.eq.s32.totalorder %s22, 0
    %p216 = por %p214, %p215
    %p217 = scmp.ne.s32.totalorder %s205, %s206
    %p218 = scmp.eq.s32.totalorder %s23, 1
    %p219 = por %p217, %p218
    %p221 = scmp.ne.s32.totalorder %s206, %s220
    %p222 = scmp.eq.s32.totalorder %s23, 0
    %p223 = por %p221, %p222
    %s225 = sadd.s32 %s224, 1
    %p228 = scmp.eq.s32.totalorder %s17, 1
    %p229 = scmp.ne.s32.totalorder %s224, %s226
    %p230 = scmp.eq.s32.totalorder %s17, 0
    %p231 = por %p229, %p230
    %p232 = scmp.ne.s32.totalorder %s224, %s226
    %p233 = scmp.eq.s32.totalorder %s22, 1
    %p234 = por %p232, %p233
    %p235 = scmp.ne.s32.totalorder %s226, %s227
    %p236 = scmp.eq.s32.totalorder %s22, 0
    %p237 = por %p235, %p236
    %p238 = scmp.ne.s32.totalorder %s226, %s227
    %p239 = scmp.eq.s32.totalorder %s23, 1
    %p240 = por %p238, %p239
    %p242 = scmp.ne.s32.totalorder %s227, %s241
    %p243 = scmp.eq.s32.totalorder %s23, 0
    %p244 = por %p242, %p243
    %s246 = sadd.s32 %s245, 1
    %p249 = scmp.eq.s32.totalorder %s17, 1
    %p250 = scmp.ne.s32.totalorder %s245, %s247
    %p251 = scmp.eq.s32.totalorder %s17, 0
    %p252 = por %p250, %p251
    %p253 = scmp.ne.s32.totalorder %s245, %s247
    %p254 = scmp.eq.s32.totalorder %s22, 1
    %p255 = por %p253, %p254
    %p256 = scmp.ne.s32.totalorder %s247, %s248
    %p257 = scmp.eq.s32.totalorder %s22, 0
    %p258 = por %p256, %p257
    %p259 = scmp.ne.s32.totalorder %s247, %s248
    %p260 = scmp.eq.s32.totalorder %s23, 1
    %p261 = por %p259, %p260
    %p263 = scmp.ne.s32.totalorder %s248, %s262
    %p264 = scmp.eq.s32.totalorder %s23, 0
    %p265 = por %p263, %p264
    %s267 = sadd.s32 %s266, 1
    %p270 = scmp.eq.s32.totalorder %s17, 1
    %p271 = scmp.ne.s32.totalorder %s266, %s268
    %p272 = scmp.eq.s32.totalorder %s17, 0
    %p273 = por %p271, %p272
    %p274 = scmp.ne.s32.totalorder %s266, %s268
    %p275 = scmp.eq.s32.totalorder %s22, 1
    %p276 = por %p274, %p275
    %p277 = scmp.ne.s32.totalorder %s268, %s269
    %p278 = scmp.eq.s32.totalorder %s22, 0
    %p279 = por %p277, %p278
    %p280 = scmp.ne.s32.totalorder %s268, %s269
    %p281 = scmp.eq.s32.totalorder %s23, 1
    %p282 = por %p280, %p281
    %p284 = scmp.ne.s32.totalorder %s269, %s283
    %p285 = scmp.eq.s32.totalorder %s23, 0
    %p286 = por %p284, %p285
    %s287 = ssub.s32 %s24, %s36
    %s288 = ssub.s32 %s25, %s32
    %s289 = sor.u32 %s287, %s288
    %p290 = scmp.eq.s32.totalorder %s289, 0
    %s292 = sadd.s32 %s291, 1
    %s293 = scalar_select %p290, %s291, %s292
    %p296 = pneg %p290
    %p297 = scmp.eq.s32.totalorder %s17, 1
    %p298 = por %p296, %p297
    %p299 = scmp.ne.s32.totalorder %s291, %s294
    %p300 = scmp.eq.s32.totalorder %s17, 0
    %p301 = por %p299, %p300
    %p302 = scmp.ne.s32.totalorder %s291, %s294
    %p303 = scmp.eq.s32.totalorder %s22, 1
    %p304 = por %p302, %p303
    %p305 = scmp.ne.s32.totalorder %s294, %s295
    %p306 = scmp.eq.s32.totalorder %s22, 0
    %p307 = por %p305, %p306
    %p308 = scmp.ne.s32.totalorder %s294, %s295
    %p309 = scmp.eq.s32.totalorder %s23, 1
    %p310 = por %p308, %p309
    %p312 = scmp.ne.s32.totalorder %s295, %s311
    %p313 = scmp.eq.s32.totalorder %s23, 0
    %p314 = por %p312, %p313
    %p315 = scmp.le.s32.totalorder 1, %s17
    %p316 = scmp.lt.s32.totalorder %s17, 3
    %p317 = pnand %p315, %p316
    %p318 = pneg %p317
    // Predicated region
    $region9: #{decoder_forward.9} parent=5 // pred_check
      _
    $region10: #{decoder_forward.9} parent=5 // pred_check_branch
      %320 = sbr.rel (%p317) target = $region12
    $region11: #{decoder_forward.9} parent=5 // pred_region
      %s321 = ssub.s32 %s17, 1
      // Predicated region
      $region13: #{decoder_forward.9} parent=11 // pred_check
        %p322 = pneg %p132
      $region14: #{decoder_forward.9} parent=11 // pred_check_branch
        %324 = sbr.rel (%p322) target = $region16
      $region15: #{decoder_forward.9} parent=11 // pred_region
        _
      $region16: #{decoder_forward.9} parent=11 // pred_fallthru
        _
      // Predicated region
      $region17: #{decoder_forward.9} parent=11 // pred_check
        %p325 = pneg %p153
      $region18: #{decoder_forward.9} parent=11 // pred_check_branch
        %327 = sbr.rel (%p325) target = $region20
      $region19: #{decoder_forward.9} parent=11 // pred_region
        _
      $region20: #{decoder_forward.9} parent=11 // pred_fallthru
        _
      // Predicated region
      $region21: #{decoder_forward.9} parent=11 // pred_check
        %p328 = pneg %p174
      $region22: #{decoder_forward.9} parent=11 // pred_check_branch
        %330 = sbr.rel (%p328) target = $region24
      $region23: #{decoder_forward.9} parent=11 // pred_region
        _
      $region24: #{decoder_forward.9} parent=11 // pred_fallthru
        _
      // Predicated region
      $region25: #{decoder_forward.9} parent=11 // pred_check
        %p331 = pneg %p195
      $region26: #{decoder_forward.9} parent=11 // pred_check_branch
        %333 = sbr.rel (%p331) target = $region28
      $region27: #{decoder_forward.9} parent=11 // pred_region
        _
      $region28: #{decoder_forward.9} parent=11 // pred_fallthru
        _
      // Predicated region
      $region29: #{decoder_forward.9} parent=11 // pred_check
        %p334 = pneg %p216
      $region30: #{decoder_forward.9} parent=11 // pred_check_branch
        %336 = sbr.rel (%p334) target = $region32
      $region31: #{decoder_forward.9} parent=11 // pred_region
        _
      $region32: #{decoder_forward.9} parent=11 // pred_fallthru
        _
      // Predicated region
      $region33: #{decoder_forward.9} parent=11 // pred_check
        %p337 = pneg %p237
      $region34: #{decoder_forward.9} parent=11 // pred_check_branch
        %339 = sbr.rel (%p337) target = $region36
      $region35: #{decoder_forward.9} parent=11 // pred_region
        _
      $region36: #{decoder_forward.9} parent=11 // pred_fallthru
        _
      // Predicated region
      $region37: #{decoder_forward.9} parent=11 // pred_check
        %p340 = pneg %p258
      $region38: #{decoder_forward.9} parent=11 // pred_check_branch
        %342 = sbr.rel (%p340) target = $region40
      $region39: #{decoder_forward.9} parent=11 // pred_region
        _
      $region40: #{decoder_forward.9} parent=11 // pred_fallthru
        _
      // Predicated region
      $region41: #{decoder_forward.9} parent=11 // pred_check
        %p343 = pneg %p279
      $region42: #{decoder_forward.9} parent=11 // pred_check_branch
        %345 = sbr.rel (%p343) target = $region44
      $region43: #{decoder_forward.9} parent=11 // pred_region
        _
      $region44: #{decoder_forward.9} parent=11 // pred_fallthru
        _
    $region12: #{decoder_forward.9} parent=5 // pred_fallthru
      _
    %p346 = scmp.lt.s32.totalorder %s17, 2
    // Predicated region
    $region45: #{decoder_forward.9} parent=5 // pred_check
      %p347 = pneg %p346
    $region46: #{decoder_forward.9} parent=5 // pred_check_branch
      %349 = sbr.rel (%p347) target = $region48
    $region47: #{decoder_forward.9} parent=5 // pred_region
      // Predicated region
      $region49: #{decoder_forward.9} parent=47 // pred_check
        %p350 = pneg %p51
      $region50: #{decoder_forward.9} parent=47 // pred_check_branch
        %352 = sbr.rel (%p350) target = $region52
      $region51: #{decoder_forward.9} parent=47 // pred_region
        %p353 = scmp.lt.s32.totalorder %s24, 1
        %s354 = scalar_select %p353, %s24, 1
        %p355 = scmp.lt.s32.totalorder %s25, 0
        %s356 = scalar_select %p355, %s25, 0
        %s357 = sadd.s32 %s356, %s354
        %s358 = smul.addr %s357, 8
        %s359 = scalar_lea.vmem %s0, %s358
      $region52: #{decoder_forward.9} parent=47 // pred_fallthru
        _
      // Predicated region
      $region53: #{decoder_forward.9} parent=47 // pred_check
        %p360 = pneg %p77
      $region54: #{decoder_forward.9} parent=47 // pred_check_branch
        %362 = sbr.rel (%p360) target = $region56
      $region55: #{decoder_forward.9} parent=47 // pred_region
        %p363 = scmp.lt.s32.totalorder %s24, 1
        %s364 = scalar_select %p363, %s24, 1
        %s365 = smul.addr %s364, 8
        %s366 = scalar_lea.vmem %s1, %s365
      $region56: #{decoder_forward.9} parent=47 // pred_fallthru
        _
      // Predicated region
      $region57: #{decoder_forward.9} parent=47 // pred_check
        %p367 = pneg %p105
      $region58: #{decoder_forward.9} parent=47 // pred_check_branch
        %369 = sbr.rel (%p367) target = $region60
      $region59: #{decoder_forward.9} parent=47 // pred_region
        %p370 = scmp.lt.s32.totalorder %s24, 1
        %s371 = scalar_select %p370, %s24, 1
        %p372 = scmp.lt.s32.totalorder %s25, 0
        %s373 = scalar_select %p372, %s25, 0
        %s374 = sadd.s32 %s373, %s371
        %s375 = smul.addr %s374, 4
        %s376 = scalar_lea.vmem %s2, %s375
      $region60: #{decoder_forward.9} parent=47 // pred_fallthru
        _
    $region48: #{decoder_forward.9} parent=5 // pred_fallthru
      _
    %p377 = scmp.le.s32.totalorder 1, %s17
    %p378 = scmp.lt.s32.totalorder %s17, 3
    %p379 = pnand %p377, %p378
    %p380 = pneg %p379
    // Predicated region
    $region61: #{decoder_forward.9} parent=5 // pred_check
      _
    $region62: #{decoder_forward.9} parent=5 // pred_check_branch
      %382 = sbr.rel (%p379) target = $region64
    $region63: #{decoder_forward.9} parent=5 // pred_region
      %s383 = ssub.s32 %s17, 1
      %p384 = scmp.lt.s32.totalorder %s26, 1
      %s385 = scalar_select %p384, %s26, 1
      %p386 = scmp.lt.s32.totalorder %s27, 0
      %s387 = scalar_select %p386, %s27, 0
      %s388 = sadd.s32 %s387, %s385
      %s389 = smul.addr %s388, 8
      %s390 = scalar_lea.vmem %s0, %s389
      %p391 = pneg %p57
      %p392 = pneg %p54
      %p393 = scmp.lt.s32.totalorder %s26, 1
      %s394 = scalar_select %p393, %s26, 1
      %s395 = smul.addr %s394, 8
      %s396 = scalar_lea.vmem %s1, %s395
      %p397 = pneg %p83
      %p398 = pneg %p80
      %p399 = scmp.lt.s32.totalorder %s26, 1
      %s400 = scalar_select %p399, %s26, 1
      %p401 = scmp.lt.s32.totalorder %s27, 0
      %s402 = scalar_select %p401, %s27, 0
      %s403 = sadd.s32 %s402, %s400
      %s404 = smul.addr %s403, 4
      %s405 = scalar_lea.vmem %s2, %s404
      %p406 = pneg %p111
      %p407 = pneg %p108
      %p408 = pneg %p132
      %p409 = pneg %p129
      %p410 = pneg %p153
      %p411 = pneg %p150
      %p412 = pneg %p174
      %p413 = pneg %p171
      %p414 = pneg %p195
      %p415 = pneg %p192
      %p416 = pneg %p216
      %p417 = pneg %p213
      %p418 = pneg %p237
      %p419 = pneg %p234
      %p420 = pneg %p258
      %p421 = pneg %p255
      %p422 = pneg %p279
      %p423 = pneg %p276
      %p424 = pneg %p307
      %p425 = pneg %p304
      %p426 = scmp.lt.s32.totalorder %s26, 1
      %s427 = scalar_select %p426, %s26, 1
      %p428 = scmp.lt.s32.totalorder %s27, 0
      %s429 = scalar_select %p428, %s27, 0
      %s430 = sadd.s32 %s429, %s427
      %s431 = smul.addr %s430, 8
      %s432 = scalar_lea.vmem %s11, %s431
      %p433 = scmp.lt.s32.totalorder %s26, 1
      %s434 = scalar_select %p433, %s26, 1
      %p435 = scmp.lt.s32.totalorder %s27, 0
      %s436 = scalar_select %p435, %s27, 0
      %s437 = sadd.s32 %s436, %s434
      %s438 = smul.addr %s437, 8
      %s439 = scalar_lea.vmem %s0, %s438
      %p440 = scmp.lt.s32.totalorder %s26, 1
      %s441 = scalar_select %p440, %s26, 1
      %s442 = smul.addr %s441, 8
      %s443 = scalar_lea.vmem %s1, %s442
      %p444 = scmp.lt.s32.totalorder %s26, 1
      %s445 = scalar_select %p444, %s26, 1
      %p446 = scmp.lt.s32.totalorder %s27, 0
      %s447 = scalar_select %p446, %s27, 0
      %s448 = sadd.s32 %s447, %s445
      %s449 = smul.addr %s448, 4
      %s450 = scalar_lea.vmem %s2, %s449
      %p451 = scmp.lt.s32.totalorder %s26, 1
      %s452 = scalar_select %p451, %s26, 1
      %p453 = scmp.lt.s32.totalorder %s27, 0
      %s454 = scalar_select %p453, %s27, 0
      %s455 = sadd.s32 %s454, %s452
      %s456 = smul.addr %s455, 8
      %s457 = scalar_lea.vmem %s11, %s456
      %v459 = vld [vmem:[%s439] sm:$0xff]
      %v460 = vpack.c.bf16 %v459, %v459
      %v461 = vld [vmem:[%s443] sm:$0xff]
      %v462 = vpack.c.bf16 %v461, %v461
      %v463 = vld [vmem:[%s450] sm:$0xf]
      %v464 = vunpack.c.l.bf16 %v463
      %v465 = vld [vmem:[%s3] sm:$0xf]
      %v466 = vld [vmem:[%s3 + $0x4] sm:$0xf]
      %v467 = vld [vmem:[%s3 + $0x8] sm:$0xf]
      %v468 = vld [vmem:[%s3 + $0xc] sm:$0xf]
      %v469 = vld [vmem:[%s4] sm:$0x1]
      %v471 = vlaneseq
      %v472 = vshrl.u32 %v471, 7
      %v473 = vsub.s32 0, %v472
      %v474 = vrot.slane %v469, %v473
      %v480 = vunpack.c.l.b16 %v465
      %v481 = vunpack.c.l.b16 %v466
      %v482 = vunpack.c.l.b16 %v467
      %v483 = vunpack.c.l.b16 %v468
      %v484 = vpack.c.b16 %v481, %v480
      %v485 = vpack.c.b16 %v483, %v482
      %vm488 = vcmask 261120
      %v490 = vsel %vm488, %v460, 0
      %492 = vmatprep.subr.bf16.mxu0 0
      %493 = vmatpush1.bf16.msra.mxu0 0
      %494 = vmatprep.subr.bf16.mxu0 0
      %495 = vmatpush1.bf16.msra.mxu0 0
      %496 = vmatprep.subr.bf16.mxu0 0
      %497 = vmatpush1.bf16.msra.mxu0 0
      %498 = vmatprep.subr.bf16.mxu0 0
      %499 = vmatpush1.bf16.msra.mxu0 0
      %500 = vmatprep.subr.bf16.mxu0 0
      %501 = vmatpush1.bf16.msra.mxu0 0
      %502 = vmatprep.subr.bf16.mxu0 0
      %503 = vmatpush1.bf16.msra.mxu0 0
      %504 = vmatprep.subr.bf16.mxu0 0
      %505 = vmatpush1.bf16.msra.mxu0 %v485
      %506 = vmatprep.subr.bf16.mxu0 0
      %507 = vmatpush1.bf16.msra.mxu0 %v484
      %508 = vmatprep.subr.bf16.mxu0 0
      %509 = vmatpush2.bf16.msra.mxu0 0
      %510 = vmatprep.subr.bf16.mxu0 0
      %511 = vmatpush2.bf16.msra.mxu0 0
      %512 = vmatprep.subr.bf16.mxu0 0
      %513 = vmatpush2.bf16.msra.mxu0 0
      %514 = vmatprep.subr.bf16.mxu0 0
      %515 = vmatpush2.bf16.msra.mxu0 0
      %516 = vmatprep.subr.bf16.mxu0 0
      %517 = vmatpush2.bf16.msra.mxu0 0
      %518 = vmatprep.subr.bf16.mxu0 0
      %519 = vmatpush2.bf16.msra.mxu0 0
      %520 = vmatprep.subr.bf16.mxu0 0
      %521 = vmatpush2.bf16.msra.mxu0 0
      %522 = vmatprep.subr.bf16.mxu0 0
      %523 = vmatpush2.bf16.msra.mxu0 0
      %524 = vmatprep.mubr.bf16.mxu0 0
      %525 = vmatmul.mubr.bf16.gmra.mxu0 %v490
      %v526 = vpop.f32.mrf.mxu0
      %v527 = vadd.f32 %v474, %v526
      %v528 = vpop.f32.mrf.mxu0
      %v529 = vpop.f32.mrf.mxu0
      %v530 = vpop.f32.mrf.mxu0
      %531 = vdwg.mxu0
      %v532 = vld [vmem:[%s5] sm:$0xf]
      %v533 = vld [vmem:[%s5 + $0x4] sm:$0xf]
      %v534 = vld [vmem:[%s5 + $0x8] sm:$0xf]
      %v535 = vld [vmem:[%s5 + $0xc] sm:$0xf]
      %v536 = vld [vmem:[%s6] sm:$0x1]
      %v538 = vlaneseq
      %v539 = vshrl.u32 %v538, 7
      %v540 = vsub.s32 0, %v539
      %v541 = vrot.slane %v536, %v540
      %v547 = vunpack.c.l.b16 %v532
      %v548 = vunpack.c.l.b16 %v533
      %v549 = vunpack.c.l.b16 %v534
      %v550 = vunpack.c.l.b16 %v535
      %v551 = vpack.c.b16 %v548, %v547
      %v552 = vpack.c.b16 %v550, %v549
      %v556 = vsel %vm488, %v462, 0
      %558 = vmatprep.subr.bf16.mxu0 0
      %559 = vmatpush1.bf16.msra.mxu0 0
      %560 = vmatprep.subr.bf16.mxu0 0
      %561 = vmatpush1.bf16.msra.mxu0 0
      %562 = vmatprep.subr.bf16.mxu0 0
      %563 = vmatpush1.bf16.msra.mxu0 0
      %564 = vmatprep.subr.bf16.mxu0 0
      %565 = vmatpush1.bf16.msra.mxu0 0
      %566 = vmatprep.subr.bf16.mxu0 0
      %567 = vmatpush1.bf16.msra.mxu0 0
      %568 = vmatprep.subr.bf16.mxu0 0
      %569 = vmatpush1.bf16.msra.mxu0 0
      %570 = vmatprep.subr.bf16.mxu0 0
      %571 = vmatpush1.bf16.msra.mxu0 %v552
      %572 = vmatprep.subr.bf16.mxu0 0
      %573 = vmatpush1.bf16.msra.mxu0 %v551
      %574 = vmatprep.subr.bf16.mxu0 0
      %575 = vmatpush2.bf16.msra.mxu0 0
      %576 = vmatprep.subr.bf16.mxu0 0
      %577 = vmatpush2.bf16.msra.mxu0 0
      %578 = vmatprep.subr.bf16.mxu0 0
      %579 = vmatpush2.bf16.msra.mxu0 0
      %580 = vmatprep.subr.bf16.mxu0 0
      %581 = vmatpush2.bf16.msra.mxu0 0
      %582 = vmatprep.subr.bf16.mxu0 0
      %583 = vmatpush2.bf16.msra.mxu0 0
      %584 = vmatprep.subr.bf16.mxu0 0
      %585 = vmatpush2.bf16.msra.mxu0 0
      %586 = vmatprep.subr.bf16.mxu0 0
      %587 = vmatpush2.bf16.msra.mxu0 0
      %588 = vmatprep.subr.bf16.mxu0 0
      %589 = vmatpush2.bf16.msra.mxu0 0
      %590 = vmatprep.mubr.bf16.mxu0 0
      %591 = vmatmul.mubr.bf16.gmra.mxu0 %v556
      %v592 = vpop.f32.mrf.mxu0
      %v593 = vadd.f32 %v541, %v592
      %v594 = vpop.f32.mrf.mxu0
      %v595 = vpop.f32.mrf.mxu0
      %v596 = vpop.f32.mrf.mxu0
      %597 = vdwg.mxu0
      %v598 = vpack.c.bf16 %v527, %v527
      %v599 = vpack.c.bf16 %v593, %v593
      %v600 = vld [vmem:[%s7] sm:$0xf]
      %v601 = vld [vmem:[%s7 + $0x4] sm:$0xf]
      %v602 = vld [vmem:[%s7 + $0x8] sm:$0xf]
      %v603 = vld [vmem:[%s7 + $0xc] sm:$0xf]
      %vm604 = vcmask 64512
      %v606 = vsel %vm604, %v598, 0
      %v609 = vsel %vm604, %v599, 0
      %611 = vmatprep.subr.bf16.mxu0 0
      %612 = vmatpush1.bf16.xpose.msra.mxu0 0
      %613 = vmatprep.subr.bf16.mxu0 0
      %614 = vmatpush1.bf16.xpose.msra.mxu0 0
      %615 = vmatprep.subr.bf16.mxu0 0
      %616 = vmatpush1.bf16.xpose.msra.mxu0 0
      %617 = vmatprep.subr.bf16.mxu0 0
      %618 = vmatpush1.bf16.xpose.msra.mxu0 0
      %619 = vmatprep.subr.bf16.mxu0 0
      %620 = vmatpush1.bf16.xpose.msra.mxu0 0
      %621 = vmatprep.subr.bf16.mxu0 0
      %622 = vmatpush1.bf16.xpose.msra.mxu0 0
      %623 = vmatprep.subr.bf16.mxu0 0
      %624 = vmatpush1.bf16.xpose.msra.mxu0 0
      %625 = vmatprep.subr.bf16.mxu0 0
      %626 = vmatpush1.bf16.xpose.msra.mxu0 %v609
      %627 = vmatprep.subr.bf16.mxu0 0
      %628 = vmatpush2.bf16.xpose.msra.mxu0 0
      %629 = vmatprep.subr.bf16.mxu0 0
      %630 = vmatpush2.bf16.xpose.msra.mxu0 0
      %631 = vmatprep.subr.bf16.mxu0 0
      %632 = vmatpush2.bf16.xpose.msra.mxu0 0
      %633 = vmatprep.subr.bf16.mxu0 0
      %634 = vmatpush2.bf16.xpose.msra.mxu0 0
      %635 = vmatprep.subr.bf16.mxu0 0
      %636 = vmatpush2.bf16.xpose.msra.mxu0 0
      %637 = vmatprep.subr.bf16.mxu0 0
      %638 = vmatpush2.bf16.xpose.msra.mxu0 0
      %639 = vmatprep.subr.bf16.mxu0 0
      %640 = vmatpush2.bf16.xpose.msra.mxu0 0
      %641 = vmatprep.subr.bf16.mxu0 0
      %642 = vmatpush2.bf16.xpose.msra.mxu0 0
      %643 = vmatprep.mubr.bf16.mxu0 0
      %644 = vmatmul.mubr.bf16.gmra.mxu0 %v606
      %v645 = vpop.f32.mrf.mxu0
      %v646 = vadd.f32 %v464, %v645
      %v647 = vpop.f32.mrf.mxu0
      %v648 = vpop.f32.mrf.mxu0
      %v649 = vpop.f32.mrf.mxu0
      %650 = vdwg.mxu0
      %v651 = vsel %vm604, %v646, -inf
      %652 = vmax.xlane.f32.xlu0 %v651
      %v653 = vpop.xlane.xlu0 %652
      %v654 = vsub.f32 %v646, %v653
      %v655 = vmul.f32 %v654, 1.442695
      %v656 = vpow.pop %v655
      %v657 = vsel %vm604, %v656, 0.0
      %658 = vadd.xlane.f32.xlu0 %v657
      %v659 = vpop.xlane.xlu0 %658
      %v660 = vrcp.pop %v659
      %v661 = vpack.c.bf16 %v656, %v656
      %663 = vrot.lane.b32.xlu0 %v599, 96
      %v664 = vpop.permute.xlu0 %663
      %v666 = vsel %vm604, %v661, 0
      %vm668 = vcmask 1043456
      %v670 = vsel %vm668, %v664, 0
      %672 = vmatprep.subr.bf16.mxu0 0
      %673 = vmatpush1.bf16.msra.mxu0 0
      %674 = vmatprep.subr.bf16.mxu0 0
      %675 = vmatpush1.bf16.msra.mxu0 0
      %676 = vmatprep.subr.bf16.mxu0 0
      %677 = vmatpush1.bf16.msra.mxu0 0
      %678 = vmatprep.subr.bf16.mxu0 0
      %679 = vmatpush1.bf16.msra.mxu0 0
      %680 = vmatprep.subr.bf16.mxu0 0
      %681 = vmatpush1.bf16.msra.mxu0 0
      %682 = vmatprep.subr.bf16.mxu0 0
      %683 = vmatpush1.bf16.msra.mxu0 0
      %684 = vmatprep.subr.bf16.mxu0 0
      %685 = vmatpush1.bf16.msra.mxu0 0
      %686 = vmatprep.subr.bf16.mxu0 0
      %687 = vmatpush1.bf16.msra.mxu0 %v670
      %688 = vmatprep.subr.bf16.mxu0 0
      %689 = vmatpush2.bf16.msra.mxu0 0
      %690 = vmatprep.subr.bf16.mxu0 0
      %691 = vmatpush2.bf16.msra.mxu0 0
      %692 = vmatprep.subr.bf16.mxu0 0
      %693 = vmatpush2.bf16.msra.mxu0 0
      %694 = vmatprep.subr.bf16.mxu0 0
      %695 = vmatpush2.bf16.msra.mxu0 0
      %696 = vmatprep.subr.bf16.mxu0 0
      %697 = vmatpush2.bf16.msra.mxu0 0
      %698 = vmatprep.subr.bf16.mxu0 0
      %699 = vmatpush2.bf16.msra.mxu0 0
      %700 = vmatprep.subr.bf16.mxu0 0
      %701 = vmatpush2.bf16.msra.mxu0 0
      %702 = vmatprep.subr.bf16.mxu0 0
      %703 = vmatpush2.bf16.msra.mxu0 0
      %704 = vmatprep.mubr.bf16.mxu0 0
      %705 = vmatmul.mubr.bf16.gmra.mxu0 %v666
      %v706 = vpop.f32.mrf.mxu0
      %v707 = vadd.f32 0.0, %v706
      %v708 = vpop.f32.mrf.mxu0
      %v709 = vpop.f32.mrf.mxu0
      %v710 = vpop.f32.mrf.mxu0
      %711 = vdwg.mxu0
      %v712 = vmul.f32 %v707, %v660
      %v713 = vpack.c.bf16 %v712, %v712
      %715 = vrot.lane.b32.xlu0 %v598, 120
      %v716 = vpop.permute.xlu0 %715
      %717 = vrot.lane.b32.xlu0 %v599, 120
      %v718 = vpop.permute.xlu0 %717
      %v720 = vsel %vm604, %v716, 0
      %v723 = vsel %vm604, %v718, 0
      %725 = vmatprep.subr.bf16.mxu0 0
      %726 = vmatpush1.bf16.xpose.msra.mxu0 0
      %727 = vmatprep.subr.bf16.mxu0 0
      %728 = vmatpush1.bf16.xpose.msra.mxu0 0
      %729 = vmatprep.subr.bf16.mxu0 0
      %730 = vmatpush1.bf16.xpose.msra.mxu0 0
      %731 = vmatprep.subr.bf16.mxu0 0
      %732 = vmatpush1.bf16.xpose.msra.mxu0 0
      %733 = vmatprep.subr.bf16.mxu0 0
      %734 = vmatpush1.bf16.xpose.msra.mxu0 0
      %735 = vmatprep.subr.bf16.mxu0 0
      %736 = vmatpush1.bf16.xpose.msra.mxu0 0
      %737 = vmatprep.subr.bf16.mxu0 0
      %738 = vmatpush1.bf16.xpose.msra.mxu0 0
      %739 = vmatprep.subr.bf16.mxu0 0
      %740 = vmatpush1.bf16.xpose.msra.mxu0 %v723
      %741 = vmatprep.subr.bf16.mxu0 0
      %742 = vmatpush2.bf16.xpose.msra.mxu0 0
      %743 = vmatprep.subr.bf16.mxu0 0
      %744 = vmatpush2.bf16.xpose.msra.mxu0 0
      %745 = vmatprep.subr.bf16.mxu0 0
      %746 = vmatpush2.bf16.xpose.msra.mxu0 0
      %747 = vmatprep.subr.bf16.mxu0 0
      %748 = vmatpush2.bf16.xpose.msra.mxu0 0
      %749 = vmatprep.subr.bf16.mxu0 0
      %750 = vmatpush2.bf16.xpose.msra.mxu0 0
      %751 = vmatprep.subr.bf16.mxu0 0
      %752 = vmatpush2.bf16.xpose.msra.mxu0 0
      %753 = vmatprep.subr.bf16.mxu0 0
      %754 = vmatpush2.bf16.xpose.msra.mxu0 0
      %755 = vmatprep.subr.bf16.mxu0 0
      %756 = vmatpush2.bf16.xpose.msra.mxu0 0
      %757 = vmatprep.mubr.bf16.mxu0 0
      %758 = vmatmul.mubr.bf16.gmra.mxu0 %v720
      %v759 = vpop.f32.mrf.mxu0
      %v760 = vadd.f32 %v464, %v759
      %v761 = vpop.f32.mrf.mxu0
      %v762 = vpop.f32.mrf.mxu0
      %v763 = vpop.f32.mrf.mxu0
      %764 = vdwg.mxu0
      %v765 = vsel %vm604, %v760, -inf
      %766 = vmax.xlane.f32.xlu0 %v765
      %v767 = vpop.xlane.xlu0 %766
      %v768 = vsub.f32 %v760, %v767
      %v769 = vmul.f32 %v768, 1.442695
      %v770 = vpow.pop %v769
      %v771 = vsel %vm604, %v770, 0.0
      %772 = vadd.xlane.f32.xlu0 %v771
      %v773 = vpop.xlane.xlu0 %772
      %v774 = vrcp.pop %v773
      %v775 = vpack.c.bf16 %v770, %v770
      %776 = vrot.lane.b32.xlu0 %v599, 88
      %v777 = vpop.permute.xlu0 %776
      %v779 = vsel %vm604, %v775, 0
      %v782 = vsel %vm668, %v777, 0
      %784 = vmatprep.subr.bf16.mxu0 0
      %785 = vmatpush1.bf16.msra.mxu0 0
      %786 = vmatprep.subr.bf16.mxu0 0
      %787 = vmatpush1.bf16.msra.mxu0 0
      %788 = vmatprep.subr.bf16.mxu0 0
      %789 = vmatpush1.bf16.msra.mxu0 0
      %790 = vmatprep.subr.bf16.mxu0 0
      %791 = vmatpush1.bf16.msra.mxu0 0
      %792 = vmatprep.subr.bf16.mxu0 0
      %793 = vmatpush1.bf16.msra.mxu0 0
      %794 = vmatprep.subr.bf16.mxu0 0
      %795 = vmatpush1.bf16.msra.mxu0 0
      %796 = vmatprep.subr.bf16.mxu0 0
      %797 = vmatpush1.bf16.msra.mxu0 0
      %798 = vmatprep.subr.bf16.mxu0 0
      %799 = vmatpush1.bf16.msra.mxu0 %v782
      %800 = vmatprep.subr.bf16.mxu0 0
      %801 = vmatpush2.bf16.msra.mxu0 0
      %802 = vmatprep.subr.bf16.mxu0 0
      %803 = vmatpush2.bf16.msra.mxu0 0
      %804 = vmatprep.subr.bf16.mxu0 0
      %805 = vmatpush2.bf16.msra.mxu0 0
      %806 = vmatprep.subr.bf16.mxu0 0
      %807 = vmatpush2.bf16.msra.mxu0 0
      %808 = vmatprep.subr.bf16.mxu0 0
      %809 = vmatpush2.bf16.msra.mxu0 0
      %810 = vmatprep.subr.bf16.mxu0 0
      %811 = vmatpush2.bf16.msra.mxu0 0
      %812 = vmatprep.subr.bf16.mxu0 0
      %813 = vmatpush2.bf16.msra.mxu0 0
      %814 = vmatprep.subr.bf16.mxu0 0
      %815 = vmatpush2.bf16.msra.mxu0 0
      %816 = vmatprep.mubr.bf16.mxu0 0
      %817 = vmatmul.mubr.bf16.gmra.mxu0 %v779
      %v818 = vpop.f32.mrf.mxu0
      %v819 = vadd.f32 0.0, %v818
      %v820 = vpop.f32.mrf.mxu0
      %v821 = vpop.f32.mrf.mxu0
      %v822 = vpop.f32.mrf.mxu0
      %823 = vdwg.mxu0
      %v824 = vmul.f32 %v819, %v774
      %v825 = vpack.c.bf16 %v824, %v824
      %v827 = vsel %vm604, %v825, 0
      %v830 = vsel %vm668, %v601, 0
      %832 = vmatprep.subr.bf16.mxu0 0
      %833 = vmatpush1.bf16.msra.mxu0 0
      %834 = vmatprep.subr.bf16.mxu0 0
      %835 = vmatpush1.bf16.msra.mxu0 0
      %836 = vmatprep.subr.bf16.mxu0 0
      %837 = vmatpush1.bf16.msra.mxu0 0
      %838 = vmatprep.subr.bf16.mxu0 0
      %839 = vmatpush1.bf16.msra.mxu0 0
      %840 = vmatprep.subr.bf16.mxu0 0
      %841 = vmatpush1.bf16.msra.mxu0 0
      %842 = vmatprep.subr.bf16.mxu0 0
      %843 = vmatpush1.bf16.msra.mxu0 0
      %844 = vmatprep.subr.bf16.mxu0 0
      %845 = vmatpush1.bf16.msra.mxu0 0
      %846 = vmatprep.subr.bf16.mxu0 0
      %847 = vmatpush1.bf16.msra.mxu0 %v830
      %848 = vmatprep.subr.bf16.mxu0 0
      %849 = vmatpush2.bf16.msra.mxu0 0
      %850 = vmatprep.subr.bf16.mxu0 0
      %851 = vmatpush2.bf16.msra.mxu0 0
      %852 = vmatprep.subr.bf16.mxu0 0
      %853 = vmatpush2.bf16.msra.mxu0 0
      %854 = vmatprep.subr.bf16.mxu0 0
      %855 = vmatpush2.bf16.msra.mxu0 0
      %856 = vmatprep.subr.bf16.mxu0 0
      %857 = vmatpush2.bf16.msra.mxu0 0
      %858 = vmatprep.subr.bf16.mxu0 0
      %859 = vmatpush2.bf16.msra.mxu0 0
      %860 = vmatprep.subr.bf16.mxu0 0
      %861 = vmatpush2.bf16.msra.mxu0 0
      %862 = vmatprep.subr.bf16.mxu0 0
      %863 = vmatpush2.bf16.msra.mxu0 0
      %864 = vmatprep.mubr.bf16.mxu0 0
      %865 = vmatmul.mubr.bf16.gmra.mxu0 %v827
      %v866 = vpop.f32.mrf.mxu0
      %v867 = vadd.f32 0.0, %v866
      %v868 = vpop.f32.mrf.mxu0
      %v869 = vpop.f32.mrf.mxu0
      %v870 = vpop.f32.mrf.mxu0
      %871 = vdwg.mxu0
      %v873 = vsel %vm604, %v713, 0
      %v876 = vsel %vm668, %v600, 0
      %878 = vmatprep.subr.bf16.mxu0 0
      %879 = vmatpush1.bf16.msra.mxu0 0
      %880 = vmatprep.subr.bf16.mxu0 0
      %881 = vmatpush1.bf16.msra.mxu0 0
      %882 = vmatprep.subr.bf16.mxu0 0
      %883 = vmatpush1.bf16.msra.mxu0 0
      %884 = vmatprep.subr.bf16.mxu0 0
      %885 = vmatpush1.bf16.msra.mxu0 0
      %886 = vmatprep.subr.bf16.mxu0 0
      %887 = vmatpush1.bf16.msra.mxu0 0
      %888 = vmatprep.subr.bf16.mxu0 0
      %889 = vmatpush1.bf16.msra.mxu0 0
      %890 = vmatprep.subr.bf16.mxu0 0
      %891 = vmatpush1.bf16.msra.mxu0 0
      %892 = vmatprep.subr.bf16.mxu0 0
      %893 = vmatpush1.bf16.msra.mxu0 %v876
      %894 = vmatprep.subr.bf16.mxu0 0
      %895 = vmatpush2.bf16.msra.mxu0 0
      %896 = vmatprep.subr.bf16.mxu0 0
      %897 = vmatpush2.bf16.msra.mxu0 0
      %898 = vmatprep.subr.bf16.mxu0 0
      %899 = vmatpush2.bf16.msra.mxu0 0
      %900 = vmatprep.subr.bf16.mxu0 0
      %901 = vmatpush2.bf16.msra.mxu0 0
      %902 = vmatprep.subr.bf16.mxu0 0
      %903 = vmatpush2.bf16.msra.mxu0 0
      %904 = vmatprep.subr.bf16.mxu0 0
      %905 = vmatpush2.bf16.msra.mxu0 0
      %906 = vmatprep.subr.bf16.mxu0 0
      %907 = vmatpush2.bf16.msra.mxu0 0
      %908 = vmatprep.subr.bf16.mxu0 0
      %909 = vmatpush2.bf16.msra.mxu0 0
      %910 = vmatprep.mubr.bf16.mxu0 0
      %911 = vmatmul.mubr.bf16.gmra.mxu0 %v873
      %v912 = vpop.f32.mrf.mxu0
      %v913 = vadd.f32 %v867, %v912
      %v914 = vpop.f32.mrf.mxu0
      %v915 = vpop.f32.mrf.mxu0
      %v916 = vpop.f32.mrf.mxu0
      %917 = vdwg.mxu0
      %918 = vrot.lane.b32.xlu0 %v598, 112
      %v919 = vpop.permute.xlu0 %918
      %920 = vrot.lane.b32.xlu0 %v599, 112
      %v921 = vpop.permute.xlu0 %920
      %v923 = vsel %vm604, %v919, 0
      %v926 = vsel %vm604, %v921, 0
      %928 = vmatprep.subr.bf16.mxu0 0
      %929 = vmatpush1.bf16.xpose.msra.mxu0 0
      %930 = vmatprep.subr.bf16.mxu0 0
      %931 = vmatpush1.bf16.xpose.msra.mxu0 0
      %932 = vmatprep.subr.bf16.mxu0 0
      %933 = vmatpush1.bf16.xpose.msra.mxu0 0
      %934 = vmatprep.subr.bf16.mxu0 0
      %935 = vmatpush1.bf16.xpose.msra.mxu0 0
      %936 = vmatprep.subr.bf16.mxu0 0
      %937 = vmatpush1.bf16.xpose.msra.mxu0 0
      %938 = vmatprep.subr.bf16.mxu0 0
      %939 = vmatpush1.bf16.xpose.msra.mxu0 0
      %940 = vmatprep.subr.bf16.mxu0 0
      %941 = vmatpush1.bf16.xpose.msra.mxu0 0
      %942 = vmatprep.subr.bf16.mxu0 0
      %943 = vmatpush1.bf16.xpose.msra.mxu0 %v926
      %944 = vmatprep.subr.bf16.mxu0 0
      %945 = vmatpush2.bf16.xpose.msra.mxu0 0
      %946 = vmatprep.subr.bf16.mxu0 0
      %947 = vmatpush2.bf16.xpose.msra.mxu0 0
      %948 = vmatprep.subr.bf16.mxu0 0
      %949 = vmatpush2.bf16.xpose.msra.mxu0 0
      %950 = vmatprep.subr.bf16.mxu0 0
      %951 = vmatpush2.bf16.xpose.msra.mxu0 0
      %952 = vmatprep.subr.bf16.mxu0 0
      %953 = vmatpush2.bf16.xpose.msra.mxu0 0
      %954 = vmatprep.subr.bf16.mxu0 0
      %955 = vmatpush2.bf16.xpose.msra.mxu0 0
      %956 = vmatprep.subr.bf16.mxu0 0
      %957 = vmatpush2.bf16.xpose.msra.mxu0 0
      %958 = vmatprep.subr.bf16.mxu0 0
      %959 = vmatpush2.bf16.xpose.msra.mxu0 0
      %960 = vmatprep.mubr.bf16.mxu0 0
      %961 = vmatmul.mubr.bf16.gmra.mxu0 %v923
      %v962 = vpop.f32.mrf.mxu0
      %v963 = vadd.f32 %v464, %v962
      %v964 = vpop.f32.mrf.mxu0
      %v965 = vpop.f32.mrf.mxu0
      %v966 = vpop.f32.mrf.mxu0
      %967 = vdwg.mxu0
      %v968 = vsel %vm604, %v963, -inf
      %969 = vmax.xlane.f32.xlu0 %v968
      %v970 = vpop.xlane.xlu0 %969
      %v971 = vsub.f32 %v963, %v970
      %v972 = vmul.f32 %v971, 1.442695
      %v973 = vpow.pop %v972
      %v974 = vsel %vm604, %v973, 0.0
      %975 = vadd.xlane.f32.xlu0 %v974
      %v976 = vpop.xlane.xlu0 %975
      %v977 = vrcp.pop %v976
      %v978 = vpack.c.bf16 %v973, %v973
      %979 = vrot.lane.b32.xlu0 %v599, 80
      %v980 = vpop.permute.xlu0 %979
      %v982 = vsel %vm604, %v978, 0
      %v985 = vsel %vm668, %v980, 0
      %987 = vmatprep.subr.bf16.mxu0 0
      %988 = vmatpush1.bf16.msra.mxu0 0
      %989 = vmatprep.subr.bf16.mxu0 0
      %990 = vmatpush1.bf16.msra.mxu0 0
      %991 = vmatprep.subr.bf16.mxu0 0
      %992 = vmatpush1.bf16.msra.mxu0 0
      %993 = vmatprep.subr.bf16.mxu0 0
      %994 = vmatpush1.bf16.msra.mxu0 0
      %995 = vmatprep.subr.bf16.mxu0 0
      %996 = vmatpush1.bf16.msra.mxu0 0
      %997 = vmatprep.subr.bf16.mxu0 0
      %998 = vmatpush1.bf16.msra.mxu0 0
      %999 = vmatprep.subr.bf16.mxu0 0
      %1000 = vmatpush1.bf16.msra.mxu0 0
      %1001 = vmatprep.subr.bf16.mxu0 0
      %1002 = vmatpush1.bf16.msra.mxu0 %v985
      %1003 = vmatprep.subr.bf16.mxu0 0
      %1004 = vmatpush2.bf16.msra.mxu0 0
      %1005 = vmatprep.subr.bf16.mxu0 0
      %1006 = vmatpush2.bf16.msra.mxu0 0
      %1007 = vmatprep.subr.bf16.mxu0 0
      %1008 = vmatpush2.bf16.msra.mxu0 0
      %1009 = vmatprep.subr.bf16.mxu0 0
      %1010 = vmatpush2.bf16.msra.mxu0 0
      %1011 = vmatprep.subr.bf16.mxu0 0
      %1012 = vmatpush2.bf16.msra.mxu0 0
      %1013 = vmatprep.subr.bf16.mxu0 0
      %1014 = vmatpush2.bf16.msra.mxu0 0
      %1015 = vmatprep.subr.bf16.mxu0 0
      %1016 = vmatpush2.bf16.msra.mxu0 0
      %1017 = vmatprep.subr.bf16.mxu0 0
      %1018 = vmatpush2.bf16.msra.mxu0 0
      %1019 = vmatprep.mubr.bf16.mxu0 0
      %1020 = vmatmul.mubr.bf16.gmra.mxu0 %v982
      %v1021 = vpop.f32.mrf.mxu0
      %v1022 = vadd.f32 0.0, %v1021
      %v1023 = vpop.f32.mrf.mxu0
      %v1024 = vpop.f32.mrf.mxu0
      %v1025 = vpop.f32.mrf.mxu0
      %1026 = vdwg.mxu0
      %v1027 = vmul.f32 %v1022, %v977
      %v1028 = vpack.c.bf16 %v1027, %v1027
      %v1030 = vsel %vm604, %v1028, 0
      %v1033 = vsel %vm668, %v602, 0
      %1035 = vmatprep.subr.bf16.mxu0 0
      %1036 = vmatpush1.bf16.msra.mxu0 0
      %1037 = vmatprep.subr.bf16.mxu0 0
      %1038 = vmatpush1.bf16.msra.mxu0 0
      %1039 = vmatprep.subr.bf16.mxu0 0
      %1040 = vmatpush1.bf16.msra.mxu0 0
      %1041 = vmatprep.subr.bf16.mxu0 0
      %1042 = vmatpush1.bf16.msra.mxu0 0
      %1043 = vmatprep.subr.bf16.mxu0 0
      %1044 = vmatpush1.bf16.msra.mxu0 0
      %1045 = vmatprep.subr.bf16.mxu0 0
      %1046 = vmatpush1.bf16.msra.mxu0 0
      %1047 = vmatprep.subr.bf16.mxu0 0
      %1048 = vmatpush1.bf16.msra.mxu0 0
      %1049 = vmatprep.subr.bf16.mxu0 0
      %1050 = vmatpush1.bf16.msra.mxu0 %v1033
      %1051 = vmatprep.subr.bf16.mxu0 0
      %1052 = vmatpush2.bf16.msra.mxu0 0
      %1053 = vmatprep.subr.bf16.mxu0 0
      %1054 = vmatpush2.bf16.msra.mxu0 0
      %1055 = vmatprep.subr.bf16.mxu0 0
      %1056 = vmatpush2.bf16.msra.mxu0 0
      %1057 = vmatprep.subr.bf16.mxu0 0
      %1058 = vmatpush2.bf16.msra.mxu0 0
      %1059 = vmatprep.subr.bf16.mxu0 0
      %1060 = vmatpush2.bf16.msra.mxu0 0
      %1061 = vmatprep.subr.bf16.mxu0 0
      %1062 = vmatpush2.bf16.msra.mxu0 0
      %1063 = vmatprep.subr.bf16.mxu0 0
      %1064 = vmatpush2.bf16.msra.mxu0 0
      %1065 = vmatprep.subr.bf16.mxu0 0
      %1066 = vmatpush2.bf16.msra.mxu0 0
      %1067 = vmatprep.mubr.bf16.mxu0 0
      %1068 = vmatmul.mubr.bf16.gmra.mxu0 %v1030
      %v1069 = vpop.f32.mrf.mxu0
      %v1070 = vadd.f32 0.0, %v1069
      %v1071 = vpop.f32.mrf.mxu0
      %v1072 = vpop.f32.mrf.mxu0
      %v1073 = vpop.f32.mrf.mxu0
      %1074 = vdwg.mxu0
      %v1075 = vadd.f32 %v913, %v1070
      %1076 = vrot.lane.b32.xlu0 %v598, 104
      %v1077 = vpop.permute.xlu0 %1076
      %1078 = vrot.lane.b32.xlu0 %v599, 104
      %v1079 = vpop.permute.xlu0 %1078
      %v1081 = vsel %vm604, %v1077, 0
      %v1084 = vsel %vm604, %v1079, 0
      %1086 = vmatprep.subr.bf16.mxu0 0
      %1087 = vmatpush1.bf16.xpose.msra.mxu0 0
      %1088 = vmatprep.subr.bf16.mxu0 0
      %1089 = vmatpush1.bf16.xpose.msra.mxu0 0
      %1090 = vmatprep.subr.bf16.mxu0 0
      %1091 = vmatpush1.bf16.xpose.msra.mxu0 0
      %1092 = vmatprep.subr.bf16.mxu0 0
      %1093 = vmatpush1.bf16.xpose.msra.mxu0 0
      %1094 = vmatprep.subr.bf16.mxu0 0
      %1095 = vmatpush1.bf16.xpose.msra.mxu0 0
      %1096 = vmatprep.subr.bf16.mxu0 0
      %1097 = vmatpush1.bf16.xpose.msra.mxu0 0
      %1098 = vmatprep.subr.bf16.mxu0 0
      %1099 = vmatpush1.bf16.xpose.msra.mxu0 0
      %1100 = vmatprep.subr.bf16.mxu0 0
      %1101 = vmatpush1.bf16.xpose.msra.mxu0 %v1084
      %1102 = vmatprep.subr.bf16.mxu0 0
      %1103 = vmatpush2.bf16.xpose.msra.mxu0 0
      %1104 = vmatprep.subr.bf16.mxu0 0
      %1105 = vmatpush2.bf16.xpose.msra.mxu0 0
      %1106 = vmatprep.subr.bf16.mxu0 0
      %1107 = vmatpush2.bf16.xpose.msra.mxu0 0
      %1108 = vmatprep.subr.bf16.mxu0 0
      %1109 = vmatpush2.bf16.xpose.msra.mxu0 0
      %1110 = vmatprep.subr.bf16.mxu0 0
      %1111 = vmatpush2.bf16.xpose.msra.mxu0 0
      %1112 = vmatprep.subr.bf16.mxu0 0
      %1113 = vmatpush2.bf16.xpose.msra.mxu0 0
      %1114 = vmatprep.subr.bf16.mxu0 0
      %1115 = vmatpush2.bf16.xpose.msra.mxu0 0
      %1116 = vmatprep.subr.bf16.mxu0 0
      %1117 = vmatpush2.bf16.xpose.msra.mxu0 0
      %1118 = vmatprep.mubr.bf16.mxu0 0
      %1119 = vmatmul.mubr.bf16.gmra.mxu0 %v1081
      %v1120 = vpop.f32.mrf.mxu0
      %v1121 = vadd.f32 %v464, %v1120
      %v1122 = vpop.f32.mrf.mxu0
      %v1123 = vpop.f32.mrf.mxu0
      %v1124 = vpop.f32.mrf.mxu0
      %1125 = vdwg.mxu0
      %v1126 = vsel %vm604, %v1121, -inf
      %1127 = vmax.xlane.f32.xlu0 %v1126
      %v1128 = vpop.xlane.xlu0 %1127
      %v1129 = vsub.f32 %v1121, %v1128
      %v1130 = vmul.f32 %v1129, 1.442695
      %v1131 = vpow.pop %v1130
      %v1132 = vsel %vm604, %v1131, 0.0
      %1133 = vadd.xlane.f32.xlu0 %v1132
      %v1134 = vpop.xlane.xlu0 %1133
      %v1135 = vrcp.pop %v1134
      %v1136 = vpack.c.bf16 %v1131, %v1131
      %1137 = vrot.lane.b32.xlu0 %v599, 72
      %v1138 = vpop.permute.xlu0 %1137
      %v1140 = vsel %vm604, %v1136, 0
      %v1143 = vsel %vm668, %v1138, 0
      %1145 = vmatprep.subr.bf16.mxu0 0
      %1146 = vmatpush1.bf16.msra.mxu0 0
      %1147 = vmatprep.subr.bf16.mxu0 0
      %1148 = vmatpush1.bf16.msra.mxu0 0
      %1149 = vmatprep.subr.bf16.mxu0 0
      %1150 = vmatpush1.bf16.msra.mxu0 0
      %1151 = vmatprep.subr.bf16.mxu0 0
      %1152 = vmatpush1.bf16.msra.mxu0 0
      %1153 = vmatprep.subr.bf16.mxu0 0
      %1154 = vmatpush1.bf16.msra.mxu0 0
      %1155 = vmatprep.subr.bf16.mxu0 0
      %1156 = vmatpush1.bf16.msra.mxu0 0
      %1157 = vmatprep.subr.bf16.mxu0 0
      %1158 = vmatpush1.bf16.msra.mxu0 0
      %1159 = vmatprep.subr.bf16.mxu0 0
      %1160 = vmatpush1.bf16.msra.mxu0 %v1143
      %1161 = vmatprep.subr.bf16.mxu0 0
      %1162 = vmatpush2.bf16.msra.mxu0 0
      %1163 = vmatprep.subr.bf16.mxu0 0
      %1164 = vmatpush2.bf16.msra.mxu0 0
      %1165 = vmatprep.subr.bf16.mxu0 0
      %1166 = vmatpush2.bf16.msra.mxu0 0
      %1167 = vmatprep.subr.bf16.mxu0 0
      %1168 = vmatpush2.bf16.msra.mxu0 0
      %1169 = vmatprep.subr.bf16.mxu0 0
      %1170 = vmatpush2.bf16.msra.mxu0 0
      %1171 = vmatprep.subr.bf16.mxu0 0
      %1172 = vmatpush2.bf16.msra.mxu0 0
      %1173 = vmatprep.subr.bf16.mxu0 0
      %1174 = vmatpush2.bf16.msra.mxu0 0
      %1175 = vmatprep.subr.bf16.mxu0 0
      %1176 = vmatpush2.bf16.msra.mxu0 0
      %1177 = vmatprep.mubr.bf16.mxu0 0
      %1178 = vmatmul.mubr.bf16.gmra.mxu0 %v1140
      %v1179 = vpop.f32.mrf.mxu0
      %v1180 = vadd.f32 0.0, %v1179
      %v1181 = vpop.f32.mrf.mxu0
      %v1182 = vpop.f32.mrf.mxu0
      %v1183 = vpop.f32.mrf.mxu0
      %1184 = vdwg.mxu0
      %v1185 = vmul.f32 %v1180, %v1135
      %v1186 = vpack.c.bf16 %v1185, %v1185
      %v1188 = vsel %vm604, %v1186, 0
      %v1191 = vsel %vm668, %v603, 0
      %1193 = vmatprep.subr.bf16.mxu0 0
      %1194 = vmatpush1.bf16.msra.mxu0 0
      %1195 = vmatprep.subr.bf16.mxu0 0
      %1196 = vmatpush1.bf16.msra.mxu0 0
      %1197 = vmatprep.subr.bf16.mxu0 0
      %1198 = vmatpush1.bf16.msra.mxu0 0
      %1199 = vmatprep.subr.bf16.mxu0 0
      %1200 = vmatpush1.bf16.msra.mxu0 0
      %1201 = vmatprep.subr.bf16.mxu0 0
      %1202 = vmatpush1.bf16.msra.mxu0 0
      %1203 = vmatprep.subr.bf16.mxu0 0
      %1204 = vmatpush1.bf16.msra.mxu0 0
      %1205 = vmatprep.subr.bf16.mxu0 0
      %1206 = vmatpush1.bf16.msra.mxu0 0
      %1207 = vmatprep.subr.bf16.mxu0 0
      %1208 = vmatpush1.bf16.msra.mxu0 %v1191
      %1209 = vmatprep.subr.bf16.mxu0 0
      %1210 = vmatpush2.bf16.msra.mxu0 0
      %1211 = vmatprep.subr.bf16.mxu0 0
      %1212 = vmatpush2.bf16.msra.mxu0 0
      %1213 = vmatprep.subr.bf16.mxu0 0
      %1214 = vmatpush2.bf16.msra.mxu0 0
      %1215 = vmatprep.subr.bf16.mxu0 0
      %1216 = vmatpush2.bf16.msra.mxu0 0
      %1217 = vmatprep.subr.bf16.mxu0 0
      %1218 = vmatpush2.bf16.msra.mxu0 0
      %1219 = vmatprep.subr.bf16.mxu0 0
      %1220 = vmatpush2.bf16.msra.mxu0 0
      %1221 = vmatprep.subr.bf16.mxu0 0
      %1222 = vmatpush2.bf16.msra.mxu0 0
      %1223 = vmatprep.subr.bf16.mxu0 0
      %1224 = vmatpush2.bf16.msra.mxu0 0
      %1225 = vmatprep.mubr.bf16.mxu0 0
      %1226 = vmatmul.mubr.bf16.gmra.mxu0 %v1188
      %v1227 = vpop.f32.mrf.mxu0
      %v1228 = vadd.f32 0.0, %v1227
      %v1229 = vpop.f32.mrf.mxu0
      %v1230 = vpop.f32.mrf.mxu0
      %v1231 = vpop.f32.mrf.mxu0
      %1232 = vdwg.mxu0
      %v1233 = vadd.f32 %v1075, %v1228
      %v1234 = vld [vmem:[%s8] sm:$0x1]
      %v1236 = vlaneseq
      %v1237 = vshrl.u32 %v1236, 7
      %v1238 = vsub.s32 0, %v1237
      %v1239 = vrot.slane %v1234, %v1238
      %v1241 = vadd.f32 %v1233, %v1239
      %v1242 = vadd.f32 %v459, %v1241
      %v1243 = vsel %vm488, %v1242, 0.0
      %1244 = vadd.xlane.f32.xlu0 %v1243
      %v1245 = vpop.xlane.xlu0 %1244
      %v1246 = vrcp.pop 32.0
      %v1247 = vmul.f32 %v1245, %v1246
      %v1248 = vsub.f32 %v1242, %v1247
      %v1249 = vmul.f32 %v1248, %v1248
      %v1250 = vsel %vm488, %v1249, 0.0
      %1251 = vadd.xlane.f32.xlu0 %v1250
      %v1252 = vpop.xlane.xlu0 %1251
      %v1253 = vmul.f32 %v1252, %v1246
      %v1254 = vld [vmem:[%s9] sm:$0x1]
      %v1256 = vlaneseq
      %v1257 = vshrl.u32 %v1256, 7
      %v1258 = vsub.s32 0, %v1257
      %v1259 = vrot.slane %v1254, %v1258
      %v1261 = vmul.f32 %v1259, %v1248
      %v1262 = vadd.f32 %v1253, 1e-06
      %v1263 = vrsqrt.pop %v1262
      %v1264 = vmul.f32 %v1261, %v1263
      %v1265 = vld [vmem:[%s10] sm:$0x1]
      %v1267 = vlaneseq
      %v1268 = vshrl.u32 %v1267, 7
      %v1269 = vsub.s32 0, %v1268
      %v1270 = vrot.slane %v1265, %v1269
      %v1272 = vadd.f32 %v1264, %v1270
      %1273 = vst.msk [vmem:[%s457] sm:$0xff] %vm488, %v1272
      %p1274 = scmp.lt.s32.totalorder %s26, 1
      %s1275 = scalar_select %p1274, %s26, 1
      %p1276 = scmp.lt.s32.totalorder %s27, 0
      %s1277 = scalar_select %p1276, %s27, 0
      %s1278 = sadd.s32 %s1277, %s1275
      %s1279 = smul.addr %s1278, 8
      %s1280 = scalar_lea.vmem %s11, %s1279
      // Predicated region
      $region65: #{decoder_forward.9} parent=63 // pred_check
        %p1281 = pneg %p304
      $region66: #{decoder_forward.9} parent=63 // pred_check_branch
        %1283 = sbr.rel (%p1281) target = $region68
      $region67: #{decoder_forward.9} parent=63 // pred_region
        _
      $region68: #{decoder_forward.9} parent=63 // pred_fallthru
        _
    $region64: #{decoder_forward.9} parent=5 // pred_fallthru
      _
    %p1284 = scmp.le.s32.totalorder 2, %s17
    // Predicated region
    $region69: #{decoder_forward.9} parent=5 // pred_check
      %p1285 = pneg %p1284
    $region70: #{decoder_forward.9} parent=5 // pred_check_branch
      %1287 = sbr.rel (%p1285) target = $region72
    $region71: #{decoder_forward.9} parent=5 // pred_region
      %s1288 = ssub.s32 %s17, 2
      // Predicated region
      $region73: #{decoder_forward.9} parent=71 // pred_check
        %p1289 = pneg %p310
      $region74: #{decoder_forward.9} parent=71 // pred_check_branch
        %1291 = sbr.rel (%p1289) target = $region76
      $region75: #{decoder_forward.9} parent=71 // pred_region
        %p1292 = scmp.lt.s32.totalorder %s28, 1
        %s1293 = scalar_select %p1292, %s28, 1
        %p1294 = scmp.lt.s32.totalorder %s29, 0
        %s1295 = scalar_select %p1294, %s29, 0
        %s1296 = sadd.s32 %s1295, %s1293
        %s1297 = smul.addr %s1296, 8
        %s1298 = scalar_lea.vmem %s11, %s1297
      $region76: #{decoder_forward.9} parent=71 // pred_fallthru
        _
    $region72: #{decoder_forward.9} parent=5 // pred_fallthru
      _
  $region6: #{decoder_forward.9} parent=0 // loop_footer
    %s21 = sadd.s32 1, %s17
  $region7: #{decoder_forward.9} parent=0 // loop_footer_branch
    %16 = sbr.rel target = $region3
  $region8: #{decoder_forward.9} parent=0 // loop_exit
    _

// kernel: decoder_forward.6
$region0: #{decoder_forward.6}
  #allocation0 [shape = 'u32[]', space=smem, size = 0x4, offset = 0x4, fixed_abs, tag = 'smem constant byte address 0x4 - core index']
  #allocation1 [shape = 'u32[144,128]{1,0:T(1,128)}', space=vmem, size = 0x12000, scoped, tag = 'internal scratch']
  %s0 = inlined_call_operand.vmem [shape: f32[2,8,32], index: 0, kind: input, shape index: {}, may-alias: {0,1}]
  %s1 = inlined_call_operand.vmem [shape: f32[2,8,32], index: 1, kind: input, shape index: {}, may-alias: {0,1}]
  %s2 = inlined_call_operand.vmem [shape: bf16[2,8,8], index: 2, kind: input, shape index: {}]
  %s3 = inlined_call_operand.vmem [shape: bf16[32,32], index: 3, kind: input, shape index: {}]
  %s4 = inlined_call_operand.hbm [shape: f32[1,32], index: 4, kind: input, shape index: {}]
  %s5 = inlined_call_operand.vmem [shape: bf16[32,64], index: 5, kind: input, shape index: {}]
  %s6 = inlined_call_operand.hbm [shape: f32[1,64], index: 6, kind: input, shape index: {}]
  %s7 = inlined_call_operand.vmem [shape: bf16[32,32], index: 7, kind: input, shape index: {}]
  %s8 = inlined_call_operand.hbm [shape: f32[1,32], index: 8, kind: input, shape index: {}]
  %s9 = inlined_call_operand.hbm [shape: f32[1,32], index: 9, kind: input, shape index: {}]
  %s10 = inlined_call_operand.hbm [shape: f32[1,32], index: 10, kind: input, shape index: {}]
  %s11 = inlined_call_operand.vmem [shape: f32[2,8,32], index: 11, kind: output, shape index: {}]
  %s12 = sld [smem:[#allocation0]]
  $region97: #{decoder_forward.6} parent=0
    _
  %s14 = ssub.s32 1, %s12
  %s15 = scalar_select 0, %s14, %s12
  $region1: #{decoder_forward.6} parent=0
    #allocation2 [shape = 'u8[512]{0}', space=vmem, size = 0x400, scoped, tag = 'input window, operand 4, single buffered']
    #allocation3 [shape = 's32[2]{0}', space=sflag, size = 0x8, scoped, tag = 'scoped memory for decoder_forward.6']
    #allocation4 [shape = 'u8[512]{0}', space=vmem, size = 0x400, scoped, tag = 'input window, operand 6, single buffered']
    #allocation5 [shape = 's32[1]{0}', space=sflag, size = 0x4, scoped, tag = 'scoped memory for decoder_forward.6']
    #allocation6 [shape = 'u8[512]{0}', space=vmem, size = 0x400, scoped, tag = 'input window, operand 8, single buffered']
    #allocation7 [shape = 'u8[512]{0}', space=vmem, size = 0x400, scoped, tag = 'input window, operand 9, single buffered']
    #allocation8 [shape = 's32[1]{0}', space=sflag, size = 0x4, scoped, tag = 'scoped memory for decoder_forward.6']
    #allocation9 [shape = 'u8[512]{0}', space=vmem, size = 0x400, scoped, tag = 'input window, operand 10, single buffered']
    %16 = vsyncpa [#allocation3], 0
    %17 = vsyncpa [#allocation5], 0
    %18 = vsyncpa [#allocation8], 0
    loop: start=0, step=1, limit=4
    $region2: #{decoder_forward.6} parent=1 // loop_pre_header
      _
    $region3: #{decoder_forward.6} parent=1 // loop_header
      %s20 = sphi 0, %s24
      %p21 = scmp.ge.s32.totalorder %s20, 4
      %s27 = sphi 0, %s39
      %s28 = sphi 0, %s35
      %s29 = sphi 0, %s27
      %s30 = sphi 0, %s28
      %s31 = sphi 0, %s29
      %s32 = sphi 0, %s30
      %s44 = sphi 0, %s46
      %s47 = sphi 0, %s44
      %s48 = sphi 0, %s47
      %s64 = sphi 0, %s48
      %s70 = sphi 0, %s72
      %s73 = sphi 0, %s70
      %s74 = sphi 0, %s73
      %s90 = sphi 0, %s74
      %s98 = sphi 0, %s100
      %s101 = sphi 0, %s98
      %s102 = sphi 0, %s101
      %s118 = sphi 0, %s102
      %s122 = sphi 0, %s122
      %s124 = sphi 0, %s122
      %s125 = sphi 0, %s124
      %s139 = sphi 0, %s125
      %s143 = sphi 0, %s143
      %s145 = sphi 0, %s143
      %s146 = sphi 0, %s145
      %s160 = sphi 0, %s146
      %s164 = sphi 0, %s164
      %s166 = sphi 0, %s164
      %s167 = sphi 0, %s166
      %s181 = sphi 0, %s167
      %s185 = sphi 0, %s185
      %s187 = sphi 0, %s185
      %s188 = sphi 0, %s187
      %s202 = sphi 0, %s188
      %s206 = sphi 0, %s206
      %s208 = sphi 0, %s206
      %s209 = sphi 0, %s208
      %s223 = sphi 0, %s209
      %s227 = sphi 0, %s227
      %s229 = sphi 0, %s227
      %s230 = sphi 0, %s229
      %s244 = sphi 0, %s230
      %s248 = sphi 0, %s248
      %s250 = sphi 0, %s248
      %s251 = sphi 0, %s250
      %s265 = sphi 0, %s251
      %s269 = sphi 0, %s269
      %s271 = sphi 0, %s269
      %s272 = sphi 0, %s271
      %s286 = sphi 0, %s272
      %s294 = sphi 0, %s296
      %s297 = sphi 0, %s294
      %s298 = sphi 0, %s297
      %s314 = sphi 0, %s298
    $region4: #{decoder_forward.6} parent=1 // loop_header_branch
      %23 = sbr.rel (%p21) target = $region8
    $region5: #{decoder_forward.6} parent=1 // loop_body
      %s25 = ssub.s32 %s20, 1
      %s26 = ssub.s32 %s20, 2
      %s33 = sadd.s32 1, %s28
      %p34 = scmp.ge.s32.totalorder %s33, 1
      %s35 = scalar_select %p34, 0, %s33
      %s36 = sadd.s32 1, %s27
      %s37 = scalar_select %p34, %s36, %s27
      %p38 = scmp.ge.s32.totalorder %s37, 2
      %s39 = scalar_select %p38, 0, %s37
      %s40 = ssub.s32 %s27, %s39
      %s41 = ssub.s32 %s28, %s35
      %s42 = sor.u32 %s40, %s41
      %p43 = scmp.eq.s32.totalorder %s42, 0
      %s45 = sadd.s32 %s44, 1
      %s46 = scalar_select %p43, %s44, %s45
      %p49 = pneg %p43
      %p50 = scmp.eq.s32.totalorder %s20, 1
      %p51 = por %p49, %p50
      %p52 = scmp.ne.s32.totalorder %s44, %s47
      %p53 = scmp.eq.s32.totalorder %s20, 0
      %p54 = por %p52, %p53
      %p55 = scmp.ne.s32.totalorder %s44, %s47
      %p56 = scmp.eq.s32.totalorder %s25, 1
      %p57 = por %p55, %p56
      %p58 = scmp.ne.s32.totalorder %s47, %s48
      %p59 = scmp.eq.s32.totalorder %s25, 0
      %p60 = por %p58, %p59
      %p61 = scmp.ne.s32.totalorder %s47, %s48
      %p62 = scmp.eq.s32.totalorder %s26, 1
      %p63 = por %p61, %p62
      %p65 = scmp.ne.s32.totalorder %s48, %s64
      %p66 = scmp.eq.s32.totalorder %s26, 0
      %p67 = por %p65, %p66
      %s68 = ssub.s32 %s27, %s39
      %p69 = scmp.eq.s32.totalorder %s68, 0
      %s71 = sadd.s32 %s70, 1
      %s72 = scalar_select %p69, %s70, %s71
      %p75 = pneg %p69
      %p76 = scmp.eq.s32.totalorder %s20, 1
      %p77 = por %p75, %p76
      %p78 = scmp.ne.s32.totalorder %s70, %s73
      %p79 = scmp.eq.s32.totalorder %s20, 0
      %p80 = por %p78, %p79
      %p81 = scmp.ne.s32.totalorder %s70, %s73
      %p82 = scmp.eq.s32.totalorder %s25, 1
      %p83 = por %p81, %p82
      %p84 = scmp.ne.s32.totalorder %s73, %s74
      %p85 = scmp.eq.s32.totalorder %s25, 0
      %p86 = por %p84, %p85
      %p87 = scmp.ne.s32.totalorder %s73, %s74
      %p88 = scmp.eq.s32.totalorder %s26, 1
      %p89 = por %p87, %p88
      %p91 = scmp.ne.s32.totalorder %s74, %s90
      %p92 = scmp.eq.s32.totalorder %s26, 0
      %p93 = por %p91, %p92
      %s94 = ssub.s32 %s27, %s39
      %s95 = ssub.s32 %s28, %s35
      %s96 = sor.u32 %s94, %s95
      %p97 = scmp.eq.s32.totalorder %s96, 0
      %s99 = sadd.s32 %s98, 1
      %s100 = scalar_select %p97, %s98, %s99
      %p103 = pneg %p97
      %p104 = scmp.eq.s32.totalorder %s20, 1
      %p105 = por %p103, %p104
      %p106 = scmp.ne.s32.totalorder %s98, %s101
      %p107 = scmp.eq.s32.totalorder %s20, 0
      %p108 = por %p106, %p107
      %p109 = scmp.ne.s32.totalorder %s98, %s101
      %p110 = scmp.eq.s32.totalorder %s25, 1
      %p111 = por %p109, %p110
      %p112 = scmp.ne.s32.totalorder %s101, %s102
      %p113 = scmp.eq.s32.totalorder %s25, 0
      %p114 = por %p112, %p113
      %p115 = scmp.ne.s32.totalorder %s101, %s102
      %p116 = scmp.eq.s32.totalorder %s26, 1
      %p117 = por %p115, %p116
      %p119 = scmp.ne.s32.totalorder %s102, %s118
      %p120 = scmp.eq.s32.totalorder %s26, 0
      %p121 = por %p119, %p120
      %s123 = sadd.s32 %s122, 1
      %p126 = scmp.eq.s32.totalorder %s20, 1
      %p127 = scmp.ne.s32.totalorder %s122, %s124
      %p128 = scmp.eq.s32.totalorder %s20, 0
      %p129 = por %p127, %p128
      %p130 = scmp.ne.s32.totalorder %s122, %s124
      %p131 = scmp.eq.s32.totalorder %s25, 1
      %p132 = por %p130, %p131
      %p133 = scmp.ne.s32.totalorder %s124, %s125
      %p134 = scmp.eq.s32.totalorder %s25, 0
      %p135 = por %p133, %p134
      %p136 = scmp.ne.s32.totalorder %s124, %s125
      %p137 = scmp.eq.s32.totalorder %s26, 1
      %p138 = por %p136, %p137
      %p140 = scmp.ne.s32.totalorder %s125, %s139
      %p141 = scmp.eq.s32.totalorder %s26, 0
      %p142 = por %p140, %p141
      %s144 = sadd.s32 %s143, 1
      %p147 = scmp.eq.s32.totalorder %s20, 1
      %p148 = scmp.ne.s32.totalorder %s143, %s145
      %p149 = scmp.eq.s32.totalorder %s20, 0
      %p150 = por %p148, %p149
      %p151 = scmp.ne.s32.totalorder %s143, %s145
      %p152 = scmp.eq.s32.totalorder %s25, 1
      %p153 = por %p151, %p152
      %p154 = scmp.ne.s32.totalorder %s145, %s146
      %p155 = scmp.eq.s32.totalorder %s25, 0
      %p156 = por %p154, %p155
      %p157 = scmp.ne.s32.totalorder %s145, %s146
      %p158 = scmp.eq.s32.totalorder %s26, 1
      %p159 = por %p157, %p158
      %p161 = scmp.ne.s32.totalorder %s146, %s160
      %p162 = scmp.eq.s32.totalorder %s26, 0
      %p163 = por %p161, %p162
      %s165 = sadd.s32 %s164, 1
      %p168 = scmp.eq.s32.totalorder %s20, 1
      %p169 = scmp.ne.s32.totalorder %s164, %s166
      %p170 = scmp.eq.s32.totalorder %s20, 0
      %p171 = por %p169, %p170
      %p172 = scmp.ne.s32.totalorder %s164, %s166
      %p173 = scmp.eq.s32.totalorder %s25, 1
      %p174 = por %p172, %p173
      %p175 = scmp.ne.s32.totalorder %s166, %s167
      %p176 = scmp.eq.s32.totalorder %s25, 0
      %p177 = por %p175, %p176
      %p178 = scmp.ne.s32.totalorder %s166, %s167
      %p179 = scmp.eq.s32.totalorder %s26, 1
      %p180 = por %p178, %p179
      %p182 = scmp.ne.s32.totalorder %s167, %s181
      %p183 = scmp.eq.s32.totalorder %s26, 0
      %p184 = por %p182, %p183
      %s186 = sadd.s32 %s185, 1
      %p189 = scmp.eq.s32.totalorder %s20, 1
      %p190 = scmp.ne.s32.totalorder %s185, %s187
      %p191 = scmp.eq.s32.totalorder %s20, 0
      %p192 = por %p190, %p191
      %p193 = scmp.ne.s32.totalorder %s185, %s187
      %p194 = scmp.eq.s32.totalorder %s25, 1
      %p195 = por %p193, %p194
      %p196 = scmp.ne.s32.totalorder %s187, %s188
      %p197 = scmp.eq.s32.totalorder %s25, 0
      %p198 = por %p196, %p197
      %p199 = scmp.ne.s32.totalorder %s187, %s188
      %p200 = scmp.eq.s32.totalorder %s26, 1
      %p201 = por %p199, %p200
      %p203 = scmp.ne.s32.totalorder %s188, %s202
      %p204 = scmp.eq.s32.totalorder %s26, 0
      %p205 = por %p203, %p204
      %s207 = sadd.s32 %s206, 1
      %p210 = scmp.eq.s32.totalorder %s20, 1
      %p211 = scmp.ne.s32.totalorder %s206, %s208
      %p212 = scmp.eq.s32.totalorder %s20, 0
      %p213 = por %p211, %p212
      %p214 = scmp.ne.s32.totalorder %s206, %s208
      %p215 = scmp.eq.s32.totalorder %s25, 1
      %p216 = por %p214, %p215
      %p217 = scmp.ne.s32.totalorder %s208, %s209
      %p218 = scmp.eq.s32.totalorder %s25, 0
      %p219 = por %p217, %p218
      %p220 = scmp.ne.s32.totalorder %s208, %s209
      %p221 = scmp.eq.s32.totalorder %s26, 1
      %p222 = por %p220, %p221
      %p224 = scmp.ne.s32.totalorder %s209, %s223
      %p225 = scmp.eq.s32.totalorder %s26, 0
      %p226 = por %p224, %p225
      %s228 = sadd.s32 %s227, 1
      %p231 = scmp.eq.s32.totalorder %s20, 1
      %p232 = scmp.ne.s32.totalorder %s227, %s229
      %p233 = scmp.eq.s32.totalorder %s20, 0
      %p234 = por %p232, %p233
      %p235 = scmp.ne.s32.totalorder %s227, %s229
      %p236 = scmp.eq.s32.totalorder %s25, 1
      %p237 = por %p235, %p236
      %p238 = scmp.ne.s32.totalorder %s229, %s230
      %p239 = scmp.eq.s32.totalorder %s25, 0
      %p240 = por %p238, %p239
      %p241 = scmp.ne.s32.totalorder %s229, %s230
      %p242 = scmp.eq.s32.totalorder %s26, 1
      %p243 = por %p241, %p242
      %p245 = scmp.ne.s32.totalorder %s230, %s244
      %p246 = scmp.eq.s32.totalorder %s26, 0
      %p247 = por %p245, %p246
      %s249 = sadd.s32 %s248, 1
      %p252 = scmp.eq.s32.totalorder %s20, 1
      %p253 = scmp.ne.s32.totalorder %s248, %s250
      %p254 = scmp.eq.s32.totalorder %s20, 0
      %p255 = por %p253, %p254
      %p256 = scmp.ne.s32.totalorder %s248, %s250
      %p257 = scmp.eq.s32.totalorder %s25, 1
      %p258 = por %p256, %p257
      %p259 = scmp.ne.s32.totalorder %s250, %s251
      %p260 = scmp.eq.s32.totalorder %s25, 0
      %p261 = por %p259, %p260
      %p262 = scmp.ne.s32.totalorder %s250, %s251
      %p263 = scmp.eq.s32.totalorder %s26, 1
      %p264 = por %p262, %p263
      %p266 = scmp.ne.s32.totalorder %s251, %s265
      %p267 = scmp.eq.s32.totalorder %s26, 0
      %p268 = por %p266, %p267
      %s270 = sadd.s32 %s269, 1
      %p273 = scmp.eq.s32.totalorder %s20, 1
      %p274 = scmp.ne.s32.totalorder %s269, %s271
      %p275 = scmp.eq.s32.totalorder %s20, 0
      %p276 = por %p274, %p275
      %p277 = scmp.ne.s32.totalorder %s269, %s271
      %p278 = scmp.eq.s32.totalorder %s25, 1
      %p279 = por %p277, %p278
      %p280 = scmp.ne.s32.totalorder %s271, %s272
      %p281 = scmp.eq.s32.totalorder %s25, 0
      %p282 = por %p280, %p281
      %p283 = scmp.ne.s32.totalorder %s271, %s272
      %p284 = scmp.eq.s32.totalorder %s26, 1
      %p285 = por %p283, %p284
      %p287 = scmp.ne.s32.totalorder %s272, %s286
      %p288 = scmp.eq.s32.totalorder %s26, 0
      %p289 = por %p287, %p288
      %s290 = ssub.s32 %s27, %s39
      %s291 = ssub.s32 %s28, %s35
      %s292 = sor.u32 %s290, %s291
      %p293 = scmp.eq.s32.totalorder %s292, 0
      %s295 = sadd.s32 %s294, 1
      %s296 = scalar_select %p293, %s294, %s295
      %p299 = pneg %p293
      %p300 = scmp.eq.s32.totalorder %s20, 1
      %p301 = por %p299, %p300
      %p302 = scmp.ne.s32.totalorder %s294, %s297
      %p303 = scmp.eq.s32.totalorder %s20, 0
      %p304 = por %p302, %p303
      %p305 = scmp.ne.s32.totalorder %s294, %s297
      %p306 = scmp.eq.s32.totalorder %s25, 1
      %p307 = por %p305, %p306
      %p308 = scmp.ne.s32.totalorder %s297, %s298
      %p309 = scmp.eq.s32.totalorder %s25, 0
      %p310 = por %p308, %p309
      %p311 = scmp.ne.s32.totalorder %s297, %s298
      %p312 = scmp.eq.s32.totalorder %s26, 1
      %p313 = por %p311, %p312
      %p315 = scmp.ne.s32.totalorder %s298, %s314
      %p316 = scmp.eq.s32.totalorder %s26, 0
      %p317 = por %p315, %p316
      %p318 = scmp.le.s32.totalorder 1, %s20
      %p319 = scmp.lt.s32.totalorder %s20, 3
      %p320 = pnand %p318, %p319
      %p321 = pneg %p320
      // Predicated region
      $region9: #{decoder_forward.6} parent=5 // pred_check
        _
      $region10: #{decoder_forward.6} parent=5 // pred_check_branch
        %323 = sbr.rel (%p320) target = $region12
      $region11: #{decoder_forward.6} parent=5 // pred_region
        %s324 = ssub.s32 %s20, 1
        // Predicated region
        $region13: #{decoder_forward.6} parent=11 // pred_check
          %p325 = pneg %p135
        $region14: #{decoder_forward.6} parent=11 // pred_check_branch
          %327 = sbr.rel (%p325) target = $region16
        $region15: #{decoder_forward.6} parent=11 // pred_region
          _
        $region16: #{decoder_forward.6} parent=11 // pred_fallthru
          _
        // Predicated region
        $region17: #{decoder_forward.6} parent=11 // pred_check
          %p328 = pneg %p156
        $region18: #{decoder_forward.6} parent=11 // pred_check_branch
          %330 = sbr.rel (%p328) target = $region20
        $region19: #{decoder_forward.6} parent=11 // pred_region
          %s332 = ssub.s32 16, 16
          %333 = vsyncadd [#allocation3], %s332
          %s335 = sshll.u32 [#allocation2], 4
          %s336 = int_to_ptr.vmem [resolvable:$true] %s335
          %338 = dma.hbm_to_vmem [thread:$0]  %s4, 16, %s336, [#allocation3]
        $region20: #{decoder_forward.6} parent=11 // pred_fallthru
          _
        // Predicated region
        $region21: #{decoder_forward.6} parent=11 // pred_check
          %p339 = pneg %p177
        $region22: #{decoder_forward.6} parent=11 // pred_check_branch
          %341 = sbr.rel (%p339) target = $region24
        $region23: #{decoder_forward.6} parent=11 // pred_region
          _
        $region24: #{decoder_forward.6} parent=11 // pred_fallthru
          _
        // Predicated region
        $region25: #{decoder_forward.6} parent=11 // pred_check
          %p342 = pneg %p198
        $region26: #{decoder_forward.6} parent=11 // pred_check_branch
          %344 = sbr.rel (%p342) target = $region28
        $region27: #{decoder_forward.6} parent=11 // pred_region
          %s346 = ssub.s32 16, 16
          %347 = vsyncadd [#allocation5], %s346
          %s349 = sshll.u32 [#allocation4], 4
          %s350 = int_to_ptr.vmem [resolvable:$true] %s349
          %352 = dma.hbm_to_vmem [thread:$0]  %s6, 16, %s350, [#allocation5]
        $region28: #{decoder_forward.6} parent=11 // pred_fallthru
          _
        // Predicated region
        $region29: #{decoder_forward.6} parent=11 // pred_check
          %p353 = pneg %p219
        $region30: #{decoder_forward.6} parent=11 // pred_check_branch
          %355 = sbr.rel (%p353) target = $region32
        $region31: #{decoder_forward.6} parent=11 // pred_region
          _
        $region32: #{decoder_forward.6} parent=11 // pred_fallthru
          _
        // Predicated region
        $region33: #{decoder_forward.6} parent=11 // pred_check
          %p356 = pneg %p240
        $region34: #{decoder_forward.6} parent=11 // pred_check_branch
          %358 = sbr.rel (%p356) target = $region36
        $region35: #{decoder_forward.6} parent=11 // pred_region
          %s360 = ssub.s32 16, 16
          %361 = vsyncadd [#allocation5], %s360
          %s363 = sshll.u32 [#allocation6], 4
          %s364 = int_to_ptr.vmem [resolvable:$true] %s363
          %366 = dma.hbm_to_vmem [thread:$0]  %s8, 16, %s364, [#allocation5]
        $region36: #{decoder_forward.6} parent=11 // pred_fallthru
          _
        // Predicated region
        $region37: #{decoder_forward.6} parent=11 // pred_check
          %p367 = pneg %p261
        $region38: #{decoder_forward.6} parent=11 // pred_check_branch
          %369 = sbr.rel (%p367) target = $region40
        $region39: #{decoder_forward.6} parent=11 // pred_region
          %s371 = ssub.s32 16, 16
          %372 = vsyncadd [#allocation8], %s371
          %s374 = sshll.u32 [#allocation7], 4
          %s375 = int_to_ptr.vmem [resolvable:$true] %s374
          %377 = dma.hbm_to_vmem [thread:$0]  %s9, 16, %s375, [#allocation8]
        $region40: #{decoder_forward.6} parent=11 // pred_fallthru
          _
        // Predicated region
        $region41: #{decoder_forward.6} parent=11 // pred_check
          %p378 = pneg %p282
        $region42: #{decoder_forward.6} parent=11 // pred_check_branch
          %380 = sbr.rel (%p378) target = $region44
        $region43: #{decoder_forward.6} parent=11 // pred_region
          %s382 = ssub.s32 16, 16
          %383 = vsyncadd [#allocation8], %s382
          %s385 = sshll.u32 [#allocation9], 4
          %s386 = int_to_ptr.vmem [resolvable:$true] %s385
          %388 = dma.hbm_to_vmem [thread:$0]  %s10, 16, %s386, [#allocation8]
        $region44: #{decoder_forward.6} parent=11 // pred_fallthru
          _
      $region12: #{decoder_forward.6} parent=5 // pred_fallthru
        _
      %p389 = scmp.lt.s32.totalorder %s20, 2
      // Predicated region
      $region45: #{decoder_forward.6} parent=5 // pred_check
        %p390 = pneg %p389
      $region46: #{decoder_forward.6} parent=5 // pred_check_branch
        %392 = sbr.rel (%p390) target = $region48
      $region47: #{decoder_forward.6} parent=5 // pred_region
        // Predicated region
        $region49: #{decoder_forward.6} parent=47 // pred_check
          %p393 = pneg %p54
        $region50: #{decoder_forward.6} parent=47 // pred_check_branch
          %395 = sbr.rel (%p393) target = $region52
        $region51: #{decoder_forward.6} parent=47 // pred_region
          %p396 = scmp.lt.s32.totalorder %s27, 1
          %s397 = scalar_select %p396, %s27, 1
          %p398 = scmp.lt.s32.totalorder %s28, 0
          %s399 = scalar_select %p398, %s28, 0
          %s400 = sadd.s32 %s399, %s397
          %s401 = smul.addr %s400, 8
          %s402 = scalar_lea.vmem %s0, %s401
        $region52: #{decoder_forward.6} parent=47 // pred_fallthru
          _
        // Predicated region
        $region53: #{decoder_forward.6} parent=47 // pred_check
          %p403 = pneg %p80
        $region54: #{decoder_forward.6} parent=47 // pred_check_branch
          %405 = sbr.rel (%p403) target = $region56
        $region55: #{decoder_forward.6} parent=47 // pred_region
          %p406 = scmp.lt.s32.totalorder %s27, 1
          %s407 = scalar_select %p406, %s27, 1
          %s408 = smul.addr %s407, 8
          %s409 = scalar_lea.vmem %s1, %s408
        $region56: #{decoder_forward.6} parent=47 // pred_fallthru
          _
        // Predicated region
        $region57: #{decoder_forward.6} parent=47 // pred_check
          %p410 = pneg %p108
        $region58: #{decoder_forward.6} parent=47 // pred_check_branch
          %412 = sbr.rel (%p410) target = $region60
        $region59: #{decoder_forward.6} parent=47 // pred_region
          %p413 = scmp.lt.s32.totalorder %s27, 1
          %s414 = scalar_select %p413, %s27, 1
          %p415 = scmp.lt.s32.totalorder %s28, 0
          %s416 = scalar_select %p415, %s28, 0
          %s417 = sadd.s32 %s416, %s414
          %s418 = smul.addr %s417, 4
          %s419 = scalar_lea.vmem %s2, %s418
        $region60: #{decoder_forward.6} parent=47 // pred_fallthru
          _
      $region48: #{decoder_forward.6} parent=5 // pred_fallthru
        _
      %p420 = scmp.le.s32.totalorder 1, %s20
      %p421 = scmp.lt.s32.totalorder %s20, 3
      %p422 = pnand %p420, %p421
      %p423 = pneg %p422
      // Predicated region
      $region61: #{decoder_forward.6} parent=5 // pred_check
        _
      $region62: #{decoder_forward.6} parent=5 // pred_check_branch
        %425 = sbr.rel (%p422) target = $region64
      $region63: #{decoder_forward.6} parent=5 // pred_region
        %s426 = ssub.s32 %s20, 1
        // Predicated region
        $region65: #{decoder_forward.6} parent=63 // pred_check
          %p427 = pneg %p156
        $region66: #{decoder_forward.6} parent=63 // pred_check_branch
          %429 = sbr.rel (%p427) target = $region68
        $region67: #{decoder_forward.6} parent=63 // pred_region
          %430 = dma.done [#allocation3], 16
        $region68: #{decoder_forward.6} parent=63 // pred_fallthru
          _
        // Predicated region
        $region69: #{decoder_forward.6} parent=63 // pred_check
          %p431 = pneg %p198
        $region70: #{decoder_forward.6} parent=63 // pred_check_branch
          %433 = sbr.rel (%p431) target = $region72
        $region71: #{decoder_forward.6} parent=63 // pred_region
          %434 = dma.done [#allocation5], 16
        $region72: #{decoder_forward.6} parent=63 // pred_fallthru
          _
        // Predicated region
        $region73: #{decoder_forward.6} parent=63 // pred_check
          %p435 = pneg %p240
        $region74: #{decoder_forward.6} parent=63 // pred_check_branch
          %437 = sbr.rel (%p435) target = $region76
        $region75: #{decoder_forward.6} parent=63 // pred_region
          %438 = dma.done [#allocation5], 16
        $region76: #{decoder_forward.6} parent=63 // pred_fallthru
          _
        // Predicated region
        $region77: #{decoder_forward.6} parent=63 // pred_check
          %p439 = pneg %p261
        $region78: #{decoder_forward.6} parent=63 // pred_check_branch
          %441 = sbr.rel (%p439) target = $region80
        $region79: #{decoder_forward.6} parent=63 // pred_region
          %442 = dma.done [#allocation8], 16
        $region80: #{decoder_forward.6} parent=63 // pred_fallthru
          _
        // Predicated region
        $region81: #{decoder_forward.6} parent=63 // pred_check
          %p443 = pneg %p282
        $region82: #{decoder_forward.6} parent=63 // pred_check_branch
          %445 = sbr.rel (%p443) target = $region84
        $region83: #{decoder_forward.6} parent=63 // pred_region
          %446 = dma.done [#allocation8], 16
        $region84: #{decoder_forward.6} parent=63 // pred_fallthru
          _
        %p447 = scmp.lt.s32.totalorder %s29, 1
        %s448 = scalar_select %p447, %s29, 1
        %p449 = scmp.lt.s32.totalorder %s30, 0
        %s450 = scalar_select %p449, %s30, 0
        %s451 = sadd.s32 %s450, %s448
        %s452 = smul.addr %s451, 8
        %s453 = scalar_lea.vmem %s0, %s452
        %p454 = pneg %p60
        %p455 = pneg %p57
        %p456 = scmp.lt.s32.totalorder %s29, 1
        %s457 = scalar_select %p456, %s29, 1
        %s458 = smul.addr %s457, 8
        %s459 = scalar_lea.vmem %s1, %s458
        %p460 = pneg %p86
        %p461 = pneg %p83
        %p462 = scmp.lt.s32.totalorder %s29, 1
        %s463 = scalar_select %p462, %s29, 1
        %p464 = scmp.lt.s32.totalorder %s30, 0
        %s465 = scalar_select %p464, %s30, 0
        %s466 = sadd.s32 %s465, %s463
        %s467 = smul.addr %s466, 4
        %s468 = scalar_lea.vmem %s2, %s467
        %p469 = pneg %p114
        %p470 = pneg %p111
        %p471 = pneg %p135
        %p472 = pneg %p132
        %p473 = pneg %p156
        %p474 = pneg %p153
        %p475 = pneg %p177
        %p476 = pneg %p174
        %p477 = pneg %p198
        %p478 = pneg %p195
        %p479 = pneg %p219
        %p480 = pneg %p216
        %p481 = pneg %p240
        %p482 = pneg %p237
        %p483 = pneg %p261
        %p484 = pneg %p258
        %p485 = pneg %p282
        %p486 = pneg %p279
        %p487 = pneg %p310
        %p488 = pneg %p307
        %p489 = scmp.lt.s32.totalorder %s29, 1
        %s490 = scalar_select %p489, %s29, 1
        %p491 = scmp.lt.s32.totalorder %s30, 0
        %s492 = scalar_select %p491, %s30, 0
        %s493 = sadd.s32 %s492, %s490
        %s494 = smul.addr %s493, 8
        %s495 = scalar_lea.vmem %s11, %s494
        %p496 = scmp.lt.s32.totalorder %s29, 1
        %s497 = scalar_select %p496, %s29, 1
        %p498 = scmp.lt.s32.totalorder %s30, 0
        %s499 = scalar_select %p498, %s30, 0
        %s500 = sadd.s32 %s499, %s497
        %s501 = smul.addr %s500, 8
        %s502 = scalar_lea.vmem %s0, %s501
        %p503 = scmp.lt.s32.totalorder %s29, 1
        %s504 = scalar_select %p503, %s29, 1
        %s505 = smul.addr %s504, 8
        %s506 = scalar_lea.vmem %s1, %s505
        %p507 = scmp.lt.s32.totalorder %s29, 1
        %s508 = scalar_select %p507, %s29, 1
        %p509 = scmp.lt.s32.totalorder %s30, 0
        %s510 = scalar_select %p509, %s30, 0
        %s511 = sadd.s32 %s510, %s508
        %s512 = smul.addr %s511, 4
        %s513 = scalar_lea.vmem %s2, %s512
        %p514 = scmp.lt.s32.totalorder %s29, 1
        %s515 = scalar_select %p514, %s29, 1
        %p516 = scmp.lt.s32.totalorder %s30, 0
        %s517 = scalar_select %p516, %s30, 0
        %s518 = sadd.s32 %s517, %s515
        %s519 = smul.addr %s518, 8
        %s520 = scalar_lea.vmem %s11, %s519
        %v522 = vld [vmem:[%s502] sm:$0xff]
        %v523 = vpack.c.bf16 %v522, %v522
        %v524 = vld [vmem:[%s506] sm:$0xff]
        %v525 = vpack.c.bf16 %v524, %v524
        %v526 = vld [vmem:[%s513] sm:$0xf]
        %v527 = vunpack.c.l.bf16 %v526
        %v528 = vld [vmem:[%s3] sm:$0xf]
        %v529 = vld [vmem:[%s3 + $0x4] sm:$0xf]
        %v530 = vld [vmem:[%s3 + $0x8] sm:$0xf]
        %v531 = vld [vmem:[%s3 + $0xc] sm:$0xf]
        %v532 = vld [vmem:[#allocation2] sm:$0x1]
        %v534 = vlaneseq
        %v535 = vshrl.u32 %v534, 7
        %v536 = vsub.s32 0, %v535
        %v537 = vrot.slane %v532, %v536
        %v543 = vunpack.c.l.b16 %v528
        %v544 = vunpack.c.l.b16 %v529
        %v545 = vunpack.c.l.b16 %v530
        %v546 = vunpack.c.l.b16 %v531
        %v547 = vpack.c.b16 %v544, %v543
        %v548 = vpack.c.b16 %v546, %v545
        %vm551 = vcmask 261120
        %v553 = vsel %vm551, %v523, 0
        %555 = vmatprep.subr.bf16.mxu0 0
        %556 = vmatpush1.bf16.msra.mxu0 0
        %557 = vmatprep.subr.bf16.mxu0 0
        %558 = vmatpush1.bf16.msra.mxu0 0
        %559 = vmatprep.subr.bf16.mxu0 0
        %560 = vmatpush1.bf16.msra.mxu0 0
        %561 = vmatprep.subr.bf16.mxu0 0
        %562 = vmatpush1.bf16.msra.mxu0 0
        %563 = vmatprep.subr.bf16.mxu0 0
        %564 = vmatpush1.bf16.msra.mxu0 0
        %565 = vmatprep.subr.bf16.mxu0 0
        %566 = vmatpush1.bf16.msra.mxu0 0
        %567 = vmatprep.subr.bf16.mxu0 0
        %568 = vmatpush1.bf16.msra.mxu0 %v548
        %569 = vmatprep.subr.bf16.mxu0 0
        %570 = vmatpush1.bf16.msra.mxu0 %v547
        %571 = vmatprep.subr.bf16.mxu0 0
        %572 = vmatpush2.bf16.msra.mxu0 0
        %573 = vmatprep.subr.bf16.mxu0 0
        %574 = vmatpush2.bf16.msra.mxu0 0
        %575 = vmatprep.subr.bf16.mxu0 0
        %576 = vmatpush2.bf16.msra.mxu0 0
        %577 = vmatprep.subr.bf16.mxu0 0
        %578 = vmatpush2.bf16.msra.mxu0 0
        %579 = vmatprep.subr.bf16.mxu0 0
        %580 = vmatpush2.bf16.msra.mxu0 0
        %581 = vmatprep.subr.bf16.mxu0 0
        %582 = vmatpush2.bf16.msra.mxu0 0
        %583 = vmatprep.subr.bf16.mxu0 0
        %584 = vmatpush2.bf16.msra.mxu0 0
        %585 = vmatprep.subr.bf16.mxu0 0
        %586 = vmatpush2.bf16.msra.mxu0 0
        %587 = vmatprep.mubr.bf16.mxu0 0
        %588 = vmatmul.mubr.bf16.gmra.mxu0 %v553
        %v589 = vpop.f32.mrf.mxu0
        %v590 = vadd.f32 %v537, %v589
        %v591 = vpop.f32.mrf.mxu0
        %v592 = vpop.f32.mrf.mxu0
        %v593 = vpop.f32.mrf.mxu0
        %594 = vdwg.mxu0
        %v595 = vld [vmem:[%s5] sm:$0xf]
        %v596 = vld [vmem:[%s5 + $0x4] sm:$0xf]
        %v597 = vld [vmem:[%s5 + $0x8] sm:$0xf]
        %v598 = vld [vmem:[%s5 + $0xc] sm:$0xf]
        %v599 = vld [vmem:[#allocation4] sm:$0x1]
        %v601 = vlaneseq
        %v602 = vshrl.u32 %v601, 7
        %v603 = vsub.s32 0, %v602
        %v604 = vrot.slane %v599, %v603
        %v610 = vunpack.c.l.b16 %v595
        %v611 = vunpack.c.l.b16 %v596
        %v612 = vunpack.c.l.b16 %v597
        %v613 = vunpack.c.l.b16 %v598
        %v614 = vpack.c.b16 %v611, %v610
        %v615 = vpack.c.b16 %v613, %v612
        %v619 = vsel %vm551, %v525, 0
        %621 = vmatprep.subr.bf16.mxu0 0
        %622 = vmatpush1.bf16.msra.mxu0 0
        %623 = vmatprep.subr.bf16.mxu0 0
        %624 = vmatpush1.bf16.msra.mxu0 0
        %625 = vmatprep.subr.bf16.mxu0 0
        %626 = vmatpush1.bf16.msra.mxu0 0
        %627 = vmatprep.subr.bf16.mxu0 0
        %628 = vmatpush1.bf16.msra.mxu0 0
        %629 = vmatprep.subr.bf16.mxu0 0
        %630 = vmatpush1.bf16.msra.mxu0 0
        %631 = vmatprep.subr.bf16.mxu0 0
        %632 = vmatpush1.bf16.msra.mxu0 0
        %633 = vmatprep.subr.bf16.mxu0 0
        %634 = vmatpush1.bf16.msra.mxu0 %v615
        %635 = vmatprep.subr.bf16.mxu0 0
        %636 = vmatpush1.bf16.msra.mxu0 %v614
        %637 = vmatprep.subr.bf16.mxu0 0
        %638 = vmatpush2.bf16.msra.mxu0 0
        %639 = vmatprep.subr.bf16.mxu0 0
        %640 = vmatpush2.bf16.msra.mxu0 0
        %641 = vmatprep.subr.bf16.mxu0 0
        %642 = vmatpush2.bf16.msra.mxu0 0
        %643 = vmatprep.subr.bf16.mxu0 0
        %644 = vmatpush2.bf16.msra.mxu0 0
        %645 = vmatprep.subr.bf16.mxu0 0
        %646 = vmatpush2.bf16.msra.mxu0 0
        %647 = vmatprep.subr.bf16.mxu0 0
        %648 = vmatpush2.bf16.msra.mxu0 0
        %649 = vmatprep.subr.bf16.mxu0 0
        %650 = vmatpush2.bf16.msra.mxu0 0
        %651 = vmatprep.subr.bf16.mxu0 0
        %652 = vmatpush2.bf16.msra.mxu0 0
        %653 = vmatprep.mubr.bf16.mxu0 0
        %654 = vmatmul.mubr.bf16.gmra.mxu0 %v619
        %v655 = vpop.f32.mrf.mxu0
        %v656 = vadd.f32 %v604, %v655
        %v657 = vpop.f32.mrf.mxu0
        %v658 = vpop.f32.mrf.mxu0
        %v659 = vpop.f32.mrf.mxu0
        %660 = vdwg.mxu0
        %v661 = vpack.c.bf16 %v590, %v590
        %v662 = vpack.c.bf16 %v656, %v656
        %v663 = vld [vmem:[%s7] sm:$0xf]
        %v664 = vld [vmem:[%s7 + $0x4] sm:$0xf]
        %v665 = vld [vmem:[%s7 + $0x8] sm:$0xf]
        %v666 = vld [vmem:[%s7 + $0xc] sm:$0xf]
        %vm667 = vcmask 64512
        %v669 = vsel %vm667, %v661, 0
        %v672 = vsel %vm667, %v662, 0
        %674 = vmatprep.subr.bf16.mxu0 0
        %675 = vmatpush1.bf16.xpose.msra.mxu0 0
        %676 = vmatprep.subr.bf16.mxu0 0
        %677 = vmatpush1.bf16.xpose.msra.mxu0 0
        %678 = vmatprep.subr.bf16.mxu0 0
        %679 = vmatpush1.bf16.xpose.msra.mxu0 0
        %680 = vmatprep.subr.bf16.mxu0 0
        %681 = vmatpush1.bf16.xpose.msra.mxu0 0
        %682 = vmatprep.subr.bf16.mxu0 0
        %683 = vmatpush1.bf16.xpose.msra.mxu0 0
        %684 = vmatprep.subr.bf16.mxu0 0
        %685 = vmatpush1.bf16.xpose.msra.mxu0 0
        %686 = vmatprep.subr.bf16.mxu0 0
        %687 = vmatpush1.bf16.xpose.msra.mxu0 0
        %688 = vmatprep.subr.bf16.mxu0 0
        %689 = vmatpush1.bf16.xpose.msra.mxu0 %v672
        %690 = vmatprep.subr.bf16.mxu0 0
        %691 = vmatpush2.bf16.xpose.msra.mxu0 0
        %692 = vmatprep.subr.bf16.mxu0 0
        %693 = vmatpush2.bf16.xpose.msra.mxu0 0
        %694 = vmatprep.subr.bf16.mxu0 0
        %695 = vmatpush2.bf16.xpose.msra.mxu0 0
        %696 = vmatprep.subr.bf16.mxu0 0
        %697 = vmatpush2.bf16.xpose.msra.mxu0 0
        %698 = vmatprep.subr.bf16.mxu0 0
        %699 = vmatpush2.bf16.xpose.msra.mxu0 0
        %700 = vmatprep.subr.bf16.mxu0 0
        %701 = vmatpush2.bf16.xpose.msra.mxu0 0
        %702 = vmatprep.subr.bf16.mxu0 0
        %703 = vmatpush2.bf16.xpose.msra.mxu0 0
        %704 = vmatprep.subr.bf16.mxu0 0
        %705 = vmatpush2.bf16.xpose.msra.mxu0 0
        %706 = vmatprep.mubr.bf16.mxu0 0
        %707 = vmatmul.mubr.bf16.gmra.mxu0 %v669
        %v708 = vpop.f32.mrf.mxu0
        %v709 = vadd.f32 %v527, %v708
        %v710 = vpop.f32.mrf.mxu0
        %v711 = vpop.f32.mrf.mxu0
        %v712 = vpop.f32.mrf.mxu0
        %713 = vdwg.mxu0
        %v714 = vsel %vm667, %v709, -inf
        %715 = vmax.xlane.f32.xlu0 %v714
        %v716 = vpop.xlane.xlu0 %715
        %v717 = vsub.f32 %v709, %v716
        %v718 = vmul.f32 %v717, 1.442695
        %v719 = vpow.pop %v718
        %v720 = vsel %vm667, %v719, 0.0
        %721 = vadd.xlane.f32.xlu0 %v720
        %v722 = vpop.xlane.xlu0 %721
        %v723 = vrcp.pop %v722
        %v724 = vpack.c.bf16 %v719, %v719
        %726 = vrot.lane.b32.xlu0 %v662, 96
        %v727 = vpop.permute.xlu0 %726
        %v729 = vsel %vm667, %v724, 0
        %vm731 = vcmask 1043456
        %v733 = vsel %vm731, %v727, 0
        %735 = vmatprep.subr.bf16.mxu0 0
        %736 = vmatpush1.bf16.msra.mxu0 0
        %737 = vmatprep.subr.bf16.mxu0 0
        %738 = vmatpush1.bf16.msra.mxu0 0
        %739 = vmatprep.subr.bf16.mxu0 0
        %740 = vmatpush1.bf16.msra.mxu0 0
        %741 = vmatprep.subr.bf16.mxu0 0
        %742 = vmatpush1.bf16.msra.mxu0 0
        %743 = vmatprep.subr.bf16.mxu0 0
        %744 = vmatpush1.bf16.msra.mxu0 0
        %745 = vmatprep.subr.bf16.mxu0 0
        %746 = vmatpush1.bf16.msra.mxu0 0
        %747 = vmatprep.subr.bf16.mxu0 0
        %748 = vmatpush1.bf16.msra.mxu0 0
        %749 = vmatprep.subr.bf16.mxu0 0
        %750 = vmatpush1.bf16.msra.mxu0 %v733
        %751 = vmatprep.subr.bf16.mxu0 0
        %752 = vmatpush2.bf16.msra.mxu0 0
        %753 = vmatprep.subr.bf16.mxu0 0
        %754 = vmatpush2.bf16.msra.mxu0 0
        %755 = vmatprep.subr.bf16.mxu0 0
        %756 = vmatpush2.bf16.msra.mxu0 0
        %757 = vmatprep.subr.bf16.mxu0 0
        %758 = vmatpush2.bf16.msra.mxu0 0
        %759 = vmatprep.subr.bf16.mxu0 0
        %760 = vmatpush2.bf16.msra.mxu0 0
        %761 = vmatprep.subr.bf16.mxu0 0
        %762 = vmatpush2.bf16.msra.mxu0 0
        %763 = vmatprep.subr.bf16.mxu0 0
        %764 = vmatpush2.bf16.msra.mxu0 0
        %765 = vmatprep.subr.bf16.mxu0 0
        %766 = vmatpush2.bf16.msra.mxu0 0
        %767 = vmatprep.mubr.bf16.mxu0 0
        %768 = vmatmul.mubr.bf16.gmra.mxu0 %v729
        %v769 = vpop.f32.mrf.mxu0
        %v770 = vadd.f32 0.0, %v769
        %v771 = vpop.f32.mrf.mxu0
        %v772 = vpop.f32.mrf.mxu0
        %v773 = vpop.f32.mrf.mxu0
        %774 = vdwg.mxu0
        %v775 = vmul.f32 %v770, %v723
        %v776 = vpack.c.bf16 %v775, %v775
        %778 = vrot.lane.b32.xlu0 %v661, 120
        %v779 = vpop.permute.xlu0 %778
        %780 = vrot.lane.b32.xlu0 %v662, 120
        %v781 = vpop.permute.xlu0 %780
        %v783 = vsel %vm667, %v779, 0
        %v786 = vsel %vm667, %v781, 0
        %788 = vmatprep.subr.bf16.mxu0 0
        %789 = vmatpush1.bf16.xpose.msra.mxu0 0
        %790 = vmatprep.subr.bf16.mxu0 0
        %791 = vmatpush1.bf16.xpose.msra.mxu0 0
        %792 = vmatprep.subr.bf16.mxu0 0
        %793 = vmatpush1.bf16.xpose.msra.mxu0 0
        %794 = vmatprep.subr.bf16.mxu0 0
        %795 = vmatpush1.bf16.xpose.msra.mxu0 0
        %796 = vmatprep.subr.bf16.mxu0 0
        %797 = vmatpush1.bf16.xpose.msra.mxu0 0
        %798 = vmatprep.subr.bf16.mxu0 0
        %799 = vmatpush1.bf16.xpose.msra.mxu0 0
        %800 = vmatprep.subr.bf16.mxu0 0
        %801 = vmatpush1.bf16.xpose.msra.mxu0 0
        %802 = vmatprep.subr.bf16.mxu0 0
        %803 = vmatpush1.bf16.xpose.msra.mxu0 %v786
        %804 = vmatprep.subr.bf16.mxu0 0
        %805 = vmatpush2.bf16.xpose.msra.mxu0 0
        %806 = vmatprep.subr.bf16.mxu0 0
        %807 = vmatpush2.bf16.xpose.msra.mxu0 0
        %808 = vmatprep.subr.bf16.mxu0 0
        %809 = vmatpush2.bf16.xpose.msra.mxu0 0
        %810 = vmatprep.subr.bf16.mxu0 0
        %811 = vmatpush2.bf16.xpose.msra.mxu0 0
        %812 = vmatprep.subr.bf16.mxu0 0
        %813 = vmatpush2.bf16.xpose.msra.mxu0 0
        %814 = vmatprep.subr.bf16.mxu0 0
        %815 = vmatpush2.bf16.xpose.msra.mxu0 0
        %816 = vmatprep.subr.bf16.mxu0 0
        %817 = vmatpush2.bf16.xpose.msra.mxu0 0
        %818 = vmatprep.subr.bf16.mxu0 0
        %819 = vmatpush2.bf16.xpose.msra.mxu0 0
        %820 = vmatprep.mubr.bf16.mxu0 0
        %821 = vmatmul.mubr.bf16.gmra.mxu0 %v783
        %v822 = vpop.f32.mrf.mxu0
        %v823 = vadd.f32 %v527, %v822
        %v824 = vpop.f32.mrf.mxu0
        %v825 = vpop.f32.mrf.mxu0
        %v826 = vpop.f32.mrf.mxu0
        %827 = vdwg.mxu0
        %v828 = vsel %vm667, %v823, -inf
        %829 = vmax.xlane.f32.xlu0 %v828
        %v830 = vpop.xlane.xlu0 %829
        %v831 = vsub.f32 %v823, %v830
        %v832 = vmul.f32 %v831, 1.442695
        %v833 = vpow.pop %v832
        %v834 = vsel %vm667, %v833, 0.0
        %835 = vadd.xlane.f32.xlu0 %v834
        %v836 = vpop.xlane.xlu0 %835
        %v837 = vrcp.pop %v836
        %v838 = vpack.c.bf16 %v833, %v833
        %839 = vrot.lane.b32.xlu0 %v662, 88
        %v840 = vpop.permute.xlu0 %839
        %v842 = vsel %vm667, %v838, 0
        %v845 = vsel %vm731, %v840, 0
        %847 = vmatprep.subr.bf16.mxu0 0
        %848 = vmatpush1.bf16.msra.mxu0 0
        %849 = vmatprep.subr.bf16.mxu0 0
        %850 = vmatpush1.bf16.msra.mxu0 0
        %851 = vmatprep.subr.bf16.mxu0 0
        %852 = vmatpush1.bf16.msra.mxu0 0
        %853 = vmatprep.subr.bf16.mxu0 0
        %854 = vmatpush1.bf16.msra.mxu0 0
        %855 = vmatprep.subr.bf16.mxu0 0
        %856 = vmatpush1.bf16.msra.mxu0 0
        %857 = vmatprep.subr.bf16.mxu0 0
        %858 = vmatpush1.bf16.msra.mxu0 0
        %859 = vmatprep.subr.bf16.mxu0 0
        %860 = vmatpush1.bf16.msra.mxu0 0
        %861 = vmatprep.subr.bf16.mxu0 0
        %862 = vmatpush1.bf16.msra.mxu0 %v845
        %863 = vmatprep.subr.bf16.mxu0 0
        %864 = vmatpush2.bf16.msra.mxu0 0
        %865 = vmatprep.subr.bf16.mxu0 0
        %866 = vmatpush2.bf16.msra.mxu0 0
        %867 = vmatprep.subr.bf16.mxu0 0
        %868 = vmatpush2.bf16.msra.mxu0 0
        %869 = vmatprep.subr.bf16.mxu0 0
        %870 = vmatpush2.bf16.msra.mxu0 0
        %871 = vmatprep.subr.bf16.mxu0 0
        %872 = vmatpush2.bf16.msra.mxu0 0
        %873 = vmatprep.subr.bf16.mxu0 0
        %874 = vmatpush2.bf16.msra.mxu0 0
        %875 = vmatprep.subr.bf16.mxu0 0
        %876 = vmatpush2.bf16.msra.mxu0 0
        %877 = vmatprep.subr.bf16.mxu0 0
        %878 = vmatpush2.bf16.msra.mxu0 0
        %879 = vmatprep.mubr.bf16.mxu0 0
        %880 = vmatmul.mubr.bf16.gmra.mxu0 %v842
        %v881 = vpop.f32.mrf.mxu0
        %v882 = vadd.f32 0.0, %v881
        %v883 = vpop.f32.mrf.mxu0
        %v884 = vpop.f32.mrf.mxu0
        %v885 = vpop.f32.mrf.mxu0
        %886 = vdwg.mxu0
        %v887 = vmul.f32 %v882, %v837
        %v888 = vpack.c.bf16 %v887, %v887
        %v890 = vsel %vm667, %v888, 0
        %v893 = vsel %vm731, %v664, 0
        %895 = vmatprep.subr.bf16.mxu0 0
        %896 = vmatpush1.bf16.msra.mxu0 0
        %897 = vmatprep.subr.bf16.mxu0 0
        %898 = vmatpush1.bf16.msra.mxu0 0
        %899 = vmatprep.subr.bf16.mxu0 0
        %900 = vmatpush1.bf16.msra.mxu0 0
        %901 = vmatprep.subr.bf16.mxu0 0
        %902 = vmatpush1.bf16.msra.mxu0 0
        %903 = vmatprep.subr.bf16.mxu0 0
        %904 = vmatpush1.bf16.msra.mxu0 0
        %905 = vmatprep.subr.bf16.mxu0 0
        %906 = vmatpush1.bf16.msra.mxu0 0
        %907 = vmatprep.subr.bf16.mxu0 0
        %908 = vmatpush1.bf16.msra.mxu0 0
        %909 = vmatprep.subr.bf16.mxu0 0
        %910 = vmatpush1.bf16.msra.mxu0 %v893
        %911 = vmatprep.subr.bf16.mxu0 0
        %912 = vmatpush2.bf16.msra.mxu0 0
        %913 = vmatprep.subr.bf16.mxu0 0
        %914 = vmatpush2.bf16.msra.mxu0 0
        %915 = vmatprep.subr.bf16.mxu0 0
        %916 = vmatpush2.bf16.msra.mxu0 0
        %917 = vmatprep.subr.bf16.mxu0 0
        %918 = vmatpush2.bf16.msra.mxu0 0
        %919 = vmatprep.subr.bf16.mxu0 0
        %920 = vmatpush2.bf16.msra.mxu0 0
        %921 = vmatprep.subr.bf16.mxu0 0
        %922 = vmatpush2.bf16.msra.mxu0 0
        %923 = vmatprep.subr.bf16.mxu0 0
        %924 = vmatpush2.bf16.msra.mxu0 0
        %925 = vmatprep.subr.bf16.mxu0 0
        %926 = vmatpush2.bf16.msra.mxu0 0
        %927 = vmatprep.mubr.bf16.mxu0 0
        %928 = vmatmul.mubr.bf16.gmra.mxu0 %v890
        %v929 = vpop.f32.mrf.mxu0
        %v930 = vadd.f32 0.0, %v929
        %v931 = vpop.f32.mrf.mxu0
        %v932 = vpop.f32.mrf.mxu0
        %v933 = vpop.f32.mrf.mxu0
        %934 = vdwg.mxu0
        %v936 = vsel %vm667, %v776, 0
        %v939 = vsel %vm731, %v663, 0
        %941 = vmatprep.subr.bf16.mxu0 0
        %942 = vmatpush1.bf16.msra.mxu0 0
        %943 = vmatprep.subr.bf16.mxu0 0
        %944 = vmatpush1.bf16.msra.mxu0 0
        %945 = vmatprep.subr.bf16.mxu0 0
        %946 = vmatpush1.bf16.msra.mxu0 0
        %947 = vmatprep.subr.bf16.mxu0 0
        %948 = vmatpush1.bf16.msra.mxu0 0
        %949 = vmatprep.subr.bf16.mxu0 0
        %950 = vmatpush1.bf16.msra.mxu0 0
        %951 = vmatprep.subr.bf16.mxu0 0
        %952 = vmatpush1.bf16.msra.mxu0 0
        %953 = vmatprep.subr.bf16.mxu0 0
        %954 = vmatpush1.bf16.msra.mxu0 0
        %955 = vmatprep.subr.bf16.mxu0 0
        %956 = vmatpush1.bf16.msra.mxu0 %v939
        %957 = vmatprep.subr.bf16.mxu0 0
        %958 = vmatpush2.bf16.msra.mxu0 0
        %959 = vmatprep.subr.bf16.mxu0 0
        %960 = vmatpush2.bf16.msra.mxu0 0
        %961 = vmatprep.subr.bf16.mxu0 0
        %962 = vmatpush2.bf16.msra.mxu0 0
        %963 = vmatprep.subr.bf16.mxu0 0
        %964 = vmatpush2.bf16.msra.mxu0 0
        %965 = vmatprep.subr.bf16.mxu0 0
        %966 = vmatpush2.bf16.msra.mxu0 0
        %967 = vmatprep.subr.bf16.mxu0 0
        %968 = vmatpush2.bf16.msra.mxu0 0
        %969 = vmatprep.subr.bf16.mxu0 0
        %970 = vmatpush2.bf16.msra.mxu0 0
        %971 = vmatprep.subr.bf16.mxu0 0
        %972 = vmatpush2.bf16.msra.mxu0 0
        %973 = vmatprep.mubr.bf16.mxu0 0
        %974 = vmatmul.mubr.bf16.gmra.mxu0 %v936
        %v975 = vpop.f32.mrf.mxu0
        %v976 = vadd.f32 %v930, %v975
        %v977 = vpop.f32.mrf.mxu0
        %v978 = vpop.f32.mrf.mxu0
        %v979 = vpop.f32.mrf.mxu0
        %980 = vdwg.mxu0
        %981 = vrot.lane.b32.xlu0 %v661, 112
        %v982 = vpop.permute.xlu0 %981
        %983 = vrot.lane.b32.xlu0 %v662, 112
        %v984 = vpop.permute.xlu0 %983
        %v986 = vsel %vm667, %v982, 0
        %v989 = vsel %vm667, %v984, 0
        %991 = vmatprep.subr.bf16.mxu0 0
        %992 = vmatpush1.bf16.xpose.msra.mxu0 0
        %993 = vmatprep.subr.bf16.mxu0 0
        %994 = vmatpush1.bf16.xpose.msra.mxu0 0
        %995 = vmatprep.subr.bf16.mxu0 0
        %996 = vmatpush1.bf16.xpose.msra.mxu0 0
        %997 = vmatprep.subr.bf16.mxu0 0
        %998 = vmatpush1.bf16.xpose.msra.mxu0 0
        %999 = vmatprep.subr.bf16.mxu0 0
        %1000 = vmatpush1.bf16.xpose.msra.mxu0 0
        %1001 = vmatprep.subr.bf16.mxu0 0
        %1002 = vmatpush1.bf16.xpose.msra.mxu0 0
        %1003 = vmatprep.subr.bf16.mxu0 0
        %1004 = vmatpush1.bf16.xpose.msra.mxu0 0
        %1005 = vmatprep.subr.bf16.mxu0 0
        %1006 = vmatpush1.bf16.xpose.msra.mxu0 %v989
        %1007 = vmatprep.subr.bf16.mxu0 0
        %1008 = vmatpush2.bf16.xpose.msra.mxu0 0
        %1009 = vmatprep.subr.bf16.mxu0 0
        %1010 = vmatpush2.bf16.xpose.msra.mxu0 0
        %1011 = vmatprep.subr.bf16.mxu0 0
        %1012 = vmatpush2.bf16.xpose.msra.mxu0 0
        %1013 = vmatprep.subr.bf16.mxu0 0
        %1014 = vmatpush2.bf16.xpose.msra.mxu0 0
        %1015 = vmatprep.subr.bf16.mxu0 0
        %1016 = vmatpush2.bf16.xpose.msra.mxu0 0
        %1017 = vmatprep.subr.bf16.mxu0 0
        %1018 = vmatpush2.bf16.xpose.msra.mxu0 0
        %1019 = vmatprep.subr.bf16.mxu0 0
        %1020 = vmatpush2.bf16.xpose.msra.mxu0 0
        %1021 = vmatprep.subr.bf16.mxu0 0
        %1022 = vmatpush2.bf16.xpose.msra.mxu0 0
        %1023 = vmatprep.mubr.bf16.mxu0 0
        %1024 = vmatmul.mubr.bf16.gmra.mxu0 %v986
        %v1025 = vpop.f32.mrf.mxu0
        %v1026 = vadd.f32 %v527, %v1025
        %v1027 = vpop.f32.mrf.mxu0
        %v1028 = vpop.f32.mrf.mxu0
        %v1029 = vpop.f32.mrf.mxu0
        %1030 = vdwg.mxu0
        %v1031 = vsel %vm667, %v1026, -inf
        %1032 = vmax.xlane.f32.xlu0 %v1031
        %v1033 = vpop.xlane.xlu0 %1032
        %v1034 = vsub.f32 %v1026, %v1033
        %v1035 = vmul.f32 %v1034, 1.442695
        %v1036 = vpow.pop %v1035
        %v1037 = vsel %vm667, %v1036, 0.0
        %1038 = vadd.xlane.f32.xlu0 %v1037
        %v1039 = vpop.xlane.xlu0 %1038
        %v1040 = vrcp.pop %v1039
        %v1041 = vpack.c.bf16 %v1036, %v1036
        %1042 = vrot.lane.b32.xlu0 %v662, 80
        %v1043 = vpop.permute.xlu0 %1042
        %v1045 = vsel %vm667, %v1041, 0
        %v1048 = vsel %vm731, %v1043, 0
        %1050 = vmatprep.subr.bf16.mxu0 0
        %1051 = vmatpush1.bf16.msra.mxu0 0
        %1052 = vmatprep.subr.bf16.mxu0 0
        %1053 = vmatpush1.bf16.msra.mxu0 0
        %1054 = vmatprep.subr.bf16.mxu0 0
        %1055 = vmatpush1.bf16.msra.mxu0 0
        %1056 = vmatprep.subr.bf16.mxu0 0
        %1057 = vmatpush1.bf16.msra.mxu0 0
        %1058 = vmatprep.subr.bf16.mxu0 0
        %1059 = vmatpush1.bf16.msra.mxu0 0
        %1060 = vmatprep.subr.bf16.mxu0 0
        %1061 = vmatpush1.bf16.msra.mxu0 0
        %1062 = vmatprep.subr.bf16.mxu0 0
        %1063 = vmatpush1.bf16.msra.mxu0 0
        %1064 = vmatprep.subr.bf16.mxu0 0
        %1065 = vmatpush1.bf16.msra.mxu0 %v1048
        %1066 = vmatprep.subr.bf16.mxu0 0
        %1067 = vmatpush2.bf16.msra.mxu0 0
        %1068 = vmatprep.subr.bf16.mxu0 0
        %1069 = vmatpush2.bf16.msra.mxu0 0
        %1070 = vmatprep.subr.bf16.mxu0 0
        %1071 = vmatpush2.bf16.msra.mxu0 0
        %1072 = vmatprep.subr.bf16.mxu0 0
        %1073 = vmatpush2.bf16.msra.mxu0 0
        %1074 = vmatprep.subr.bf16.mxu0 0
        %1075 = vmatpush2.bf16.msra.mxu0 0
        %1076 = vmatprep.subr.bf16.mxu0 0
        %1077 = vmatpush2.bf16.msra.mxu0 0
        %1078 = vmatprep.subr.bf16.mxu0 0
        %1079 = vmatpush2.bf16.msra.mxu0 0
        %1080 = vmatprep.subr.bf16.mxu0 0
        %1081 = vmatpush2.bf16.msra.mxu0 0
        %1082 = vmatprep.mubr.bf16.mxu0 0
        %1083 = vmatmul.mubr.bf16.gmra.mxu0 %v1045
        %v1084 = vpop.f32.mrf.mxu0
        %v1085 = vadd.f32 0.0, %v1084
        %v1086 = vpop.f32.mrf.mxu0
        %v1087 = vpop.f32.mrf.mxu0
        %v1088 = vpop.f32.mrf.mxu0
        %1089 = vdwg.mxu0
        %v1090 = vmul.f32 %v1085, %v1040
        %v1091 = vpack.c.bf16 %v1090, %v1090
        %v1093 = vsel %vm667, %v1091, 0
        %v1096 = vsel %vm731, %v665, 0
        %1098 = vmatprep.subr.bf16.mxu0 0
        %1099 = vmatpush1.bf16.msra.mxu0 0
        %1100 = vmatprep.subr.bf16.mxu0 0
        %1101 = vmatpush1.bf16.msra.mxu0 0
        %1102 = vmatprep.subr.bf16.mxu0 0
        %1103 = vmatpush1.bf16.msra.mxu0 0
        %1104 = vmatprep.subr.bf16.mxu0 0
        %1105 = vmatpush1.bf16.msra.mxu0 0
        %1106 = vmatprep.subr.bf16.mxu0 0
        %1107 = vmatpush1.bf16.msra.mxu0 0
        %1108 = vmatprep.subr.bf16.mxu0 0
        %1109 = vmatpush1.bf16.msra.mxu0 0
        %1110 = vmatprep.subr.bf16.mxu0 0
        %1111 = vmatpush1.bf16.msra.mxu0 0
        %1112 = vmatprep.subr.bf16.mxu0 0
        %1113 = vmatpush1.bf16.msra.mxu0 %v1096
        %1114 = vmatprep.subr.bf16.mxu0 0
        %1115 = vmatpush2.bf16.msra.mxu0 0
        %1116 = vmatprep.subr.bf16.mxu0 0
        %1117 = vmatpush2.bf16.msra.mxu0 0
        %1118 = vmatprep.subr.bf16.mxu0 0
        %1119 = vmatpush2.bf16.msra.mxu0 0
        %1120 = vmatprep.subr.bf16.mxu0 0
        %1121 = vmatpush2.bf16.msra.mxu0 0
        %1122 = vmatprep.subr.bf16.mxu0 0
        %1123 = vmatpush2.bf16.msra.mxu0 0
        %1124 = vmatprep.subr.bf16.mxu0 0
        %1125 = vmatpush2.bf16.msra.mxu0 0
        %1126 = vmatprep.subr.bf16.mxu0 0
        %1127 = vmatpush2.bf16.msra.mxu0 0
        %1128 = vmatprep.subr.bf16.mxu0 0
        %1129 = vmatpush2.bf16.msra.mxu0 0
        %1130 = vmatprep.mubr.bf16.mxu0 0
        %1131 = vmatmul.mubr.bf16.gmra.mxu0 %v1093
        %v1132 = vpop.f32.mrf.mxu0
        %v1133 = vadd.f32 0.0, %v1132
        %v1134 = vpop.f32.mrf.mxu0
        %v1135 = vpop.f32.mrf.mxu0
        %v1136 = vpop.f32.mrf.mxu0
        %1137 = vdwg.mxu0
        %v1138 = vadd.f32 %v976, %v1133
        %1139 = vrot.lane.b32.xlu0 %v661, 104
        %v1140 = vpop.permute.xlu0 %1139
        %1141 = vrot.lane.b32.xlu0 %v662, 104
        %v1142 = vpop.permute.xlu0 %1141
        %v1144 = vsel %vm667, %v1140, 0
        %v1147 = vsel %vm667, %v1142, 0
        %1149 = vmatprep.subr.bf16.mxu0 0
        %1150 = vmatpush1.bf16.xpose.msra.mxu0 0
        %1151 = vmatprep.subr.bf16.mxu0 0
        %1152 = vmatpush1.bf16.xpose.msra.mxu0 0
        %1153 = vmatprep.subr.bf16.mxu0 0
        %1154 = vmatpush1.bf16.xpose.msra.mxu0 0
        %1155 = vmatprep.subr.bf16.mxu0 0
        %1156 = vmatpush1.bf16.xpose.msra.mxu0 0
        %1157 = vmatprep.subr.bf16.mxu0 0
        %1158 = vmatpush1.bf16.xpose.msra.mxu0 0
        %1159 = vmatprep.subr.bf16.mxu0 0
        %1160 = vmatpush1.bf16.xpose.msra.mxu0 0
        %1161 = vmatprep.subr.bf16.mxu0 0
        %1162 = vmatpush1.bf16.xpose.msra.mxu0 0
        %1163 = vmatprep.subr.bf16.mxu0 0
        %1164 = vmatpush1.bf16.xpose.msra.mxu0 %v1147
        %1165 = vmatprep.subr.bf16.mxu0 0
        %1166 = vmatpush2.bf16.xpose.msra.mxu0 0
        %1167 = vmatprep.subr.bf16.mxu0 0
        %1168 = vmatpush2.bf16.xpose.msra.mxu0 0
        %1169 = vmatprep.subr.bf16.mxu0 0
        %1170 = vmatpush2.bf16.xpose.msra.mxu0 0
        %1171 = vmatprep.subr.bf16.mxu0 0
        %1172 = vmatpush2.bf16.xpose.msra.mxu0 0
        %1173 = vmatprep.subr.bf16.mxu0 0
        %1174 = vmatpush2.bf16.xpose.msra.mxu0 0
        %1175 = vmatprep.subr.bf16.mxu0 0
        %1176 = vmatpush2.bf16.xpose.msra.mxu0 0
        %1177 = vmatprep.subr.bf16.mxu0 0
        %1178 = vmatpush2.bf16.xpose.msra.mxu0 0
        %1179 = vmatprep.subr.bf16.mxu0 0
        %1180 = vmatpush2.bf16.xpose.msra.mxu0 0
        %1181 = vmatprep.mubr.bf16.mxu0 0
        %1182 = vmatmul.mubr.bf16.gmra.mxu0 %v1144
        %v1183 = vpop.f32.mrf.mxu0
        %v1184 = vadd.f32 %v527, %v1183
        %v1185 = vpop.f32.mrf.mxu0
        %v1186 = vpop.f32.mrf.mxu0
        %v1187 = vpop.f32.mrf.mxu0
        %1188 = vdwg.mxu0
        %v1189 = vsel %vm667, %v1184, -inf
        %1190 = vmax.xlane.f32.xlu0 %v1189
        %v1191 = vpop.xlane.xlu0 %1190
        %v1192 = vsub.f32 %v1184, %v1191
        %v1193 = vmul.f32 %v1192, 1.442695
        %v1194 = vpow.pop %v1193
        %v1195 = vsel %vm667, %v1194, 0.0
        %1196 = vadd.xlane.f32.xlu0 %v1195
        %v1197 = vpop.xlane.xlu0 %1196
        %v1198 = vrcp.pop %v1197
        %v1199 = vpack.c.bf16 %v1194, %v1194
        %1200 = vrot.lane.b32.xlu0 %v662, 72
        %v1201 = vpop.permute.xlu0 %1200
        %v1203 = vsel %vm667, %v1199, 0
        %v1206 = vsel %vm731, %v1201, 0
        %1208 = vmatprep.subr.bf16.mxu0 0
        %1209 = vmatpush1.bf16.msra.mxu0 0
        %1210 = vmatprep.subr.bf16.mxu0 0
        %1211 = vmatpush1.bf16.msra.mxu0 0
        %1212 = vmatprep.subr.bf16.mxu0 0
        %1213 = vmatpush1.bf16.msra.mxu0 0
        %1214 = vmatprep.subr.bf16.mxu0 0
        %1215 = vmatpush1.bf16.msra.mxu0 0
        %1216 = vmatprep.subr.bf16.mxu0 0
        %1217 = vmatpush1.bf16.msra.mxu0 0
        %1218 = vmatprep.subr.bf16.mxu0 0
        %1219 = vmatpush1.bf16.msra.mxu0 0
        %1220 = vmatprep.subr.bf16.mxu0 0
        %1221 = vmatpush1.bf16.msra.mxu0 0
        %1222 = vmatprep.subr.bf16.mxu0 0
        %1223 = vmatpush1.bf16.msra.mxu0 %v1206
        %1224 = vmatprep.subr.bf16.mxu0 0
        %1225 = vmatpush2.bf16.msra.mxu0 0
        %1226 = vmatprep.subr.bf16.mxu0 0
        %1227 = vmatpush2.bf16.msra.mxu0 0
        %1228 = vmatprep.subr.bf16.mxu0 0
        %1229 = vmatpush2.bf16.msra.mxu0 0
        %1230 = vmatprep.subr.bf16.mxu0 0
        %1231 = vmatpush2.bf16.msra.mxu0 0
        %1232 = vmatprep.subr.bf16.mxu0 0
        %1233 = vmatpush2.bf16.msra.mxu0 0
        %1234 = vmatprep.subr.bf16.mxu0 0
        %1235 = vmatpush2.bf16.msra.mxu0 0
        %1236 = vmatprep.subr.bf16.mxu0 0
        %1237 = vmatpush2.bf16.msra.mxu0 0
        %1238 = vmatprep.subr.bf16.mxu0 0
        %1239 = vmatpush2.bf16.msra.mxu0 0
        %1240 = vmatprep.mubr.bf16.mxu0 0
        %1241 = vmatmul.mubr.bf16.gmra.mxu0 %v1203
        %v1242 = vpop.f32.mrf.mxu0
        %v1243 = vadd.f32 0.0, %v1242
        %v1244 = vpop.f32.mrf.mxu0
        %v1245 = vpop.f32.mrf.mxu0
        %v1246 = vpop.f32.mrf.mxu0
        %1247 = vdwg.mxu0
        %v1248 = vmul.f32 %v1243, %v1198
        %v1249 = vpack.c.bf16 %v1248, %v1248
        %v1251 = vsel %vm667, %v1249, 0
        %v1254 = vsel %vm731, %v666, 0
        %1256 = vmatprep.subr.bf16.mxu0 0
        %1257 = vmatpush1.bf16.msra.mxu0 0
        %1258 = vmatprep.subr.bf16.mxu0 0
        %1259 = vmatpush1.bf16.msra.mxu0 0
        %1260 = vmatprep.subr.bf16.mxu0 0
        %1261 = vmatpush1.bf16.msra.mxu0 0
        %1262 = vmatprep.subr.bf16.mxu0 0
        %1263 = vmatpush1.bf16.msra.mxu0 0
        %1264 = vmatprep.subr.bf16.mxu0 0
        %1265 = vmatpush1.bf16.msra.mxu0 0
        %1266 = vmatprep.subr.bf16.mxu0 0
        %1267 = vmatpush1.bf16.msra.mxu0 0
        %1268 = vmatprep.subr.bf16.mxu0 0
        %1269 = vmatpush1.bf16.msra.mxu0 0
        %1270 = vmatprep.subr.bf16.mxu0 0
        %1271 = vmatpush1.bf16.msra.mxu0 %v1254
        %1272 = vmatprep.subr.bf16.mxu0 0
        %1273 = vmatpush2.bf16.msra.mxu0 0
        %1274 = vmatprep.subr.bf16.mxu0 0
        %1275 = vmatpush2.bf16.msra.mxu0 0
        %1276 = vmatprep.subr.bf16.mxu0 0
        %1277 = vmatpush2.bf16.msra.mxu0 0
        %1278 = vmatprep.subr.bf16.mxu0 0
        %1279 = vmatpush2.bf16.msra.mxu0 0
        %1280 = vmatprep.subr.bf16.mxu0 0
        %1281 = vmatpush2.bf16.msra.mxu0 0
        %1282 = vmatprep.subr.bf16.mxu0 0
        %1283 = vmatpush2.bf16.msra.mxu0 0
        %1284 = vmatprep.subr.bf16.mxu0 0
        %1285 = vmatpush2.bf16.msra.mxu0 0
        %1286 = vmatprep.subr.bf16.mxu0 0
        %1287 = vmatpush2.bf16.msra.mxu0 0
        %1288 = vmatprep.mubr.bf16.mxu0 0
        %1289 = vmatmul.mubr.bf16.gmra.mxu0 %v1251
        %v1290 = vpop.f32.mrf.mxu0
        %v1291 = vadd.f32 0.0, %v1290
        %v1292 = vpop.f32.mrf.mxu0
        %v1293 = vpop.f32.mrf.mxu0
        %v1294 = vpop.f32.mrf.mxu0
        %1295 = vdwg.mxu0
        %v1296 = vadd.f32 %v1138, %v1291
        %v1297 = vld [vmem:[#allocation6] sm:$0x1]
        %v1299 = vlaneseq
        %v1300 = vshrl.u32 %v1299, 7
        %v1301 = vsub.s32 0, %v1300
        %v1302 = vrot.slane %v1297, %v1301
        %v1304 = vadd.f32 %v1296, %v1302
        %v1305 = vadd.f32 %v522, %v1304
        %v1306 = vsel %vm551, %v1305, 0.0
        %1307 = vadd.xlane.f32.xlu0 %v1306
        %v1308 = vpop.xlane.xlu0 %1307
        %v1309 = vrcp.pop 32.0
        %v1310 = vmul.f32 %v1308, %v1309
        %v1311 = vsub.f32 %v1305, %v1310
        %v1312 = vmul.f32 %v1311, %v1311
        %v1313 = vsel %vm551, %v1312, 0.0
        %1314 = vadd.xlane.f32.xlu0 %v1313
        %v1315 = vpop.xlane.xlu0 %1314
        %v1316 = vmul.f32 %v1315, %v1309
        %v1317 = vld [vmem:[#allocation7] sm:$0x1]
        %v1319 = vlaneseq
        %v1320 = vshrl.u32 %v1319, 7
        %v1321 = vsub.s32 0, %v1320
        %v1322 = vrot.slane %v1317, %v1321
        %v1324 = vmul.f32 %v1322, %v1311
        %v1325 = vadd.f32 %v1316, 1e-06
        %v1326 = vrsqrt.pop %v1325
        %v1327 = vmul.f32 %v1324, %v1326
        %v1328 = vld [vmem:[#allocation9] sm:$0x1]
        %v1330 = vlaneseq
        %v1331 = vshrl.u32 %v1330, 7
        %v1332 = vsub.s32 0, %v1331
        %v1333 = vrot.slane %v1328, %v1332
        %v1335 = vadd.f32 %v1327, %v1333
        %1336 = vst.msk [vmem:[%s520] sm:$0xff] %vm551, %v1335
        %p1337 = scmp.lt.s32.totalorder %s29, 1
        %s1338 = scalar_select %p1337, %s29, 1
        %p1339 = scmp.lt.s32.totalorder %s30, 0
        %s1340 = scalar_select %p1339, %s30, 0
        %s1341 = sadd.s32 %s1340, %s1338
        %s1342 = smul.addr %s1341, 8
        %s1343 = scalar_lea.vmem %s11, %s1342
        // Predicated region
        $region85: #{decoder_forward.6} parent=63 // pred_check
          %p1344 = pneg %p307
        $region86: #{decoder_forward.6} parent=63 // pred_check_branch
          %1346 = sbr.rel (%p1344) target = $region88
        $region87: #{decoder_forward.6} parent=63 // pred_region
          _
        $region88: #{decoder_forward.6} parent=63 // pred_fallthru
          _
      $region64: #{decoder_forward.6} parent=5 // pred_fallthru
        _
      %p1347 = scmp.le.s32.totalorder 2, %s20
      // Predicated region
      $region89: #{decoder_forward.6} parent=5 // pred_check
        %p1348 = pneg %p1347
      $region90: #{decoder_forward.6} parent=5 // pred_check_branch
        %1350 = sbr.rel (%p1348) target = $region92
      $region91: #{decoder_forward.6} parent=5 // pred_region
        %s1351 = ssub.s32 %s20, 2
        // Predicated region
        $region93: #{decoder_forward.6} parent=91 // pred_check
          %p1352 = pneg %p313
        $region94: #{decoder_forward.6} parent=91 // pred_check_branch
          %1354 = sbr.rel (%p1352) target = $region96
        $region95: #{decoder_forward.6} parent=91 // pred_region
          %p1355 = scmp.lt.s32.totalorder %s31, 1
          %s1356 = scalar_select %p1355, %s31, 1
          %p1357 = scmp.lt.s32.totalorder %s32, 0
          %s1358 = scalar_select %p1357, %s32, 0
          %s1359 = sadd.s32 %s1358, %s1356
          %s1360 = smul.addr %s1359, 8
          %s1361 = scalar_lea.vmem %s11, %s1360
        $region96: #{decoder_forward.6} parent=91 // pred_fallthru
          _
      $region92: #{decoder_forward.6} parent=5 // pred_fallthru
        _
    $region6: #{decoder_forward.6} parent=1 // loop_footer
      %s24 = sadd.s32 1, %s20
    $region7: #{decoder_forward.6} parent=1 // loop_footer_branch
      %19 = sbr.rel target = $region3
    $region8: #{decoder_forward.6} parent=1 // loop_exit
      _
    %1362 = vsyncpa [#allocation3], 1
    %s1363 = scalar_lea.sflag [#allocation3], 1
    %1364 = vsyncpa %s1363, 1
    %1365 = vsyncpa [#allocation5], 1
    %1366 = vsyncpa [#allocation8], 1

// kernel: decoder_forward.11
$region0: #{decoder_forward.11}
  #allocation0 [shape = 'u32[]', space=smem, size = 0x4, offset = 0x4, fixed_abs, tag = 'smem constant byte address 0x4 - core index']
  #allocation1 [shape = 'u32[144,128]{1,0:T(1,128)}', space=vmem, size = 0x12000, scoped, tag = 'internal scratch']
  %s0 = inlined_call_operand.vmem [shape: f32[16,32], index: 0, kind: input, shape index: {}]
  %s1 = inlined_call_operand.vmem [shape: bf16[32,64], index: 1, kind: input, shape index: {}]
  %s2 = inlined_call_operand.vmem [shape: f32[1,64], index: 2, kind: input, shape index: {}]
  %s3 = inlined_call_operand.vmem [shape: bf16[64,32], index: 3, kind: input, shape index: {}]
  %s4 = inlined_call_operand.vmem [shape: f32[1,32], index: 4, kind: input, shape index: {}]
  %s5 = inlined_call_operand.vmem [shape: f32[1,32], index: 5, kind: input, shape index: {}]
  %s6 = inlined_call_operand.vmem [shape: f32[1,32], index: 6, kind: input, shape index: {}]
  %s7 = inlined_call_operand.hbm [shape: f32[16,32], index: 7, kind: output, shape index: {}]
  %s8 = sld [smem:[#allocation0]]
  $region38: #{decoder_forward.11} parent=0
    _
  %s10 = ssub.s32 1, %s8
  %s11 = scalar_select 0, %s10, %s8
  $region1: #{decoder_forward.11} parent=0
    #allocation2 [shape = 'u8[8192]{0}', space=vmem, size = 0x2000, scoped, tag = 'output window, operand 0, single buffered']
    #allocation3 [shape = 's32[1]{0}', space=sflag, size = 0x4, scoped, tag = 'scoped memory for decoder_forward.11']
    %12 = vsyncpa [#allocation3], 0
    // Predicated region
    $region2: #{decoder_forward.11} parent=1 // pred_check
      _
    $region3: #{decoder_forward.11} parent=1 // pred_check_branch
      %14 = sbr.rel (0) target = $region5
    $region4: #{decoder_forward.11} parent=1 // pred_region
      _
    $region5: #{decoder_forward.11} parent=1 // pred_fallthru
      _
    // Predicated region
    $region6: #{decoder_forward.11} parent=1 // pred_check
      _
    $region7: #{decoder_forward.11} parent=1 // pred_check_branch
      %16 = sbr.rel (0) target = $region9
    $region8: #{decoder_forward.11} parent=1 // pred_region
      _
    $region9: #{decoder_forward.11} parent=1 // pred_fallthru
      _
    // Predicated region
    $region10: #{decoder_forward.11} parent=1 // pred_check
      _
    $region11: #{decoder_forward.11} parent=1 // pred_check_branch
      %18 = sbr.rel (0) target = $region13
    $region12: #{decoder_forward.11} parent=1 // pred_region
      _
    $region13: #{decoder_forward.11} parent=1 // pred_fallthru
      _
    // Predicated region
    $region14: #{decoder_forward.11} parent=1 // pred_check
      _
    $region15: #{decoder_forward.11} parent=1 // pred_check_branch
      %20 = sbr.rel (0) target = $region17
    $region16: #{decoder_forward.11} parent=1 // pred_region
      _
    $region17: #{decoder_forward.11} parent=1 // pred_fallthru
      _
    // Predicated region
    $region18: #{decoder_forward.11} parent=1 // pred_check
      _
    $region19: #{decoder_forward.11} parent=1 // pred_check_branch
      %22 = sbr.rel (0) target = $region21
    $region20: #{decoder_forward.11} parent=1 // pred_region
      _
    $region21: #{decoder_forward.11} parent=1 // pred_fallthru
      _
    // Predicated region
    $region22: #{decoder_forward.11} parent=1 // pred_check
      _
    $region23: #{decoder_forward.11} parent=1 // pred_check_branch
      %24 = sbr.rel (0) target = $region25
    $region24: #{decoder_forward.11} parent=1 // pred_region
      _
    $region25: #{decoder_forward.11} parent=1 // pred_fallthru
      _
    // Predicated region
    $region26: #{decoder_forward.11} parent=1 // pred_check
      _
    $region27: #{decoder_forward.11} parent=1 // pred_check_branch
      %26 = sbr.rel (0) target = $region29
    $region28: #{decoder_forward.11} parent=1 // pred_region
      _
    $region29: #{decoder_forward.11} parent=1 // pred_fallthru
      _
    %v28 = vld [vmem:[%s0] sm:$0xff]
    %v29 = vld [vmem:[%s0 + $0x8] sm:$0xff]
    %v30 = vpack.c.bf16 %v29, %v28
    %v31 = vld [vmem:[%s1] sm:$0xf]
    %v32 = vld [vmem:[%s1 + $0x4] sm:$0xf]
    %v33 = vld [vmem:[%s1 + $0x8] sm:$0xf]
    %v34 = vld [vmem:[%s1 + $0xc] sm:$0xf]
    %v35 = vld [vmem:[%s2] sm:$0x1]
    %v37 = vlaneseq
    %v38 = vshrl.u32 %v37, 7
    %v39 = vsub.s32 0, %v38
    %v40 = vrot.slane %v35, %v39
    %v46 = vunpack.c.l.b16 %v31
    %v47 = vunpack.c.l.b16 %v32
    %v48 = vunpack.c.l.b16 %v33
    %v49 = vunpack.c.l.b16 %v34
    %v50 = vpack.c.b16 %v47, %v46
    %v51 = vpack.c.b16 %v49, %v48
    %vm54 = vcmask 261120
    %v56 = vsel %vm54, %v30, 0
    %58 = vmatprep.subr.bf16.mxu0 0
    %59 = vmatpush1.bf16.msra.mxu0 0
    %60 = vmatprep.subr.bf16.mxu0 0
    %61 = vmatpush1.bf16.msra.mxu0 0
    %62 = vmatprep.subr.bf16.mxu0 0
    %63 = vmatpush1.bf16.msra.mxu0 0
    %64 = vmatprep.subr.bf16.mxu0 0
    %65 = vmatpush1.bf16.msra.mxu0 0
    %66 = vmatprep.subr.bf16.mxu0 0
    %67 = vmatpush1.bf16.msra.mxu0 0
    %68 = vmatprep.subr.bf16.mxu0 0
    %69 = vmatpush1.bf16.msra.mxu0 0
    %70 = vmatprep.subr.bf16.mxu0 0
    %71 = vmatpush1.bf16.msra.mxu0 %v51
    %72 = vmatprep.subr.bf16.mxu0 0
    %73 = vmatpush1.bf16.msra.mxu0 %v50
    %74 = vmatprep.subr.bf16.mxu0 0
    %75 = vmatpush2.bf16.msra.mxu0 0
    %76 = vmatprep.subr.bf16.mxu0 0
    %77 = vmatpush2.bf16.msra.mxu0 0
    %78 = vmatprep.subr.bf16.mxu0 0
    %79 = vmatpush2.bf16.msra.mxu0 0
    %80 = vmatprep.subr.bf16.mxu0 0
    %81 = vmatpush2.bf16.msra.mxu0 0
    %82 = vmatprep.subr.bf16.mxu0 0
    %83 = vmatpush2.bf16.msra.mxu0 0
    %84 = vmatprep.subr.bf16.mxu0 0
    %85 = vmatpush2.bf16.msra.mxu0 0
    %86 = vmatprep.subr.bf16.mxu0 0
    %87 = vmatpush2.bf16.msra.mxu0 0
    %88 = vmatprep.subr.bf16.mxu0 0
    %89 = vmatpush2.bf16.msra.mxu0 0
    %90 = vmatprep.mubr.bf16.mxu0 0
    %91 = vmatmul.mubr.bf16.gmra.mxu0 %v56
    %v92 = vpop.f32.mrf.mxu0
    %v93 = vadd.f32 %v40, %v92
    %v94 = vpop.f32.mrf.mxu0
    %v95 = vpop.f32.mrf.mxu0
    %v96 = vadd.f32 %v40, %v95
    %v97 = vpop.f32.mrf.mxu0
    %98 = vdwg.mxu0
    %v99 = vmax.f32 %v93, 0.0
    %v100 = vmax.f32 %v96, 0.0
    %v101 = vpack.c.bf16 %v100, %v99
    %v102 = vld [vmem:[%s3] sm:$0xf]
    %v103 = vld [vmem:[%s3 + $0x4] sm:$0xf]
    %v104 = vld [vmem:[%s3 + $0x8] sm:$0xf]
    %v105 = vld [vmem:[%s3 + $0xc] sm:$0xf]
    %v106 = vld [vmem:[%s3 + $0x10] sm:$0xf]
    %v107 = vld [vmem:[%s3 + $0x14] sm:$0xf]
    %v108 = vld [vmem:[%s3 + $0x18] sm:$0xf]
    %v109 = vld [vmem:[%s3 + $0x1c] sm:$0xf]
    %v110 = vld [vmem:[%s4] sm:$0x1]
    %v112 = vlaneseq
    %v113 = vshrl.u32 %v112, 7
    %v114 = vsub.s32 0, %v113
    %v115 = vrot.slane %v110, %v114
    %v125 = vunpack.c.l.b16 %v102
    %v126 = vunpack.c.l.b16 %v103
    %v127 = vunpack.c.l.b16 %v104
    %v128 = vunpack.c.l.b16 %v105
    %v129 = vunpack.c.l.b16 %v106
    %v130 = vunpack.c.l.b16 %v107
    %v131 = vunpack.c.l.b16 %v108
    %v132 = vunpack.c.l.b16 %v109
    %v133 = vpack.c.b16 %v126, %v125
    %v134 = vpack.c.b16 %v128, %v127
    %v135 = vpack.c.b16 %v130, %v129
    %v136 = vpack.c.b16 %v132, %v131
    %vm141 = vcmask 523264
    %v143 = vsel %vm141, %v101, 0
    %145 = vmatprep.subr.bf16.mxu0 0
    %146 = vmatpush1.bf16.msra.mxu0 0
    %147 = vmatprep.subr.bf16.mxu0 0
    %148 = vmatpush1.bf16.msra.mxu0 0
    %149 = vmatprep.subr.bf16.mxu0 0
    %150 = vmatpush1.bf16.msra.mxu0 0
    %151 = vmatprep.subr.bf16.mxu0 0
    %152 = vmatpush1.bf16.msra.mxu0 0
    %153 = vmatprep.subr.bf16.mxu0 0
    %154 = vmatpush1.bf16.msra.mxu0 %v136
    %155 = vmatprep.subr.bf16.mxu0 0
    %156 = vmatpush1.bf16.msra.mxu0 %v135
    %157 = vmatprep.subr.bf16.mxu0 0
    %158 = vmatpush1.bf16.msra.mxu0 %v134
    %159 = vmatprep.subr.bf16.mxu0 0
    %160 = vmatpush1.bf16.msra.mxu0 %v133
    %161 = vmatprep.subr.bf16.mxu0 0
    %162 = vmatpush2.bf16.msra.mxu0 0
    %163 = vmatprep.subr.bf16.mxu0 0
    %164 = vmatpush2.bf16.msra.mxu0 0
    %165 = vmatprep.subr.bf16.mxu0 0
    %166 = vmatpush2.bf16.msra.mxu0 0
    %167 = vmatprep.subr.bf16.mxu0 0
    %168 = vmatpush2.bf16.msra.mxu0 0
    %169 = vmatprep.subr.bf16.mxu0 0
    %170 = vmatpush2.bf16.msra.mxu0 0
    %171 = vmatprep.subr.bf16.mxu0 0
    %172 = vmatpush2.bf16.msra.mxu0 0
    %173 = vmatprep.subr.bf16.mxu0 0
    %174 = vmatpush2.bf16.msra.mxu0 0
    %175 = vmatprep.subr.bf16.mxu0 0
    %176 = vmatpush2.bf16.msra.mxu0 0
    %177 = vmatprep.mubr.bf16.mxu0 0
    %178 = vmatmul.mubr.bf16.gmra.mxu0 %v143
    %v179 = vpop.f32.mrf.mxu0
    %v180 = vadd.f32 %v115, %v179
    %v181 = vpop.f32.mrf.mxu0
    %v182 = vpop.f32.mrf.mxu0
    %v183 = vadd.f32 %v115, %v182
    %v184 = vpop.f32.mrf.mxu0
    %185 = vdwg.mxu0
    %v186 = vadd.f32 %v28, %v180
    %v187 = vadd.f32 %v29, %v183
    %v188 = vsel %vm54, %v186, 0.0
    %189 = vadd.xlane.f32.xlu0 %v188
    %v190 = vpop.xlane.xlu0 %189
    %v191 = vsel %vm54, %v187, 0.0
    %192 = vadd.xlane.f32.xlu0 %v191
    %v193 = vpop.xlane.xlu0 %192
    %v194 = vrcp.pop 32.0
    %v195 = vmul.f32 %v190, %v194
    %v196 = vmul.f32 %v193, %v194
    %v197 = vsub.f32 %v186, %v195
    %v198 = vsub.f32 %v187, %v196
    %v199 = vmul.f32 %v197, %v197
    %v200 = vmul.f32 %v198, %v198
    %v201 = vsel %vm54, %v199, 0.0
    %202 = vadd.xlane.f32.xlu0 %v201
    %v203 = vpop.xlane.xlu0 %202
    %v204 = vsel %vm54, %v200, 0.0
    %205 = vadd.xlane.f32.xlu0 %v204
    %v206 = vpop.xlane.xlu0 %205
    %v207 = vmul.f32 %v203, %v194
    %v208 = vmul.f32 %v206, %v194
    %v209 = vld [vmem:[%s5] sm:$0x1]
    %v211 = vlaneseq
    %v212 = vshrl.u32 %v211, 7
    %v213 = vsub.s32 0, %v212
    %v214 = vrot.slane %v209, %v213
    %v216 = vmul.f32 %v214, %v197
    %v217 = vmul.f32 %v214, %v198
    %v218 = vadd.f32 %v207, 1e-06
    %v219 = vadd.f32 %v208, 1e-06
    %v220 = vrsqrt.pop %v218
    %v221 = vrsqrt.pop %v219
    %v222 = vmul.f32 %v216, %v220
    %v223 = vmul.f32 %v217, %v221
    %v224 = vld [vmem:[%s6] sm:$0x1]
    %v226 = vlaneseq
    %v227 = vshrl.u32 %v226, 7
    %v228 = vsub.s32 0, %v227
    %v229 = vrot.slane %v224, %v228
    %v231 = vadd.f32 %v222, %v229
    %v232 = vadd.f32 %v223, %v229
    %233 = vst.msk [vmem:[#allocation2] sm:$0xff] %vm54, %v231
    %234 = vst.msk [vmem:[#allocation2 + $0x8] sm:$0xff] %vm54, %v232
    // Predicated region
    $region30: #{decoder_forward.11} parent=1 // pred_check
      _
    $region31: #{decoder_forward.11} parent=1 // pred_check_branch
      %236 = sbr.rel (0) target = $region33
    $region32: #{decoder_forward.11} parent=1 // pred_region
      %s238 = ssub.s32 256, 256
      %239 = vsyncadd [#allocation3], %s238
      %s240 = sshll.u32 [#allocation2], 4
      %s241 = int_to_ptr.vmem [resolvable:$true] %s240
      %246 = dma.vmem_to_hbm [thread:$0]  %s241, 256, %s7, [#allocation3], 128, 128, 8
    $region33: #{decoder_forward.11} parent=1 // pred_fallthru
      _
    // Predicated region
    $region34: #{decoder_forward.11} parent=1 // pred_check
      _
    $region35: #{decoder_forward.11} parent=1 // pred_check_branch
      %248 = sbr.rel (0) target = $region37
    $region36: #{decoder_forward.11} parent=1 // pred_region
      %249 = dma.done [#allocation3], 256
    $region37: #{decoder_forward.11} parent=1 // pred_fallthru
      _
    %250 = vsyncpa [#allocation3], 1

</llo_original>
